<compile_context>
chip_gen: v5e
topology: v5e:2x2
jax: 0.10.0
libtpu: 0.0.40
codegen_flags: <defaults>
</compile_context>

<pallas_src>
import functools

import jax
import jax.numpy as jnp
from jax.experimental import pallas as pl
from jax.experimental.pallas import tpu as pltpu

EPS = 1e-5
LANE = 128


def _round_up(x, m):
    return (x + m - 1) // m * m


def _nbytes(a):
    return int(a.size) * a.dtype.itemsize


def _vmem_limit_bytes():
    # generation-aware VMEM budget (review): ~80% of physical capacity, leaving
    # headroom for Mosaic internal scratch and BlockSpec double buffers.
    try:
        cap = int(pltpu.get_tpu_info().vmem_capacity_bytes)
    except Exception:
        cap = 64 * 1024 * 1024
    return min(int(cap * 0.8), 112 * 1024 * 1024)


# ----------------------------- pass 1 kernel ---------------------------------
# conv1 (3x3 s2) + downsample (3x3 s2) fused into one MXU RHS, per batch tile,
# plus per-tile BN1 partial statistics (tile sum, tile-centered sum of squares).

def _conv1_ds_kernel(xs_ref, w1d_ref, y1_ref, idn_ref, st_ref, *, win):
    _, _, _, K1 = xs_ref.shape
    _, Ho, Wo, Cp = y1_ref.shape
    Mt = Ho * Wo

    # per-tap MXU accumulation over the 2x2 window of the space-to-depth grid
    # (win==1: the window was folded into channels in the wrapper -> one dot).
    acc = jnp.zeros((Mt, 2 * Cp), jnp.float32)
    for wy in range(win):
        for wx in range(win):
            t = wy * win + wx
            tap = xs_ref[:, wy:wy + Ho, wx:wx + Wo, :].reshape(Mt, K1)
            acc = acc + jnp.dot(tap, w1d_ref[t * K1:(t + 1) * K1, :],
                                preferred_element_type=jnp.float32)

    y1 = acc[:, :Cp]                                   # conv1 path
    y1_ref[...] = y1.reshape(1, Ho, Wo, Cp)
    idn_ref[...] = acc[:, Cp:].reshape(1, Ho, Wo, Cp)  # downsample path

    # per-tile BN1 partials (centered inside the tile -> good numerics; tiles
    # are combined exactly with Chan's formula in the wrapper)
    tsum = jnp.sum(y1, axis=0, keepdims=True)
    css = jnp.sum(jnp.square(y1 - tsum * (1.0 / Mt)), axis=0, keepdims=True)
    st_ref[...] = jnp.concatenate(
        [tsum, css, jnp.zeros((6, Cp), jnp.float32)], axis=0).reshape(1, 8, Cp)


# ----------------------------- pass 2 kernel ---------------------------------
# BN1 (precomputed scale/bias) + ReLU, conv2 (3x3 s1) via per-tap accumulation
# over a bf16 halo-padded VMEM copy of mid, plus per-tile BN2 partial stats.

def _bn_relu_conv2_kernel(y1_ref, s1_ref, b1_ref, w2_ref, y2_ref, st_ref,
                          midp_ref):
    _, Ho, Wo, Cp = y1_ref.shape
    Mt = Ho * Wo
    HL = 8    # 8-wide left halo -> the big interior store starts sublane-aligned
    zdt = midp_ref.dtype

    # zero only the halo (re-done every step: cheap, and keeps the 'parallel'
    # grid axis megacore-safe -- no cross-iteration scratch state)
    midp_ref[:, 0:1, :, :] = jnp.zeros((1, 1, Wo + HL + 1, Cp), zdt)
    midp_ref[:, Ho + 1:Ho + 2, :, :] = jnp.zeros((1, 1, Wo + HL + 1, Cp), zdt)
    midp_ref[:, :, 0:HL, :] = jnp.zeros((1, Ho + 2, HL, Cp), zdt)
    midp_ref[:, :, Wo + HL:Wo + HL + 1, :] = jnp.zeros((1, Ho + 2, 1, Cp), zdt)

    # BN1 folded into one multiply-add, then ReLU; stored once as the bf16
    # conv2 MXU operand.
    y1 = y1_ref[...].reshape(Mt, Cp)
    mid = jnp.maximum(y1 * s1_ref[...] + b1_ref[...], 0.0)
    midp_ref[:, 1:Ho + 1, HL:HL + Wo, :] = mid.astype(zdt).reshape(1, Ho, Wo, Cp)

    # conv2: per-tap MXU accumulation over shifted VMEM reads (no 9x im2col
    # buffer).  kx=0,1 taps of each row are paired -> K = 2*Cp per push
    # (feeds v6e/v7x's 256-deep MXU); for Cp >= 256 plain per-tap is used.
    acc = jnp.zeros((Mt, Cp), jnp.float32)
    for ky in range(3):
        base = 3 * ky
        if Cp <= 128:
            t01 = jnp.concatenate(
                [midp_ref[:, ky:ky + Ho, HL - 1 + kx:HL - 1 + kx + Wo, :]
                 .reshape(Mt, Cp) for kx in (0, 1)], axis=-1)
            acc = acc + jnp.dot(t01, w2_ref[base * Cp:(base + 2) * Cp, :],
                                preferred_element_type=jnp.float32)
            t2 = midp_ref[:, ky:ky + Ho, HL + 1:HL + 1 + Wo, :].reshape(Mt, Cp)
            acc = acc + jnp.dot(t2, w2_ref[(base + 2) * Cp:(base + 3) * Cp, :],
                                preferred_element_type=jnp.float32)
        else:
            for kx in range(3):
                t = midp_ref[:, ky:ky + Ho,
                             HL - 1 + kx:HL - 1 + kx + Wo, :].reshape(Mt, Cp)
                acc = acc + jnp.dot(
                    t, w2_ref[(base + kx) * Cp:(base + kx + 1) * Cp, :],
                    preferred_element_type=jnp.float32)

    y2_ref[...] = acc.reshape(1, Ho, Wo, Cp)
    tsum = jnp.sum(acc, axis=0, keepdims=True)
    css = jnp.sum(jnp.square(acc - tsum * (1.0 / Mt)), axis=0, keepdims=True)
    st_ref[...] = jnp.concatenate(
        [tsum, css, jnp.zeros((6, Cp), jnp.float32)], axis=0).reshape(1, 8, Cp)


# ----------------------------- pass 3 kernel ---------------------------------

def _bn_add_relu_kernel(y2_ref, idn_ref, s2_ref, b2_ref, out_ref):
    _, Ho, Wo, Cp = y2_ref.shape
    Mt = Ho * Wo
    y2 = y2_ref[...].reshape(Mt, Cp)
    idn = idn_ref[...].reshape(Mt, Cp)
    out = jnp.maximum(y2 * s2_ref[...] + b2_ref[...] + idn, 0.0)
    out_ref[...] = out.reshape(1, Ho, Wo, Cp).astype(out_ref.dtype)


# --------------------------- weight / stats helpers ---------------------------

def _conv1_taps(w_oihw):
    """3x3 stride-2 conv weight -> (wy, wx, 4*Cin, Cout) space-to-depth taps."""
    cout, cin, _, _ = w_oihw.shape
    w = jnp.transpose(w_oihw, (2, 3, 1, 0))                       # (dy,dx,ci,co)
    w4 = jnp.zeros((4, 4, cin, cout), w.dtype).at[:3, :3].set(w)
    w4 = w4.reshape(2, 2, 2, 2, cin, cout)                        # (wy,py,wx,px,..)
    w4 = jnp.transpose(w4, (0, 2, 1, 3, 4, 5))                    # (wy,wx,py,px,..)
    return w4.reshape(2, 2, 4 * cin, cout)


def _pack_conv1_win(w_taps, K1, Cp):
    """Small-Cin layout: the 2x2 window is folded into channels (K = K1)."""
    _, _, k, cout = w_taps.shape
    w = w_taps.reshape(4 * k, cout)
    return jnp.pad(w, ((0, K1 - 4 * k), (0, Cp - cout)))


def _pack_conv1_s2d(w_taps, K1, Cp):
    """Large-Cin layout: tap-major rows, each tap lane-padded to K1."""
    _, _, k, cout = w_taps.shape
    w = jnp.pad(w_taps, ((0, 0), (0, 0), (0, K1 - k), (0, Cp - cout)))
    return w.reshape(4 * K1, Cp)


def _pack_conv2(w_oihw, Cp):
    cout, cin, _, _ = w_oihw.shape
    w = jnp.transpose(w_oihw, (2, 3, 1, 0))                       # (ky,kx,ci,co)
    w = jnp.pad(w, ((0, 0), (0, 0), (0, Cp - cin), (0, Cp - cout)))
    return w.reshape(9 * Cp, Cp)


def _bn_scale_bias(stats, m_tile, gamma_p, beta_p):
    """Chan-style exact combine of per-tile [sum, centered sumsq] -> BN affine."""
    nt = stats.shape[0]
    m_total = nt * m_tile
    sums = stats[:, 0, :]
    css = stats[:, 1, :]
    mean = jnp.sum(sums, axis=0) / m_total
    tmean = sums / m_tile
    var = (jnp.sum(css, axis=0)
           + m_tile * jnp.sum(jnp.square(tmean - mean[None, :]), axis=0)) / m_total
    scale = gamma_p * jax.lax.rsqrt(var + EPS)
    bias = beta_p - mean * scale
    return scale.reshape(1, -1), bias.reshape(1, -1)


# --------------------------------- forward ------------------------------------

def block_forward(x_nchw, params):
    w1, w2, wd = params["w1"], params["w2"], params["wd"]
    g1, b1, g2, b2 = params["g1"], params["b1"], params["g2"], params["b2"]
    C, Cin = w1.shape[0], w1.shape[1]
    N, _, H, W = x_nchw.shape
    assert H % 2 == 0 and W % 2 == 0, "stride-2 block expects even H, W"
    Ho, Wo = H // 2, W // 2
    Mt = Ho * Wo                      # rows per batch tile (one image per step)
    nt = N
    Cp = _round_up(C, LANE)

    # ---- input prep: NCHW -> NHWC, cast bf16, zero-pad, space-to-depth -------
    x = jnp.transpose(x_nchw, (0, 2, 3, 1)).astype(jnp.bfloat16)
    xp = jnp.pad(x, ((0, 0), (1, 1), (1, 1), (0, 0)))
    Hs, Ws = Ho + 1, Wo + 1
    xs2d = jnp.transpose(xp.reshape(N, Hs, 2, Ws, 2, Cin),
                         (0, 1, 3, 2, 4, 5)).reshape(N, Hs, Ws, 4 * Cin)
    if 16 * Cin <= LANE:
        # small-Cin repack: fold the 2x2 window into channels so the lane
        # padding to 128 is paid once (K = 128 instead of 4 x 128).
        win, K1 = 1, LANE
        xs = jnp.concatenate([xs2d[:, wy:wy + Ho, wx:wx + Wo, :]
                              for wy in range(2) for wx in range(2)], axis=-1)
        xs = jnp.pad(xs, ((0, 0), (0, 0), (0, 0), (0, K1 - 16 * Cin)))
    else:
        # large Cin: compact s2d layout in HBM (no duplication); the kernel
        # accumulates the four window taps on the MXU.
        win, K1 = 2, _round_up(4 * Cin, LANE)
        xs = jnp.pad(xs2d, ((0, 0), (0, 0), (0, 0), (0, K1 - 4 * Cin)))
    Hxs, Wxs = xs.shape[1], xs.shape[2]

    # ---- weights: conv1 + downsample share one RHS; conv2 is tap-major -------
    t1, td = _conv1_taps(w1), _conv1_taps(wd)
    pack1 = _pack_conv1_win if win == 1 else _pack_conv1_s2d
    w1d = jnp.concatenate([pack1(t1, K1, Cp), pack1(td, K1, Cp)],
                          axis=1).astype(jnp.bfloat16)            # (win^2*K1, 2*Cp)
    w2f = _pack_conv2(w2, Cp).astype(jnp.bfloat16)                # (9*Cp, Cp)

    pad_c = Cp - C
    g1p = jnp.pad(g1, (0, pad_c)).astype(jnp.float32)
    b1p = jnp.pad(b1, (0, pad_c)).astype(jnp.float32)
    g2p = jnp.pad(g2, (0, pad_c)).astype(jnp.float32)
    b2p = jnp.pad(b2, (0, pad_c)).astype(jnp.float32)

    cparams = pltpu.CompilerParams(dimension_semantics=("parallel",),
                                   vmem_limit_bytes=_vmem_limit_bytes())

    tile4 = lambda i: (i, 0, 0, 0)
    tile3 = lambda i: (i, 0, 0)
    whole = lambda i: (0, 0)

    # ------------- pass 1: conv1 + downsample, per-tile BN1 partials ----------
    flops1 = 2 * N * Mt * (win * win * K1) * (2 * Cp)
    y1, idn, st1 = pl.pallas_call(
        functools.partial(_conv1_ds_kernel, win=win),
        grid=(nt,),
        in_specs=[pl.BlockSpec((1, Hxs, Wxs, K1), tile4),
                  pl.BlockSpec((win * win * K1, 2 * Cp), whole)],
        out_specs=(pl.BlockSpec((1, Ho, Wo, Cp), tile4),
                   pl.BlockSpec((1, Ho, Wo, Cp), tile4),
                   pl.BlockSpec((1, 8, Cp), tile3)),
        out_shape=(jax.ShapeDtypeStruct((N, Ho, Wo, Cp), jnp.float32),
                   jax.ShapeDtypeStruct((N, Ho, Wo, Cp), jnp.float32),
                   jax.ShapeDtypeStruct((nt, 8, Cp), jnp.float32)),
        compiler_params=cparams,
        cost_estimate=pl.CostEstimate(
            flops=int(flops1), transcendentals=0,
            bytes_accessed=int(_nbytes(xs) + _nbytes(w1d)
                               + 2 * N * Mt * Cp * 4 + nt * 8 * Cp * 4)),
    )(xs, w1d)

    scale1, bias1 = _bn_scale_bias(st1, Mt, g1p, b1p)

    # ------------- pass 2: BN1 + ReLU + conv2, per-tile BN2 partials ----------
    flops2 = 2 * N * Mt * (9 * Cp) * Cp
    y2, st2 = pl.pallas_call(
        _bn_relu_conv2_kernel,
        grid=(nt,),
        in_specs=[pl.BlockSpec((1, Ho, Wo, Cp), tile4),
                  pl.BlockSpec((1, Cp), whole),
                  pl.BlockSpec((1, Cp), whole),
                  pl.BlockSpec((9 * Cp, Cp), whole)],
        out_specs=(pl.BlockSpec((1, Ho, Wo, Cp), tile4),
                   pl.BlockSpec((1, 8, Cp), tile3)),
        out_shape=(jax.ShapeDtypeStruct((N, Ho, Wo, Cp), jnp.float32),
                   jax.ShapeDtypeStruct((nt, 8, Cp), jnp.float32)),
        scratch_shapes=[pltpu.VMEM((1, Ho + 2, Wo + 9, Cp), jnp.bfloat16)],
        compiler_params=cparams,
        cost_estimate=pl.CostEstimate(
            flops=int(flops2), transcendentals=0,
            bytes_accessed=int(2 * N * Mt * Cp * 4 + _nbytes(w2f)
                               + nt * 8 * Cp * 4 + 2 * Cp * 4)),
    )(y1, scale1, bias1, w2f)

    scale2, bias2 = _bn_scale_bias(st2, Mt, g2p, b2p)

    # ------------- pass 3: BN2 + residual + ReLU ------------------------------
    out = pl.pallas_call(
        _bn_add_relu_kernel,
        grid=(nt,),
        in_specs=[pl.BlockSpec((1, Ho, Wo, Cp), tile4),
                  pl.BlockSpec((1, Ho, Wo, Cp), tile4),
                  pl.BlockSpec((1, Cp), whole),
                  pl.BlockSpec((1, Cp), whole)],
        out_specs=pl.BlockSpec((1, Ho, Wo, Cp), tile4),
        out_shape=jax.ShapeDtypeStruct((N, Ho, Wo, Cp), jnp.float32),
        compiler_params=cparams,
        cost_estimate=pl.CostEstimate(
            flops=int(4 * N * Mt * Cp), transcendentals=0,
            bytes_accessed=int(3 * N * Mt * Cp * 4 + 2 * Cp * 4)),
    )(y2, idn, scale2, bias2)

    out = out[..., :C]                                  # drop channel padding
    return jnp.transpose(out, (0, 3, 1, 2))             # NHWC -> NCHW


# ------------------------------ reference --------------------------------------

def reference(x_nchw, params):
    def conv(x, w, stride):
        return jax.lax.conv_general_dilated(
            x, w, (stride, stride), ((1, 1), (1, 1)),
            dimension_numbers=("NCHW", "OIHW", "NCHW"))

    def bn_train(y, g, b):
        mean = jnp.mean(y, axis=(0, 2, 3), keepdims=True)
        var = jnp.mean(jnp.square(y - mean), axis=(0, 2, 3), keepdims=True)
        return ((y - mean) * jax.lax.rsqrt(var + EPS)
                * g.reshape(1, -1, 1, 1) + b.reshape(1, -1, 1, 1))

    x = x_nchw.astype(jnp.float32)
    out = jax.nn.relu(bn_train(conv(x, params["w1"], 2), params["g1"], params["b1"]))
    out = bn_train(conv(out, params["w2"], 1), params["g2"], params["b2"])
    identity = conv(x, params["wd"], 2)
    return jax.nn.relu(out + identity)


# --------------------------------- main -----------------------------------------

if __name__ == "__main__":
    key = jax.random.PRNGKey(0)

    def make_params(k, cin, c):
        k1, k2, kd = jax.random.split(k, 3)
        return dict(
            w1=jax.random.normal(k1, (c, cin, 3, 3), jnp.float32) * 0.1,
            w2=jax.random.normal(k2, (c, c, 3, 3), jnp.float32) * 0.1,
            wd=jax.random.normal(kd, (c, cin, 3, 3), jnp.float32) * 0.1,
            g1=jnp.ones((c,), jnp.float32), b1=jnp.zeros((c,), jnp.float32),
            g2=jnp.ones((c,), jnp.float32), b2=jnp.zeros((c,), jnp.float32),
        )

    fwd = jax.jit(block_forward)

    # main config (exercises the small-Cin repacked conv1 path)
    kx, kp = jax.random.split(key)
    N, Cin, C, H, W = 2, 4, 8, 16, 16
    x = jax.random.normal(kx, (N, Cin, H, W), jnp.float32)
    params = make_params(kp, Cin, C)
    out = jax.block_until_ready(fwd(x, params))
    ref = reference(x, params)
    assert out.shape == (N, C, H // 2, W // 2), out.shape
    err = float(jnp.max(jnp.abs(out - ref)))
    # bf16 MXU operands (f32 accumulation, f32 BN stats) -> slightly loose tol
    assert jnp.allclose(out, ref, atol=5e-2, rtol=5e-2), err

    # second config exercises the per-tap space-to-depth conv1 path (Cin > 8)
    kx2, kp2 = jax.random.split(kp)
    x2 = jax.random.normal(kx2, (1, 32, 8, 8), jnp.float32)
    params2 = make_params(kp2, 32, 8)
    out2 = jax.block_until_ready(fwd(x2, params2))
    ref2 = reference(x2, params2)
    err2 = float(jnp.max(jnp.abs(out2 - ref2)))
    assert jnp.allclose(out2, ref2, atol=5e-2, rtol=5e-2), err2

    print("KERNEL_OK")
</pallas_src>

<mosaic_0001>
module attributes {stable_mosaic.version = 11 : i64} {
  func.func @_conv1_ds_kernel(%arg0: i32, %arg1: memref<1x8x8x128xbf16, #tpu.memory_space<vmem>>, %arg2: memref<128x256xbf16, #tpu.memory_space<vmem>>, %arg3: memref<1x8x8x128xf32, #tpu.memory_space<vmem>>, %arg4: memref<1x8x8x128xf32, #tpu.memory_space<vmem>>, %arg5: memref<1x8x128xf32, #tpu.memory_space<vmem>>) attributes {dimension_semantics = [#tpu.dimension_semantics<parallel>], iteration_bounds = array<i64: 2>, scalar_prefetch = 0 : i64, scratch_operands = 0 : i64, tpu.core_type = #tpu.core_type<tc>, window_params = [{transform_indices = @transform_0, window_bounds = array<i64: 1, 8, 8, 128>}, {pipeline_mode = #tpu.pipeline_mode<synchronous>, transform_indices = @transform_1, window_bounds = array<i64: 128, 256>}, {transform_indices = @transform_2, window_bounds = array<i64: 1, 8, 8, 128>}, {transform_indices = @transform_3, window_bounds = array<i64: 1, 8, 8, 128>}, {transform_indices = @transform_4, window_bounds = array<i64: 1, 8, 128>}]} {
    %cst = arith.constant 0.000000e+00 : f32
    %0 = vector.broadcast %cst : f32 to vector<64x256xf32>
    %c0 = arith.constant 0 : index
    %c0_0 = arith.constant 0 : index
    %c0_1 = arith.constant 0 : index
    %c0_2 = arith.constant 0 : index
    %1 = vector.load %arg1[%c0, %c0_0, %c0_1, %c0_2] : memref<1x8x8x128xbf16, #tpu.memory_space<vmem>>, vector<1x8x8x128xbf16>
    %2 = vector.shape_cast %1 : vector<1x8x8x128xbf16> to vector<64x128xbf16>
    %c0_3 = arith.constant 0 : index
    %c0_4 = arith.constant 0 : index
    %3 = vector.load %arg2[%c0_3, %c0_4] : memref<128x256xbf16, #tpu.memory_space<vmem>>, vector<128x256xbf16>
    %cst_5 = arith.constant dense<0.000000e+00> : vector<64x256xf32>
    %4 = tpu.matmul %2, %3, %cst_5 {dimension_numbers = #tpu.dot_dimension_numbers<[1], [0], [0], [1], [0, 0, 1, 1], [], []>} : vector<64x128xbf16>, vector<128x256xbf16>, vector<64x256xf32> -> vector<64x256xf32>
    %5 = arith.addf %0, %4 : vector<64x256xf32>
    %6 = vector.extract_strided_slice %5 {offsets = [0, 0], sizes = [64, 128], strides = [1, 1]} : vector<64x256xf32> to vector<64x128xf32>
    %7 = vector.shape_cast %6 : vector<64x128xf32> to vector<1x8x8x128xf32>
    %c0_6 = arith.constant 0 : index
    %c0_7 = arith.constant 0 : index
    %c0_8 = arith.constant 0 : index
    %c0_9 = arith.constant 0 : index
    %8 = vector.load %arg3[%c0_6, %c0_7, %c0_8, %c0_9] : memref<1x8x8x128xf32, #tpu.memory_space<vmem>>, vector<1x8x8x128xf32>
    tpu.vector_store %arg3[%c0_6, %c0_7, %c0_8, %c0_9], %7 {strides = array<i32>} : memref<1x8x8x128xf32, #tpu.memory_space<vmem>>, vector<1x8x8x128xf32>,
    %9 = vector.extract_strided_slice %5 {offsets = [0, 128], sizes = [64, 128], strides = [1, 1]} : vector<64x256xf32> to vector<64x128xf32>
    %10 = vector.shape_cast %9 : vector<64x128xf32> to vector<1x8x8x128xf32>
    %c0_10 = arith.constant 0 : index
    %c0_11 = arith.constant 0 : index
    %c0_12 = arith.constant 0 : index
    %c0_13 = arith.constant 0 : index
    %11 = vector.load %arg4[%c0_10, %c0_11, %c0_12, %c0_13] : memref<1x8x8x128xf32, #tpu.memory_space<vmem>>, vector<1x8x8x128xf32>
    tpu.vector_store %arg4[%c0_10, %c0_11, %c0_12, %c0_13], %10 {strides = array<i32>} : memref<1x8x8x128xf32, #tpu.memory_space<vmem>>, vector<1x8x8x128xf32>,
    %cst_14 = arith.constant dense<0.000000e+00> : vector<128xf32>
    %12 = vector.multi_reduction <add>, %6, %cst_14 [0] : vector<64x128xf32> to vector<128xf32>
    %13 = vector.shape_cast %12 : vector<128xf32> to vector<1x128xf32>
    %cst_15 = arith.constant 1.562500e-02 : f32
    %14 = vector.broadcast %cst_15 : f32 to vector<1x128xf32>
    %15 = arith.mulf %13, %14 : vector<1x128xf32>
    %16 = vector.broadcast %15 : vector<1x128xf32> to vector<64x128xf32>
    %17 = arith.subf %6, %16 : vector<64x128xf32>
    %18 = arith.mulf %17, %17 : vector<64x128xf32>
    %cst_16 = arith.constant dense<0.000000e+00> : vector<128xf32>
    %19 = vector.multi_reduction <add>, %18, %cst_16 [0] : vector<64x128xf32> to vector<128xf32>
    %20 = vector.shape_cast %19 : vector<128xf32> to vector<1x128xf32>
    %cst_17 = arith.constant 0.000000e+00 : f32
    %21 = vector.broadcast %cst_17 : f32 to vector<6x128xf32>
    %22 = tpu.concatenate %13, %20, %21 in 0 : vector<1x128xf32>, vector<1x128xf32>, vector<6x128xf32> -> vector<8x128xf32>
    %23 = vector.shape_cast %22 : vector<8x128xf32> to vector<1x8x128xf32>
    %c0_18 = arith.constant 0 : index
    %c0_19 = arith.constant 0 : index
    %c0_20 = arith.constant 0 : index
    %24 = vector.load %arg5[%c0_18, %c0_19, %c0_20] : memref<1x8x128xf32, #tpu.memory_space<vmem>>, vector<1x8x128xf32>
    tpu.vector_store %arg5[%c0_18, %c0_19, %c0_20], %23 {strides = array<i32>} : memref<1x8x128xf32, #tpu.memory_space<vmem>>, vector<1x8x128xf32>,
    return
  }
  func.func @transform_0(%arg0: i32) -> (i32, i32, i32, i32) {
    %c0_i32 = arith.constant 0 : i32
    %c0_i32_0 = arith.constant 0 : i32
    %c0_i32_1 = arith.constant 0 : i32
    %c0_i32_2 = arith.constant 0 : i32
    return %arg0, %c0_i32, %c0_i32_0, %c0_i32_1 : i32, i32, i32, i32
  }
  func.func @transform_1(%arg0: i32) -> (i32, i32) {
    %c0_i32 = arith.constant 0 : i32
    %c0_i32_0 = arith.constant 0 : i32
    %c0_i32_1 = arith.constant 0 : i32
    return %c0_i32, %c0_i32_0 : i32, i32
  }
  func.func @transform_2(%arg0: i32) -> (i32, i32, i32, i32) {
    %c0_i32 = arith.constant 0 : i32
    %c0_i32_0 = arith.constant 0 : i32
    %c0_i32_1 = arith.constant 0 : i32
    %c0_i32_2 = arith.constant 0 : i32
    return %arg0, %c0_i32, %c0_i32_0, %c0_i32_1 : i32, i32, i32, i32
  }
  func.func @transform_3(%arg0: i32) -> (i32, i32, i32, i32) {
    %c0_i32 = arith.constant 0 : i32
    %c0_i32_0 = arith.constant 0 : i32
    %c0_i32_1 = arith.constant 0 : i32
    %c0_i32_2 = arith.constant 0 : i32
    return %arg0, %c0_i32, %c0_i32_0, %c0_i32_1 : i32, i32, i32, i32
  }
  func.func @transform_4(%arg0: i32) -> (i32, i32, i32) {
    %c0_i32 = arith.constant 0 : i32
    %c0_i32_0 = arith.constant 0 : i32
    %c0_i32_1 = arith.constant 0 : i32
    return %arg0, %c0_i32, %c0_i32_0 : i32, i32, i32
  }
}

module attributes {stable_mosaic.version = 11 : i64} {
  func.func @_bn_add_relu_kernel(%arg0: i32, %arg1: memref<1x8x8x128xf32, #tpu.memory_space<vmem>>, %arg2: memref<1x8x8x128xf32, #tpu.memory_space<vmem>>, %arg3: memref<1x128xf32, #tpu.memory_space<vmem>>, %arg4: memref<1x128xf32, #tpu.memory_space<vmem>>, %arg5: memref<1x8x8x128xf32, #tpu.memory_space<vmem>>) attributes {dimension_semantics = [#tpu.dimension_semantics<parallel>], iteration_bounds = array<i64: 2>, scalar_prefetch = 0 : i64, scratch_operands = 0 : i64, tpu.core_type = #tpu.core_type<tc>, window_params = [{transform_indices = @transform_0, window_bounds = array<i64: 1, 8, 8, 128>}, {transform_indices = @transform_1, window_bounds = array<i64: 1, 8, 8, 128>}, {pipeline_mode = #tpu.pipeline_mode<synchronous>, transform_indices = @transform_2, window_bounds = array<i64: 1, 128>}, {pipeline_mode = #tpu.pipeline_mode<synchronous>, transform_indices = @transform_3, window_bounds = array<i64: 1, 128>}, {transform_indices = @transform_4, window_bounds = array<i64: 1, 8, 8, 128>}]} {
    %c0 = arith.constant 0 : index
    %c0_0 = arith.constant 0 : index
    %c0_1 = arith.constant 0 : index
    %c0_2 = arith.constant 0 : index
    %0 = vector.load %arg1[%c0, %c0_0, %c0_1, %c0_2] : memref<1x8x8x128xf32, #tpu.memory_space<vmem>>, vector<1x8x8x128xf32>
    %1 = vector.shape_cast %0 : vector<1x8x8x128xf32> to vector<64x128xf32>
    %c0_3 = arith.constant 0 : index
    %c0_4 = arith.constant 0 : index
    %c0_5 = arith.constant 0 : index
    %c0_6 = arith.constant 0 : index
    %2 = vector.load %arg2[%c0_3, %c0_4, %c0_5, %c0_6] : memref<1x8x8x128xf32, #tpu.memory_space<vmem>>, vector<1x8x8x128xf32>
    %3 = vector.shape_cast %2 : vector<1x8x8x128xf32> to vector<64x128xf32>
    %c0_7 = arith.constant 0 : index
    %c0_8 = arith.constant 0 : index
    %4 = vector.load %arg3[%c0_7, %c0_8] : memref<1x128xf32, #tpu.memory_space<vmem>>, vector<1x128xf32>
    %5 = vector.broadcast %4 : vector<1x128xf32> to vector<64x128xf32>
    %6 = arith.mulf %1, %5 : vector<64x128xf32>
    %c0_9 = arith.constant 0 : index
    %c0_10 = arith.constant 0 : index
    %7 = vector.load %arg4[%c0_9, %c0_10] : memref<1x128xf32, #tpu.memory_space<vmem>>, vector<1x128xf32>
    %8 = vector.broadcast %7 : vector<1x128xf32> to vector<64x128xf32>
    %9 = arith.addf %6, %8 : vector<64x128xf32>
    %10 = arith.addf %9, %3 : vector<64x128xf32>
    %cst = arith.constant 0.000000e+00 : f32
    %11 = vector.broadcast %cst : f32 to vector<64x128xf32>
    %12 = arith.maximumf %10, %11 : vector<64x128xf32>
    %13 = vector.shape_cast %12 : vector<64x128xf32> to vector<1x8x8x128xf32>
    %c0_11 = arith.constant 0 : index
    %c0_12 = arith.constant 0 : index
    %c0_13 = arith.constant 0 : index
    %c0_14 = arith.constant 0 : index
    %14 = vector.load %arg5[%c0_11, %c0_12, %c0_13, %c0_14] : memref<1x8x8x128xf32, #tpu.memory_space<vmem>>, vector<1x8x8x128xf32>
    tpu.vector_store %arg5[%c0_11, %c0_12, %c0_13, %c0_14], %13 {strides = array<i32>} : memref<1x8x8x128xf32, #tpu.memory_space<vmem>>, vector<1x8x8x128xf32>,
    return
  }
  func.func @transform_0(%arg0: i32) -> (i32, i32, i32, i32) {
    %c0_i32 = arith.constant 0 : i32
    %c0_i32_0 = arith.constant 0 : i32
    %c0_i32_1 = arith.constant 0 : i32
    %c0_i32_2 = arith.constant 0 : i32
    return %arg0, %c0_i32, %c0_i32_0, %c0_i32_1 : i32, i32, i32, i32
  }
  func.func @transform_1(%arg0: i32) -> (i32, i32, i32, i32) {
    %c0_i32 = arith.constant 0 : i32
    %c0_i32_0 = arith.constant 0 : i32
    %c0_i32_1 = arith.constant 0 : i32
    %c0_i32_2 = arith.constant 0 : i32
    return %arg0, %c0_i32, %c0_i32_0, %c0_i32_1 : i32, i32, i32, i32
  }
  func.func @transform_2(%arg0: i32) -> (i32, i32) {
    %c0_i32 = arith.constant 0 : i32
    %c0_i32_0 = arith.constant 0 : i32
    %c0_i32_1 = arith.constant 0 : i32
    return %c0_i32, %c0_i32_0 : i32, i32
  }
  func.func @transform_3(%arg0: i32) -> (i32, i32) {
    %c0_i32 = arith.constant 0 : i32
    %c0_i32_0 = arith.constant 0 : i32
    %c0_i32_1 = arith.constant 0 : i32
    return %c0_i32, %c0_i32_0 : i32, i32
  }
  func.func @transform_4(%arg0: i32) -> (i32, i32, i32, i32) {
    %c0_i32 = arith.constant 0 : i32
    %c0_i32_0 = arith.constant 0 : i32
    %c0_i32_1 = arith.constant 0 : i32
    %c0_i32_2 = arith.constant 0 : i32
    return %arg0, %c0_i32, %c0_i32_0, %c0_i32_1 : i32, i32, i32, i32
  }
}

module attributes {stable_mosaic.version = 11 : i64} {
  func.func @_bn_relu_conv2_kernel(%arg0: i32, %arg1: memref<1x8x8x128xf32, #tpu.memory_space<vmem>>, %arg2: memref<1x128xf32, #tpu.memory_space<vmem>>, %arg3: memref<1x128xf32, #tpu.memory_space<vmem>>, %arg4: memref<1152x128xbf16, #tpu.memory_space<vmem>>, %arg5: memref<1x8x8x128xf32, #tpu.memory_space<vmem>>, %arg6: memref<1x8x128xf32, #tpu.memory_space<vmem>>, %arg7: memref<1x10x17x128xbf16, #tpu.memory_space<vmem>>) attributes {dimension_semantics = [#tpu.dimension_semantics<parallel>], iteration_bounds = array<i64: 2>, scalar_prefetch = 0 : i64, scratch_operands = 1 : i64, tpu.core_type = #tpu.core_type<tc>, window_params = [{transform_indices = @transform_0, window_bounds = array<i64: 1, 8, 8, 128>}, {pipeline_mode = #tpu.pipeline_mode<synchronous>, transform_indices = @transform_1, window_bounds = array<i64: 1, 128>}, {pipeline_mode = #tpu.pipeline_mode<synchronous>, transform_indices = @transform_2, window_bounds = array<i64: 1, 128>}, {pipeline_mode = #tpu.pipeline_mode<synchronous>, transform_indices = @transform_3, window_bounds = array<i64: 1152, 128>}, {transform_indices = @transform_4, window_bounds = array<i64: 1, 8, 8, 128>}, {transform_indices = @transform_5, window_bounds = array<i64: 1, 8, 128>}]} {
    %cst = arith.constant 0.000000e+00 : bf16
    %0 = vector.broadcast %cst : bf16 to vector<1x1x17x128xbf16>
    %c0 = arith.constant 0 : index
    %c0_0 = arith.constant 0 : index
    %c0_1 = arith.constant 0 : index
    %c0_2 = arith.constant 0 : index
    %1 = vector.load %arg7[%c0, %c0_0, %c0_1, %c0_2] : memref<1x10x17x128xbf16, #tpu.memory_space<vmem>>, vector<1x1x17x128xbf16>
    tpu.vector_store %arg7[%c0, %c0_0, %c0_1, %c0_2], %0 {strides = array<i32>} : memref<1x10x17x128xbf16, #tpu.memory_space<vmem>>, vector<1x1x17x128xbf16>,
    %cst_3 = arith.constant 0.000000e+00 : bf16
    %2 = vector.broadcast %cst_3 : bf16 to vector<1x1x17x128xbf16>
    %c0_4 = arith.constant 0 : index
    %c9 = arith.constant 9 : index
    %c0_5 = arith.constant 0 : index
    %c0_6 = arith.constant 0 : index
    %3 = vector.load %arg7[%c0_4, %c9, %c0_5, %c0_6] : memref<1x10x17x128xbf16, #tpu.memory_space<vmem>>, vector<1x1x17x128xbf16>
    tpu.vector_store %arg7[%c0_4, %c9, %c0_5, %c0_6], %2 {strides = array<i32>} : memref<1x10x17x128xbf16, #tpu.memory_space<vmem>>, vector<1x1x17x128xbf16>,
    %cst_7 = arith.constant 0.000000e+00 : bf16
    %4 = vector.broadcast %cst_7 : bf16 to vector<1x10x8x128xbf16>
    %c0_8 = arith.constant 0 : index
    %c0_9 = arith.constant 0 : index
    %c0_10 = arith.constant 0 : index
    %c0_11 = arith.constant 0 : index
    %5 = vector.load %arg7[%c0_8, %c0_9, %c0_10, %c0_11] : memref<1x10x17x128xbf16, #tpu.memory_space<vmem>>, vector<1x10x8x128xbf16>
    tpu.vector_store %arg7[%c0_8, %c0_9, %c0_10, %c0_11], %4 {strides = array<i32>} : memref<1x10x17x128xbf16, #tpu.memory_space<vmem>>, vector<1x10x8x128xbf16>,
    %cst_12 = arith.constant 0.000000e+00 : bf16
    %6 = vector.broadcast %cst_12 : bf16 to vector<1x10x1x128xbf16>
    %c0_13 = arith.constant 0 : index
    %c0_14 = arith.constant 0 : index
    %c16 = arith.constant 16 : index
    %c0_15 = arith.constant 0 : index
    %7 = vector.load %arg7[%c0_13, %c0_14, %c16, %c0_15] : memref<1x10x17x128xbf16, #tpu.memory_space<vmem>>, vector<1x10x1x128xbf16>
    tpu.vector_store %arg7[%c0_13, %c0_14, %c16, %c0_15], %6 {strides = array<i32>} : memref<1x10x17x128xbf16, #tpu.memory_space<vmem>>, vector<1x10x1x128xbf16>,
    %c0_16 = arith.constant 0 : index
    %c0_17 = arith.constant 0 : index
    %c0_18 = arith.constant 0 : index
    %c0_19 = arith.constant 0 : index
    %8 = vector.load %arg1[%c0_16, %c0_17, %c0_18, %c0_19] : memref<1x8x8x128xf32, #tpu.memory_space<vmem>>, vector<1x8x8x128xf32>
    %9 = vector.shape_cast %8 : vector<1x8x8x128xf32> to vector<64x128xf32>
    %c0_20 = arith.constant 0 : index
    %c0_21 = arith.constant 0 : index
    %10 = vector.load %arg2[%c0_20, %c0_21] : memref<1x128xf32, #tpu.memory_space<vmem>>, vector<1x128xf32>
    %11 = vector.broadcast %10 : vector<1x128xf32> to vector<64x128xf32>
    %12 = arith.mulf %9, %11 : vector<64x128xf32>
    %c0_22 = arith.constant 0 : index
    %c0_23 = arith.constant 0 : index
    %13 = vector.load %arg3[%c0_22, %c0_23] : memref<1x128xf32, #tpu.memory_space<vmem>>, vector<1x128xf32>
    %14 = vector.broadcast %13 : vector<1x128xf32> to vector<64x128xf32>
    %15 = arith.addf %12, %14 : vector<64x128xf32>
    %cst_24 = arith.constant 0.000000e+00 : f32
    %16 = vector.broadcast %cst_24 : f32 to vector<64x128xf32>
    %17 = arith.maximumf %15, %16 : vector<64x128xf32>
    %18 = arith.truncf %17 : vector<64x128xf32> to vector<64x128xbf16>
    %19 = vector.shape_cast %18 : vector<64x128xbf16> to vector<1x8x8x128xbf16>
    %c0_25 = arith.constant 0 : index
    %c1 = arith.constant 1 : index
    %c8 = arith.constant 8 : index
    %c0_26 = arith.constant 0 : index
    %20 = vector.load %arg7[%c0_25, %c1, %c8, %c0_26] : memref<1x10x17x128xbf16, #tpu.memory_space<vmem>>, vector<1x8x8x128xbf16>
    tpu.vector_store %arg7[%c0_25, %c1, %c8, %c0_26], %19 {strides = array<i32>} : memref<1x10x17x128xbf16, #tpu.memory_space<vmem>>, vector<1x8x8x128xbf16>,
    %cst_27 = arith.constant 0.000000e+00 : f32
    %21 = vector.broadcast %cst_27 : f32 to vector<64x128xf32>
    %c0_28 = arith.constant 0 : index
    %c0_29 = arith.constant 0 : index
    %c7 = arith.constant 7 : index
    %c0_30 = arith.constant 0 : index
    %22 = vector.load %arg7[%c0_28, %c0_29, %c7, %c0_30] : memref<1x10x17x128xbf16, #tpu.memory_space<vmem>>, vector<1x8x8x128xbf16>
    %23 = vector.shape_cast %22 : vector<1x8x8x128xbf16> to vector<64x128xbf16>
    %c0_31 = arith.constant 0 : index
    %c0_32 = arith.constant 0 : index
    %c8_33 = arith.constant 8 : index
    %c0_34 = arith.constant 0 : index
    %24 = vector.load %arg7[%c0_31, %c0_32, %c8_33, %c0_34] : memref<1x10x17x128xbf16, #tpu.memory_space<vmem>>, vector<1x8x8x128xbf16>
    %25 = vector.shape_cast %24 : vector<1x8x8x128xbf16> to vector<64x128xbf16>
    %26 = tpu.concatenate %23, %25 in 1 : vector<64x128xbf16>, vector<64x128xbf16> -> vector<64x256xbf16>
    %c0_35 = arith.constant 0 : index
    %c0_36 = arith.constant 0 : index
    %27 = vector.load %arg4[%c0_35, %c0_36] : memref<1152x128xbf16, #tpu.memory_space<vmem>>, vector<256x128xbf16>
    %cst_37 = arith.constant dense<0.000000e+00> : vector<64x128xf32>
    %28 = tpu.matmul %26, %27, %cst_37 {dimension_numbers = #tpu.dot_dimension_numbers<[1], [0], [0], [1], [0, 0, 1, 1], [], []>} : vector<64x256xbf16>, vector<256x128xbf16>, vector<64x128xf32> -> vector<64x128xf32>
    %29 = arith.addf %21, %28 : vector<64x128xf32>
    %c0_38 = arith.constant 0 : index
    %c0_39 = arith.constant 0 : index
    %c9_40 = arith.constant 9 : index
    %c0_41 = arith.constant 0 : index
    %30 = vector.load %arg7[%c0_38, %c0_39, %c9_40, %c0_41] : memref<1x10x17x128xbf16, #tpu.memory_space<vmem>>, vector<1x8x8x128xbf16>
    %31 = vector.shape_cast %30 : vector<1x8x8x128xbf16> to vector<64x128xbf16>
    %c256 = arith.constant 256 : index
    %c0_42 = arith.constant 0 : index
    %32 = vector.load %arg4[%c256, %c0_42] : memref<1152x128xbf16, #tpu.memory_space<vmem>>, vector<128x128xbf16>
    %cst_43 = arith.constant dense<0.000000e+00> : vector<64x128xf32>
    %33 = tpu.matmul %31, %32, %cst_43 {dimension_numbers = #tpu.dot_dimension_numbers<[1], [0], [0], [1], [0, 0, 1, 1], [], []>} : vector<64x128xbf16>, vector<128x128xbf16>, vector<64x128xf32> -> vector<64x128xf32>
    %34 = arith.addf %29, %33 : vector<64x128xf32>
    %c0_44 = arith.constant 0 : index
    %c1_45 = arith.constant 1 : index
    %c7_46 = arith.constant 7 : index
    %c0_47 = arith.constant 0 : index
    %35 = vector.load %arg7[%c0_44, %c1_45, %c7_46, %c0_47] : memref<1x10x17x128xbf16, #tpu.memory_space<vmem>>, vector<1x8x8x128xbf16>
    %36 = vector.shape_cast %35 : vector<1x8x8x128xbf16> to vector<64x128xbf16>
    %c0_48 = arith.constant 0 : index
    %c1_49 = arith.constant 1 : index
    %c8_50 = arith.constant 8 : index
    %c0_51 = arith.constant 0 : index
    %37 = vector.load %arg7[%c0_48, %c1_49, %c8_50, %c0_51] : memref<1x10x17x128xbf16, #tpu.memory_space<vmem>>, vector<1x8x8x128xbf16>
    %38 = vector.shape_cast %37 : vector<1x8x8x128xbf16> to vector<64x128xbf16>
    %39 = tpu.concatenate %36, %38 in 1 : vector<64x128xbf16>, vector<64x128xbf16> -> vector<64x256xbf16>
    %c384 = arith.constant 384 : index
    %c0_52 = arith.constant 0 : index
    %40 = vector.load %arg4[%c384, %c0_52] : memref<1152x128xbf16, #tpu.memory_space<vmem>>, vector<256x128xbf16>
    %cst_53 = arith.constant dense<0.000000e+00> : vector<64x128xf32>
    %41 = tpu.matmul %39, %40, %cst_53 {dimension_numbers = #tpu.dot_dimension_numbers<[1], [0], [0], [1], [0, 0, 1, 1], [], []>} : vector<64x256xbf16>, vector<256x128xbf16>, vector<64x128xf32> -> vector<64x128xf32>
    %42 = arith.addf %34, %41 : vector<64x128xf32>
    %c0_54 = arith.constant 0 : index
    %c1_55 = arith.constant 1 : index
    %c9_56 = arith.constant 9 : index
    %c0_57 = arith.constant 0 : index
    %43 = vector.load %arg7[%c0_54, %c1_55, %c9_56, %c0_57] : memref<1x10x17x128xbf16, #tpu.memory_space<vmem>>, vector<1x8x8x128xbf16>
    %44 = vector.shape_cast %43 : vector<1x8x8x128xbf16> to vector<64x128xbf16>
    %c640 = arith.constant 640 : index
    %c0_58 = arith.constant 0 : index
    %45 = vector.load %arg4[%c640, %c0_58] : memref<1152x128xbf16, #tpu.memory_space<vmem>>, vector<128x128xbf16>
    %cst_59 = arith.constant dense<0.000000e+00> : vector<64x128xf32>
    %46 = tpu.matmul %44, %45, %cst_59 {dimension_numbers = #tpu.dot_dimension_numbers<[1], [0], [0], [1], [0, 0, 1, 1], [], []>} : vector<64x128xbf16>, vector<128x128xbf16>, vector<64x128xf32> -> vector<64x128xf32>
    %47 = arith.addf %42, %46 : vector<64x128xf32>
    %c0_60 = arith.constant 0 : index
    %c2 = arith.constant 2 : index
    %c7_61 = arith.constant 7 : index
    %c0_62 = arith.constant 0 : index
    %48 = vector.load %arg7[%c0_60, %c2, %c7_61, %c0_62] : memref<1x10x17x128xbf16, #tpu.memory_space<vmem>>, vector<1x8x8x128xbf16>
    %49 = vector.shape_cast %48 : vector<1x8x8x128xbf16> to vector<64x128xbf16>
    %c0_63 = arith.constant 0 : index
    %c2_64 = arith.constant 2 : index
    %c8_65 = arith.constant 8 : index
    %c0_66 = arith.constant 0 : index
    %50 = vector.load %arg7[%c0_63, %c2_64, %c8_65, %c0_66] : memref<1x10x17x128xbf16, #tpu.memory_space<vmem>>, vector<1x8x8x128xbf16>
    %51 = vector.shape_cast %50 : vector<1x8x8x128xbf16> to vector<64x128xbf16>
    %52 = tpu.concatenate %49, %51 in 1 : vector<64x128xbf16>, vector<64x128xbf16> -> vector<64x256xbf16>
    %c768 = arith.constant 768 : index
    %c0_67 = arith.constant 0 : index
    %53 = vector.load %arg4[%c768, %c0_67] : memref<1152x128xbf16, #tpu.memory_space<vmem>>, vector<256x128xbf16>
    %cst_68 = arith.constant dense<0.000000e+00> : vector<64x128xf32>
    %54 = tpu.matmul %52, %53, %cst_68 {dimension_numbers = #tpu.dot_dimension_numbers<[1], [0], [0], [1], [0, 0, 1, 1], [], []>} : vector<64x256xbf16>, vector<256x128xbf16>, vector<64x128xf32> -> vector<64x128xf32>
    %55 = arith.addf %47, %54 : vector<64x128xf32>
    %c0_69 = arith.constant 0 : index
    %c2_70 = arith.constant 2 : index
    %c9_71 = arith.constant 9 : index
    %c0_72 = arith.constant 0 : index
    %56 = vector.load %arg7[%c0_69, %c2_70, %c9_71, %c0_72] : memref<1x10x17x128xbf16, #tpu.memory_space<vmem>>, vector<1x8x8x128xbf16>
    %57 = vector.shape_cast %56 : vector<1x8x8x128xbf16> to vector<64x128xbf16>
    %c1024 = arith.constant 1024 : index
    %c0_73 = arith.constant 0 : index
    %58 = vector.load %arg4[%c1024, %c0_73] : memref<1152x128xbf16, #tpu.memory_space<vmem>>, vector<128x128xbf16>
    %cst_74 = arith.constant dense<0.000000e+00> : vector<64x128xf32>
    %59 = tpu.matmul %57, %58, %cst_74 {dimension_numbers = #tpu.dot_dimension_numbers<[1], [0], [0], [1], [0, 0, 1, 1], [], []>} : vector<64x128xbf16>, vector<128x128xbf16>, vector<64x128xf32> -> vector<64x128xf32>
    %60 = arith.addf %55, %59 : vector<64x128xf32>
    %61 = vector.shape_cast %60 : vector<64x128xf32> to vector<1x8x8x128xf32>
    %c0_75 = arith.constant 0 : index
    %c0_76 = arith.constant 0 : index
    %c0_77 = arith.constant 0 : index
    %c0_78 = arith.constant 0 : index
    %62 = vector.load %arg5[%c0_75, %c0_76, %c0_77, %c0_78] : memref<1x8x8x128xf32, #tpu.memory_space<vmem>>, vector<1x8x8x128xf32>
    tpu.vector_store %arg5[%c0_75, %c0_76, %c0_77, %c0_78], %61 {strides = array<i32>} : memref<1x8x8x128xf32, #tpu.memory_space<vmem>>, vector<1x8x8x128xf32>,
    %cst_79 = arith.constant dense<0.000000e+00> : vector<128xf32>
    %63 = vector.multi_reduction <add>, %60, %cst_79 [0] : vector<64x128xf32> to vector<128xf32>
    %64 = vector.shape_cast %63 : vector<128xf32> to vector<1x128xf32>
    %cst_80 = arith.constant 1.562500e-02 : f32
    %65 = vector.broadcast %cst_80 : f32 to vector<1x128xf32>
    %66 = arith.mulf %64, %65 : vector<1x128xf32>
    %67 = vector.broadcast %66 : vector<1x128xf32> to vector<64x128xf32>
    %68 = arith.subf %60, %67 : vector<64x128xf32>
    %69 = arith.mulf %68, %68 : vector<64x128xf32>
    %cst_81 = arith.constant dense<0.000000e+00> : vector<128xf32>
    %70 = vector.multi_reduction <add>, %69, %cst_81 [0] : vector<64x128xf32> to vector<128xf32>
    %71 = vector.shape_cast %70 : vector<128xf32> to vector<1x128xf32>
    %cst_82 = arith.constant 0.000000e+00 : f32
    %72 = vector.broadcast %cst_82 : f32 to vector<6x128xf32>
    %73 = tpu.concatenate %64, %71, %72 in 0 : vector<1x128xf32>, vector<1x128xf32>, vector<6x128xf32> -> vector<8x128xf32>
    %74 = vector.shape_cast %73 : vector<8x128xf32> to vector<1x8x128xf32>
    %c0_83 = arith.constant 0 : index
    %c0_84 = arith.constant 0 : index
    %c0_85 = arith.constant 0 : index
    %75 = vector.load %arg6[%c0_83, %c0_84, %c0_85] : memref<1x8x128xf32, #tpu.memory_space<vmem>>, vector<1x8x128xf32>
    tpu.vector_store %arg6[%c0_83, %c0_84, %c0_85], %74 {strides = array<i32>} : memref<1x8x128xf32, #tpu.memory_space<vmem>>, vector<1x8x128xf32>,
    return
  }
  func.func @transform_0(%arg0: i32) -> (i32, i32, i32, i32) {
    %c0_i32 = arith.constant 0 : i32
    %c0_i32_0 = arith.constant 0 : i32
    %c0_i32_1 = arith.constant 0 : i32
    %c0_i32_2 = arith.constant 0 : i32
    return %arg0, %c0_i32, %c0_i32_0, %c0_i32_1 : i32, i32, i32, i32
  }
  func.func @transform_1(%arg0: i32) -> (i32, i32) {
    %c0_i32 = arith.constant 0 : i32
    %c0_i32_0 = arith.constant 0 : i32
    %c0_i32_1 = arith.constant 0 : i32
    return %c0_i32, %c0_i32_0 : i32, i32
  }
  func.func @transform_2(%arg0: i32) -> (i32, i32) {
    %c0_i32 = arith.constant 0 : i32
    %c0_i32_0 = arith.constant 0 : i32
    %c0_i32_1 = arith.constant 0 : i32
    return %c0_i32, %c0_i32_0 : i32, i32
  }
  func.func @transform_3(%arg0: i32) -> (i32, i32) {
    %c0_i32 = arith.constant 0 : i32
    %c0_i32_0 = arith.constant 0 : i32
    %c0_i32_1 = arith.constant 0 : i32
    return %c0_i32, %c0_i32_0 : i32, i32
  }
  func.func @transform_4(%arg0: i32) -> (i32, i32, i32, i32) {
    %c0_i32 = arith.constant 0 : i32
    %c0_i32_0 = arith.constant 0 : i32
    %c0_i32_1 = arith.constant 0 : i32
    %c0_i32_2 = arith.constant 0 : i32
    return %arg0, %c0_i32, %c0_i32_0, %c0_i32_1 : i32, i32, i32, i32
  }
  func.func @transform_5(%arg0: i32) -> (i32, i32, i32) {
    %c0_i32 = arith.constant 0 : i32
    %c0_i32_0 = arith.constant 0 : i32
    %c0_i32_1 = arith.constant 0 : i32
    return %arg0, %c0_i32, %c0_i32_0 : i32, i32, i32
  }
}

</mosaic_0001>

<llo_original>
// kernel: block_forward.5
$region0: #{block_forward.5}
  #allocation0 [shape = 'u32[]', space=smem, size = 0x4, offset = 0x4, fixed_abs, tag = 'smem constant byte address 0x4 - core index']
  #allocation1 [shape = 'u32[72,128]{1,0:T(1,128)}', space=vmem, size = 0x9000, scoped, tag = 'internal scratch']
  %s0 = inlined_call_operand.vmem [shape: f32[2,8,8,128], index: 0, kind: input, shape index: {}]
  %s1 = inlined_call_operand.vmem [shape: f32[2,8,8,128], index: 1, kind: input, shape index: {}]
  %s2 = inlined_call_operand.vmem [shape: f32[1,128], index: 2, kind: input, shape index: {}]
  %s3 = inlined_call_operand.vmem [shape: f32[1,128], index: 3, kind: input, shape index: {}]
  %s4 = inlined_call_operand.vmem [shape: f32[2,8,8,128], index: 4, kind: output, shape index: {}]
  %s5 = sld [smem:[#allocation0]]
  $region49: #{block_forward.5} parent=0
    _
  %s7 = ssub.s32 1, %s5
  %s8 = scalar_select 0, %s7, %s5
  loop: start=0, step=1, limit=4
  $region2: #{block_forward.5} parent=0 // loop_pre_header
    _
  $region3: #{block_forward.5} parent=0 // loop_header
    %s10 = sphi 0, %s14
    %p11 = scmp.ge.s32.totalorder %s10, 4
    %s20 = sphi 0, %s22
    %s23 = sphi 0, %s20
    %s24 = sphi 0, %s23
    %s40 = sphi 0, %s24
    %s46 = sphi 0, %s48
    %s49 = sphi 0, %s46
    %s50 = sphi 0, %s49
    %s66 = sphi 0, %s50
    %s70 = sphi 0, %s70
    %s72 = sphi 0, %s70
    %s73 = sphi 0, %s72
    %s87 = sphi 0, %s73
    %s91 = sphi 0, %s91
    %s93 = sphi 0, %s91
    %s94 = sphi 0, %s93
    %s108 = sphi 0, %s94
    %s114 = sphi 0, %s116
    %s117 = sphi 0, %s114
    %s118 = sphi 0, %s117
    %s134 = sphi 0, %s118
  $region4: #{block_forward.5} parent=0 // loop_header_branch
    %13 = sbr.rel (%p11) target = $region8
  $region5: #{block_forward.5} parent=0 // loop_body
    %s15 = ssub.s32 %s10, 1
    %s16 = ssub.s32 %s10, 2
    %s17 = sadd.s32 %s10, 1
    %s18 = ssub.s32 %s10, %s17
    %p19 = scmp.eq.s32.totalorder %s18, 0
    %s21 = sadd.s32 %s20, 1
    %s22 = scalar_select %p19, %s20, %s21
    %p25 = pneg %p19
    %p26 = scmp.eq.s32.totalorder %s10, 1
    %p27 = por %p25, %p26
    %p28 = scmp.ne.s32.totalorder %s20, %s23
    %p29 = scmp.eq.s32.totalorder %s10, 0
    %p30 = por %p28, %p29
    %p31 = scmp.ne.s32.totalorder %s20, %s23
    %p32 = scmp.eq.s32.totalorder %s15, 1
    %p33 = por %p31, %p32
    %p34 = scmp.ne.s32.totalorder %s23, %s24
    %p35 = scmp.eq.s32.totalorder %s15, 0
    %p36 = por %p34, %p35
    %p37 = scmp.ne.s32.totalorder %s23, %s24
    %p38 = scmp.eq.s32.totalorder %s16, 1
    %p39 = por %p37, %p38
    %p41 = scmp.ne.s32.totalorder %s24, %s40
    %p42 = scmp.eq.s32.totalorder %s16, 0
    %p43 = por %p41, %p42
    %s44 = ssub.s32 %s10, %s17
    %p45 = scmp.eq.s32.totalorder %s44, 0
    %s47 = sadd.s32 %s46, 1
    %s48 = scalar_select %p45, %s46, %s47
    %p51 = pneg %p45
    %p52 = scmp.eq.s32.totalorder %s10, 1
    %p53 = por %p51, %p52
    %p54 = scmp.ne.s32.totalorder %s46, %s49
    %p55 = scmp.eq.s32.totalorder %s10, 0
    %p56 = por %p54, %p55
    %p57 = scmp.ne.s32.totalorder %s46, %s49
    %p58 = scmp.eq.s32.totalorder %s15, 1
    %p59 = por %p57, %p58
    %p60 = scmp.ne.s32.totalorder %s49, %s50
    %p61 = scmp.eq.s32.totalorder %s15, 0
    %p62 = por %p60, %p61
    %p63 = scmp.ne.s32.totalorder %s49, %s50
    %p64 = scmp.eq.s32.totalorder %s16, 1
    %p65 = por %p63, %p64
    %p67 = scmp.ne.s32.totalorder %s50, %s66
    %p68 = scmp.eq.s32.totalorder %s16, 0
    %p69 = por %p67, %p68
    %s71 = sadd.s32 %s70, 1
    %p74 = scmp.eq.s32.totalorder %s10, 1
    %p75 = scmp.ne.s32.totalorder %s70, %s72
    %p76 = scmp.eq.s32.totalorder %s10, 0
    %p77 = por %p75, %p76
    %p78 = scmp.ne.s32.totalorder %s70, %s72
    %p79 = scmp.eq.s32.totalorder %s15, 1
    %p80 = por %p78, %p79
    %p81 = scmp.ne.s32.totalorder %s72, %s73
    %p82 = scmp.eq.s32.totalorder %s15, 0
    %p83 = por %p81, %p82
    %p84 = scmp.ne.s32.totalorder %s72, %s73
    %p85 = scmp.eq.s32.totalorder %s16, 1
    %p86 = por %p84, %p85
    %p88 = scmp.ne.s32.totalorder %s73, %s87
    %p89 = scmp.eq.s32.totalorder %s16, 0
    %p90 = por %p88, %p89
    %s92 = sadd.s32 %s91, 1
    %p95 = scmp.eq.s32.totalorder %s10, 1
    %p96 = scmp.ne.s32.totalorder %s91, %s93
    %p97 = scmp.eq.s32.totalorder %s10, 0
    %p98 = por %p96, %p97
    %p99 = scmp.ne.s32.totalorder %s91, %s93
    %p100 = scmp.eq.s32.totalorder %s15, 1
    %p101 = por %p99, %p100
    %p102 = scmp.ne.s32.totalorder %s93, %s94
    %p103 = scmp.eq.s32.totalorder %s15, 0
    %p104 = por %p102, %p103
    %p105 = scmp.ne.s32.totalorder %s93, %s94
    %p106 = scmp.eq.s32.totalorder %s16, 1
    %p107 = por %p105, %p106
    %p109 = scmp.ne.s32.totalorder %s94, %s108
    %p110 = scmp.eq.s32.totalorder %s16, 0
    %p111 = por %p109, %p110
    %s112 = ssub.s32 %s10, %s17
    %p113 = scmp.eq.s32.totalorder %s112, 0
    %s115 = sadd.s32 %s114, 1
    %s116 = scalar_select %p113, %s114, %s115
    %p119 = pneg %p113
    %p120 = scmp.eq.s32.totalorder %s10, 1
    %p121 = por %p119, %p120
    %p122 = scmp.ne.s32.totalorder %s114, %s117
    %p123 = scmp.eq.s32.totalorder %s10, 0
    %p124 = por %p122, %p123
    %p125 = scmp.ne.s32.totalorder %s114, %s117
    %p126 = scmp.eq.s32.totalorder %s15, 1
    %p127 = por %p125, %p126
    %p128 = scmp.ne.s32.totalorder %s117, %s118
    %p129 = scmp.eq.s32.totalorder %s15, 0
    %p130 = por %p128, %p129
    %p131 = scmp.ne.s32.totalorder %s117, %s118
    %p132 = scmp.eq.s32.totalorder %s16, 1
    %p133 = por %p131, %p132
    %p135 = scmp.ne.s32.totalorder %s118, %s134
    %p136 = scmp.eq.s32.totalorder %s16, 0
    %p137 = por %p135, %p136
    %p138 = scmp.le.s32.totalorder 1, %s10
    %p139 = scmp.lt.s32.totalorder %s10, 3
    %p140 = pnand %p138, %p139
    %p141 = pneg %p140
    // Predicated region
    $region9: #{block_forward.5} parent=5 // pred_check
      _
    $region10: #{block_forward.5} parent=5 // pred_check_branch
      %143 = sbr.rel (%p140) target = $region12
    $region11: #{block_forward.5} parent=5 // pred_region
      %s144 = ssub.s32 %s10, 1
      // Predicated region
      $region13: #{block_forward.5} parent=11 // pred_check
        %p145 = pneg %p83
      $region14: #{block_forward.5} parent=11 // pred_check_branch
        %147 = sbr.rel (%p145) target = $region16
      $region15: #{block_forward.5} parent=11 // pred_region
        _
      $region16: #{block_forward.5} parent=11 // pred_fallthru
        _
      // Predicated region
      $region17: #{block_forward.5} parent=11 // pred_check
        %p148 = pneg %p104
      $region18: #{block_forward.5} parent=11 // pred_check_branch
        %150 = sbr.rel (%p148) target = $region20
      $region19: #{block_forward.5} parent=11 // pred_region
        _
      $region20: #{block_forward.5} parent=11 // pred_fallthru
        _
    $region12: #{block_forward.5} parent=5 // pred_fallthru
      _
    %p151 = scmp.lt.s32.totalorder %s10, 2
    // Predicated region
    $region21: #{block_forward.5} parent=5 // pred_check
      %p152 = pneg %p151
    $region22: #{block_forward.5} parent=5 // pred_check_branch
      %154 = sbr.rel (%p152) target = $region24
    $region23: #{block_forward.5} parent=5 // pred_region
      // Predicated region
      $region25: #{block_forward.5} parent=23 // pred_check
        %p155 = pneg %p30
      $region26: #{block_forward.5} parent=23 // pred_check_branch
        %157 = sbr.rel (%p155) target = $region28
      $region27: #{block_forward.5} parent=23 // pred_region
        %p158 = scmp.lt.s32.totalorder %s10, 1
        %s159 = scalar_select %p158, %s10, 1
        %s160 = smul.addr %s159, 8
        %s161 = smul.addr %s160, 8
        %s162 = scalar_lea.vmem %s0, %s161
      $region28: #{block_forward.5} parent=23 // pred_fallthru
        _
      // Predicated region
      $region29: #{block_forward.5} parent=23 // pred_check
        %p163 = pneg %p56
      $region30: #{block_forward.5} parent=23 // pred_check_branch
        %165 = sbr.rel (%p163) target = $region32
      $region31: #{block_forward.5} parent=23 // pred_region
        %p166 = scmp.lt.s32.totalorder %s10, 1
        %s167 = scalar_select %p166, %s10, 1
        %s168 = smul.addr %s167, 8
        %s169 = smul.addr %s168, 8
        %s170 = scalar_lea.vmem %s1, %s169
      $region32: #{block_forward.5} parent=23 // pred_fallthru
        _
    $region24: #{block_forward.5} parent=5 // pred_fallthru
      _
    %p171 = scmp.le.s32.totalorder 1, %s10
    %p172 = scmp.lt.s32.totalorder %s10, 3
    %p173 = pnand %p171, %p172
    %p174 = pneg %p173
    // Predicated region
    $region33: #{block_forward.5} parent=5 // pred_check
      _
    $region34: #{block_forward.5} parent=5 // pred_check_branch
      %176 = sbr.rel (%p173) target = $region36
    $region35: #{block_forward.5} parent=5 // pred_region
      %s177 = ssub.s32 %s10, 1
      %p178 = scmp.lt.s32.totalorder %s15, 1
      %s179 = scalar_select %p178, %s15, 1
      %s180 = smul.addr %s179, 8
      %s181 = smul.addr %s180, 8
      %s182 = scalar_lea.vmem %s0, %s181
      %p183 = pneg %p36
      %p184 = pneg %p33
      %p185 = scmp.lt.s32.totalorder %s15, 1
      %s186 = scalar_select %p185, %s15, 1
      %s187 = smul.addr %s186, 8
      %s188 = smul.addr %s187, 8
      %s189 = scalar_lea.vmem %s1, %s188
      %p190 = pneg %p62
      %p191 = pneg %p59
      %p192 = pneg %p83
      %p193 = pneg %p80
      %p194 = pneg %p104
      %p195 = pneg %p101
      %p196 = pneg %p130
      %p197 = pneg %p127
      %p198 = scmp.lt.s32.totalorder %s15, 1
      %s199 = scalar_select %p198, %s15, 1
      %s200 = smul.addr %s199, 8
      %s201 = smul.addr %s200, 8
      %s202 = scalar_lea.vmem %s4, %s201
      %p203 = scmp.lt.s32.totalorder %s15, 1
      %s204 = scalar_select %p203, %s15, 1
      %s205 = smul.addr %s204, 8
      %s206 = smul.addr %s205, 8
      %s207 = scalar_lea.vmem %s0, %s206
      %p208 = scmp.lt.s32.totalorder %s15, 1
      %s209 = scalar_select %p208, %s15, 1
      %s210 = smul.addr %s209, 8
      %s211 = smul.addr %s210, 8
      %s212 = scalar_lea.vmem %s1, %s211
      %p213 = scmp.lt.s32.totalorder %s15, 1
      %s214 = scalar_select %p213, %s15, 1
      %s215 = smul.addr %s214, 8
      %s216 = smul.addr %s215, 8
      %s217 = scalar_lea.vmem %s4, %s216
      %v218 = vld [vmem:[%s207] sm:$0xff]
      %v219 = vld [vmem:[%s207 + $0x8] sm:$0xff]
      %v220 = vld [vmem:[%s207 + $0x10] sm:$0xff]
      %v221 = vld [vmem:[%s207 + $0x18] sm:$0xff]
      %v222 = vld [vmem:[%s207 + $0x20] sm:$0xff]
      %v223 = vld [vmem:[%s207 + $0x28] sm:$0xff]
      %v224 = vld [vmem:[%s207 + $0x30] sm:$0xff]
      %v225 = vld [vmem:[%s207 + $0x38] sm:$0xff]
      %v226 = vld [vmem:[%s212] sm:$0xff]
      %v227 = vld [vmem:[%s212 + $0x8] sm:$0xff]
      %v228 = vld [vmem:[%s212 + $0x10] sm:$0xff]
      %v229 = vld [vmem:[%s212 + $0x18] sm:$0xff]
      %v230 = vld [vmem:[%s212 + $0x20] sm:$0xff]
      %v231 = vld [vmem:[%s212 + $0x28] sm:$0xff]
      %v232 = vld [vmem:[%s212 + $0x30] sm:$0xff]
      %v233 = vld [vmem:[%s212 + $0x38] sm:$0xff]
      %v234 = vld [vmem:[%s2] sm:$0x1]
      %v236 = vperm.slane %v234, 0
      %v238 = vmul.f32 %v218, %v236
      %v239 = vmul.f32 %v219, %v236
      %v240 = vmul.f32 %v220, %v236
      %v241 = vmul.f32 %v221, %v236
      %v242 = vmul.f32 %v222, %v236
      %v243 = vmul.f32 %v223, %v236
      %v244 = vmul.f32 %v224, %v236
      %v245 = vmul.f32 %v225, %v236
      %v246 = vld [vmem:[%s3] sm:$0x1]
      %v248 = vperm.slane %v246, 0
      %v250 = vadd.f32 %v238, %v248
      %v251 = vadd.f32 %v239, %v248
      %v252 = vadd.f32 %v240, %v248
      %v253 = vadd.f32 %v241, %v248
      %v254 = vadd.f32 %v242, %v248
      %v255 = vadd.f32 %v243, %v248
      %v256 = vadd.f32 %v244, %v248
      %v257 = vadd.f32 %v245, %v248
      %v258 = vadd.f32 %v250, %v226
      %v259 = vadd.f32 %v251, %v227
      %v260 = vadd.f32 %v252, %v228
      %v261 = vadd.f32 %v253, %v229
      %v262 = vadd.f32 %v254, %v230
      %v263 = vadd.f32 %v255, %v231
      %v264 = vadd.f32 %v256, %v232
      %v265 = vadd.f32 %v257, %v233
      %v266 = vmax.f32 %v258, 0.0
      %v267 = vmax.f32 %v259, 0.0
      %v268 = vmax.f32 %v260, 0.0
      %v269 = vmax.f32 %v261, 0.0
      %v270 = vmax.f32 %v262, 0.0
      %v271 = vmax.f32 %v263, 0.0
      %v272 = vmax.f32 %v264, 0.0
      %v273 = vmax.f32 %v265, 0.0
      %274 = vst [vmem:[%s217] sm:$0xff] %v266
      %275 = vst [vmem:[%s217 + $0x8] sm:$0xff] %v267
      %276 = vst [vmem:[%s217 + $0x10] sm:$0xff] %v268
      %277 = vst [vmem:[%s217 + $0x18] sm:$0xff] %v269
      %278 = vst [vmem:[%s217 + $0x20] sm:$0xff] %v270
      %279 = vst [vmem:[%s217 + $0x28] sm:$0xff] %v271
      %280 = vst [vmem:[%s217 + $0x30] sm:$0xff] %v272
      %281 = vst [vmem:[%s217 + $0x38] sm:$0xff] %v273
      %p282 = scmp.lt.s32.totalorder %s15, 1
      %s283 = scalar_select %p282, %s15, 1
      %s284 = smul.addr %s283, 8
      %s285 = smul.addr %s284, 8
      %s286 = scalar_lea.vmem %s4, %s285
      // Predicated region
      $region37: #{block_forward.5} parent=35 // pred_check
        %p287 = pneg %p127
      $region38: #{block_forward.5} parent=35 // pred_check_branch
        %289 = sbr.rel (%p287) target = $region40
      $region39: #{block_forward.5} parent=35 // pred_region
        _
      $region40: #{block_forward.5} parent=35 // pred_fallthru
        _
    $region36: #{block_forward.5} parent=5 // pred_fallthru
      _
    %p290 = scmp.le.s32.totalorder 2, %s10
    // Predicated region
    $region41: #{block_forward.5} parent=5 // pred_check
      %p291 = pneg %p290
    $region42: #{block_forward.5} parent=5 // pred_check_branch
      %293 = sbr.rel (%p291) target = $region44
    $region43: #{block_forward.5} parent=5 // pred_region
      %s294 = ssub.s32 %s10, 2
      // Predicated region
      $region45: #{block_forward.5} parent=43 // pred_check
        %p295 = pneg %p133
      $region46: #{block_forward.5} parent=43 // pred_check_branch
        %297 = sbr.rel (%p295) target = $region48
      $region47: #{block_forward.5} parent=43 // pred_region
        %p298 = scmp.lt.s32.totalorder %s16, 1
        %s299 = scalar_select %p298, %s16, 1
        %s300 = smul.addr %s299, 8
        %s301 = smul.addr %s300, 8
        %s302 = scalar_lea.vmem %s4, %s301
      $region48: #{block_forward.5} parent=43 // pred_fallthru
        _
    $region44: #{block_forward.5} parent=5 // pred_fallthru
      _
  $region6: #{block_forward.5} parent=0 // loop_footer
    %s14 = sadd.s32 1, %s10
  $region7: #{block_forward.5} parent=0 // loop_footer_branch
    %9 = sbr.rel target = $region3
  $region8: #{block_forward.5} parent=0 // loop_exit
    _

// kernel: block_forward.3
$region0: #{block_forward.3}
  #allocation0 [shape = 'u32[]', space=smem, size = 0x4, offset = 0x4, fixed_abs, tag = 'smem constant byte address 0x4 - core index']
  #allocation1 [shape = 'u32[72,128]{1,0:T(1,128)}', space=vmem, size = 0x9000, scoped, tag = 'internal scratch']
  %s0 = inlined_call_operand.vmem [shape: bf16[2,8,8,128], index: 0, kind: input, shape index: {}]
  %s1 = inlined_call_operand.vmem [shape: bf16[128,256], index: 1, kind: input, shape index: {}]
  %s2 = inlined_call_operand.vmem [shape: f32[2,8,8,128], index: 2, kind: output, shape index: {0}]
  %s3 = inlined_call_operand.vmem [shape: f32[2,8,8,128], index: 3, kind: output, shape index: {1}]
  %s4 = inlined_call_operand.vmem [shape: f32[2,8,128], index: 4, kind: output, shape index: {2}]
  %5 = xla_tuple %s2, %s3, %s4
  %s6 = sld [smem:[#allocation0]]
  $region57: #{block_forward.3} parent=0
    _
  %s8 = ssub.s32 1, %s6
  %s9 = scalar_select 0, %s8, %s6
  loop: start=0, step=1, limit=4
  $region2: #{block_forward.3} parent=0 // loop_pre_header
    _
  $region3: #{block_forward.3} parent=0 // loop_header
    %s11 = sphi 0, %s15
    %p12 = scmp.ge.s32.totalorder %s11, 4
    %s21 = sphi 0, %s23
    %s24 = sphi 0, %s21
    %s25 = sphi 0, %s24
    %s41 = sphi 0, %s25
    %s45 = sphi 0, %s45
    %s47 = sphi 0, %s45
    %s48 = sphi 0, %s47
    %s62 = sphi 0, %s48
    %s68 = sphi 0, %s70
    %s71 = sphi 0, %s68
    %s72 = sphi 0, %s71
    %s88 = sphi 0, %s72
    %s94 = sphi 0, %s96
    %s97 = sphi 0, %s94
    %s98 = sphi 0, %s97
    %s114 = sphi 0, %s98
    %s120 = sphi 0, %s122
    %s123 = sphi 0, %s120
    %s124 = sphi 0, %s123
    %s140 = sphi 0, %s124
  $region4: #{block_forward.3} parent=0 // loop_header_branch
    %14 = sbr.rel (%p12) target = $region8
  $region5: #{block_forward.3} parent=0 // loop_body
    %s16 = ssub.s32 %s11, 1
    %s17 = ssub.s32 %s11, 2
    %s18 = sadd.s32 %s11, 1
    %s19 = ssub.s32 %s11, %s18
    %p20 = scmp.eq.s32.totalorder %s19, 0
    %s22 = sadd.s32 %s21, 1
    %s23 = scalar_select %p20, %s21, %s22
    %p26 = pneg %p20
    %p27 = scmp.eq.s32.totalorder %s11, 1
    %p28 = por %p26, %p27
    %p29 = scmp.ne.s32.totalorder %s21, %s24
    %p30 = scmp.eq.s32.totalorder %s11, 0
    %p31 = por %p29, %p30
    %p32 = scmp.ne.s32.totalorder %s21, %s24
    %p33 = scmp.eq.s32.totalorder %s16, 1
    %p34 = por %p32, %p33
    %p35 = scmp.ne.s32.totalorder %s24, %s25
    %p36 = scmp.eq.s32.totalorder %s16, 0
    %p37 = por %p35, %p36
    %p38 = scmp.ne.s32.totalorder %s24, %s25
    %p39 = scmp.eq.s32.totalorder %s17, 1
    %p40 = por %p38, %p39
    %p42 = scmp.ne.s32.totalorder %s25, %s41
    %p43 = scmp.eq.s32.totalorder %s17, 0
    %p44 = por %p42, %p43
    %s46 = sadd.s32 %s45, 1
    %p49 = scmp.eq.s32.totalorder %s11, 1
    %p50 = scmp.ne.s32.totalorder %s45, %s47
    %p51 = scmp.eq.s32.totalorder %s11, 0
    %p52 = por %p50, %p51
    %p53 = scmp.ne.s32.totalorder %s45, %s47
    %p54 = scmp.eq.s32.totalorder %s16, 1
    %p55 = por %p53, %p54
    %p56 = scmp.ne.s32.totalorder %s47, %s48
    %p57 = scmp.eq.s32.totalorder %s16, 0
    %p58 = por %p56, %p57
    %p59 = scmp.ne.s32.totalorder %s47, %s48
    %p60 = scmp.eq.s32.totalorder %s17, 1
    %p61 = por %p59, %p60
    %p63 = scmp.ne.s32.totalorder %s48, %s62
    %p64 = scmp.eq.s32.totalorder %s17, 0
    %p65 = por %p63, %p64
    %s66 = ssub.s32 %s11, %s18
    %p67 = scmp.eq.s32.totalorder %s66, 0
    %s69 = sadd.s32 %s68, 1
    %s70 = scalar_select %p67, %s68, %s69
    %p73 = pneg %p67
    %p74 = scmp.eq.s32.totalorder %s11, 1
    %p75 = por %p73, %p74
    %p76 = scmp.ne.s32.totalorder %s68, %s71
    %p77 = scmp.eq.s32.totalorder %s11, 0
    %p78 = por %p76, %p77
    %p79 = scmp.ne.s32.totalorder %s68, %s71
    %p80 = scmp.eq.s32.totalorder %s16, 1
    %p81 = por %p79, %p80
    %p82 = scmp.ne.s32.totalorder %s71, %s72
    %p83 = scmp.eq.s32.totalorder %s16, 0
    %p84 = por %p82, %p83
    %p85 = scmp.ne.s32.totalorder %s71, %s72
    %p86 = scmp.eq.s32.totalorder %s17, 1
    %p87 = por %p85, %p86
    %p89 = scmp.ne.s32.totalorder %s72, %s88
    %p90 = scmp.eq.s32.totalorder %s17, 0
    %p91 = por %p89, %p90
    %s92 = ssub.s32 %s11, %s18
    %p93 = scmp.eq.s32.totalorder %s92, 0
    %s95 = sadd.s32 %s94, 1
    %s96 = scalar_select %p93, %s94, %s95
    %p99 = pneg %p93
    %p100 = scmp.eq.s32.totalorder %s11, 1
    %p101 = por %p99, %p100
    %p102 = scmp.ne.s32.totalorder %s94, %s97
    %p103 = scmp.eq.s32.totalorder %s11, 0
    %p104 = por %p102, %p103
    %p105 = scmp.ne.s32.totalorder %s94, %s97
    %p106 = scmp.eq.s32.totalorder %s16, 1
    %p107 = por %p105, %p106
    %p108 = scmp.ne.s32.totalorder %s97, %s98
    %p109 = scmp.eq.s32.totalorder %s16, 0
    %p110 = por %p108, %p109
    %p111 = scmp.ne.s32.totalorder %s97, %s98
    %p112 = scmp.eq.s32.totalorder %s17, 1
    %p113 = por %p111, %p112
    %p115 = scmp.ne.s32.totalorder %s98, %s114
    %p116 = scmp.eq.s32.totalorder %s17, 0
    %p117 = por %p115, %p116
    %s118 = ssub.s32 %s11, %s18
    %p119 = scmp.eq.s32.totalorder %s118, 0
    %s121 = sadd.s32 %s120, 1
    %s122 = scalar_select %p119, %s120, %s121
    %p125 = pneg %p119
    %p126 = scmp.eq.s32.totalorder %s11, 1
    %p127 = por %p125, %p126
    %p128 = scmp.ne.s32.totalorder %s120, %s123
    %p129 = scmp.eq.s32.totalorder %s11, 0
    %p130 = por %p128, %p129
    %p131 = scmp.ne.s32.totalorder %s120, %s123
    %p132 = scmp.eq.s32.totalorder %s16, 1
    %p133 = por %p131, %p132
    %p134 = scmp.ne.s32.totalorder %s123, %s124
    %p135 = scmp.eq.s32.totalorder %s16, 0
    %p136 = por %p134, %p135
    %p137 = scmp.ne.s32.totalorder %s123, %s124
    %p138 = scmp.eq.s32.totalorder %s17, 1
    %p139 = por %p137, %p138
    %p141 = scmp.ne.s32.totalorder %s124, %s140
    %p142 = scmp.eq.s32.totalorder %s17, 0
    %p143 = por %p141, %p142
    %p144 = scmp.le.s32.totalorder 1, %s11
    %p145 = scmp.lt.s32.totalorder %s11, 3
    %p146 = pnand %p144, %p145
    %p147 = pneg %p146
    // Predicated region
    $region9: #{block_forward.3} parent=5 // pred_check
      _
    $region10: #{block_forward.3} parent=5 // pred_check_branch
      %149 = sbr.rel (%p146) target = $region12
    $region11: #{block_forward.3} parent=5 // pred_region
      %s150 = ssub.s32 %s11, 1
      // Predicated region
      $region13: #{block_forward.3} parent=11 // pred_check
        %p151 = pneg %p58
      $region14: #{block_forward.3} parent=11 // pred_check_branch
        %153 = sbr.rel (%p151) target = $region16
      $region15: #{block_forward.3} parent=11 // pred_region
        _
      $region16: #{block_forward.3} parent=11 // pred_fallthru
        _
    $region12: #{block_forward.3} parent=5 // pred_fallthru
      _
    %p154 = scmp.lt.s32.totalorder %s11, 2
    // Predicated region
    $region17: #{block_forward.3} parent=5 // pred_check
      %p155 = pneg %p154
    $region18: #{block_forward.3} parent=5 // pred_check_branch
      %157 = sbr.rel (%p155) target = $region20
    $region19: #{block_forward.3} parent=5 // pred_region
      // Predicated region
      $region21: #{block_forward.3} parent=19 // pred_check
        %p158 = pneg %p31
      $region22: #{block_forward.3} parent=19 // pred_check_branch
        %160 = sbr.rel (%p158) target = $region24
      $region23: #{block_forward.3} parent=19 // pred_region
        %p161 = scmp.lt.s32.totalorder %s11, 1
        %s162 = scalar_select %p161, %s11, 1
        %s163 = smul.addr %s162, 8
        %s164 = smul.addr %s163, 4
        %s165 = scalar_lea.vmem %s0, %s164
      $region24: #{block_forward.3} parent=19 // pred_fallthru
        _
    $region20: #{block_forward.3} parent=5 // pred_fallthru
      _
    %p166 = scmp.le.s32.totalorder 1, %s11
    %p167 = scmp.lt.s32.totalorder %s11, 3
    %p168 = pnand %p166, %p167
    %p169 = pneg %p168
    // Predicated region
    $region25: #{block_forward.3} parent=5 // pred_check
      _
    $region26: #{block_forward.3} parent=5 // pred_check_branch
      %171 = sbr.rel (%p168) target = $region28
    $region27: #{block_forward.3} parent=5 // pred_region
      %s172 = ssub.s32 %s11, 1
      %p173 = scmp.lt.s32.totalorder %s16, 1
      %s174 = scalar_select %p173, %s16, 1
      %s175 = smul.addr %s174, 8
      %s176 = smul.addr %s175, 4
      %s177 = scalar_lea.vmem %s0, %s176
      %p178 = pneg %p37
      %p179 = pneg %p34
      %p180 = pneg %p58
      %p181 = pneg %p55
      %p182 = pneg %p84
      %p183 = pneg %p81
      %p184 = scmp.lt.s32.totalorder %s16, 1
      %s185 = scalar_select %p184, %s16, 1
      %s186 = smul.addr %s185, 8
      %s187 = smul.addr %s186, 8
      %s188 = scalar_lea.vmem %s2, %s187
      %p189 = pneg %p110
      %p190 = pneg %p107
      %p191 = scmp.lt.s32.totalorder %s16, 1
      %s192 = scalar_select %p191, %s16, 1
      %s193 = smul.addr %s192, 8
      %s194 = smul.addr %s193, 8
      %s195 = scalar_lea.vmem %s3, %s194
      %p196 = pneg %p136
      %p197 = pneg %p133
      %p198 = scmp.lt.s32.totalorder %s16, 1
      %s199 = scalar_select %p198, %s16, 1
      %s200 = smul.addr %s199, 8
      %s201 = scalar_lea.vmem %s4, %s200
      %p202 = scmp.lt.s32.totalorder %s16, 1
      %s203 = scalar_select %p202, %s16, 1
      %s204 = smul.addr %s203, 8
      %s205 = smul.addr %s204, 4
      %s206 = scalar_lea.vmem %s0, %s205
      %p207 = scmp.lt.s32.totalorder %s16, 1
      %s208 = scalar_select %p207, %s16, 1
      %s209 = smul.addr %s208, 8
      %s210 = smul.addr %s209, 8
      %s211 = scalar_lea.vmem %s2, %s210
      %p212 = scmp.lt.s32.totalorder %s16, 1
      %s213 = scalar_select %p212, %s16, 1
      %s214 = smul.addr %s213, 8
      %s215 = smul.addr %s214, 8
      %s216 = scalar_lea.vmem %s3, %s215
      %p217 = scmp.lt.s32.totalorder %s16, 1
      %s218 = scalar_select %p217, %s16, 1
      %s219 = smul.addr %s218, 8
      %s220 = scalar_lea.vmem %s4, %s219
      %v221 = vld [vmem:[%s206] sm:$0xf]
      %v222 = vld [vmem:[%s206 + $0x4] sm:$0xf]
      %v223 = vld [vmem:[%s206 + $0x8] sm:$0xf]
      %v224 = vld [vmem:[%s206 + $0xc] sm:$0xf]
      %v225 = vld [vmem:[%s206 + $0x10] sm:$0xf]
      %v226 = vld [vmem:[%s206 + $0x14] sm:$0xf]
      %v227 = vld [vmem:[%s206 + $0x18] sm:$0xf]
      %v228 = vld [vmem:[%s206 + $0x1c] sm:$0xf]
      %v229 = vld [vmem:[%s1] sm:$0xff]
      %v230 = vld [vmem:[%s1 + $0x8] sm:$0xff]
      %v231 = vld [vmem:[%s1 + $0x10] sm:$0xff]
      %v232 = vld [vmem:[%s1 + $0x18] sm:$0xff]
      %v233 = vld [vmem:[%s1 + $0x20] sm:$0xff]
      %v234 = vld [vmem:[%s1 + $0x28] sm:$0xff]
      %v235 = vld [vmem:[%s1 + $0x30] sm:$0xff]
      %v236 = vld [vmem:[%s1 + $0x38] sm:$0xff]
      %v237 = vld [vmem:[%s1 + $0x40] sm:$0xff]
      %v238 = vld [vmem:[%s1 + $0x48] sm:$0xff]
      %v239 = vld [vmem:[%s1 + $0x50] sm:$0xff]
      %v240 = vld [vmem:[%s1 + $0x58] sm:$0xff]
      %v241 = vld [vmem:[%s1 + $0x60] sm:$0xff]
      %v242 = vld [vmem:[%s1 + $0x68] sm:$0xff]
      %v243 = vld [vmem:[%s1 + $0x70] sm:$0xff]
      %v244 = vld [vmem:[%s1 + $0x78] sm:$0xff]
      %v253 = vunpack.c.l.b16 %v221
      %v254 = vunpack.c.l.b16 %v222
      %v255 = vunpack.c.l.b16 %v223
      %v256 = vunpack.c.l.b16 %v224
      %v257 = vunpack.c.l.b16 %v225
      %v258 = vunpack.c.l.b16 %v226
      %v259 = vunpack.c.l.b16 %v227
      %v260 = vunpack.c.l.b16 %v228
      %v261 = vpack.c.b16 %v254, %v253
      %v262 = vpack.c.b16 %v256, %v255
      %v263 = vpack.c.b16 %v258, %v257
      %v264 = vpack.c.b16 %v260, %v259
      %v285 = vunpack.c.l.b16 %v229
      %v286 = vunpack.c.h.b16 %v229
      %v287 = vunpack.c.l.b16 %v230
      %v288 = vunpack.c.h.b16 %v230
      %v289 = vunpack.c.l.b16 %v231
      %v290 = vunpack.c.h.b16 %v231
      %v291 = vunpack.c.l.b16 %v232
      %v292 = vunpack.c.h.b16 %v232
      %v293 = vunpack.c.l.b16 %v233
      %v294 = vunpack.c.h.b16 %v233
      %v295 = vunpack.c.l.b16 %v234
      %v296 = vunpack.c.h.b16 %v234
      %v297 = vunpack.c.l.b16 %v235
      %v298 = vunpack.c.h.b16 %v235
      %v299 = vunpack.c.l.b16 %v236
      %v300 = vunpack.c.h.b16 %v236
      %v301 = vunpack.c.l.b16 %v237
      %v302 = vunpack.c.h.b16 %v237
      %v303 = vunpack.c.l.b16 %v238
      %v304 = vunpack.c.h.b16 %v238
      %v305 = vunpack.c.l.b16 %v239
      %v306 = vunpack.c.h.b16 %v239
      %v307 = vunpack.c.l.b16 %v240
      %v308 = vunpack.c.h.b16 %v240
      %v309 = vunpack.c.l.b16 %v241
      %v310 = vunpack.c.h.b16 %v241
      %v311 = vunpack.c.l.b16 %v242
      %v312 = vunpack.c.h.b16 %v242
      %v313 = vunpack.c.l.b16 %v243
      %v314 = vunpack.c.h.b16 %v243
      %v315 = vunpack.c.l.b16 %v244
      %v316 = vunpack.c.h.b16 %v244
      %v317 = vpack.c.b16 %v287, %v285
      %v318 = vpack.c.b16 %v288, %v286
      %v319 = vpack.c.b16 %v291, %v289
      %v320 = vpack.c.b16 %v292, %v290
      %v321 = vpack.c.b16 %v295, %v293
      %v322 = vpack.c.b16 %v296, %v294
      %v323 = vpack.c.b16 %v299, %v297
      %v324 = vpack.c.b16 %v300, %v298
      %v325 = vpack.c.b16 %v303, %v301
      %v326 = vpack.c.b16 %v304, %v302
      %v327 = vpack.c.b16 %v307, %v305
      %v328 = vpack.c.b16 %v308, %v306
      %v329 = vpack.c.b16 %v311, %v309
      %v330 = vpack.c.b16 %v312, %v310
      %v331 = vpack.c.b16 %v315, %v313
      %v332 = vpack.c.b16 %v316, %v314
      %349 = vmatpush.bf16.msra.mxu0 %v331
      %350 = vmatpush.bf16.msra.mxu0 %v329
      %351 = vmatpush.bf16.msra.mxu0 %v327
      %352 = vmatpush.bf16.msra.mxu0 %v325
      %353 = vmatpush.bf16.msra.mxu0 %v323
      %354 = vmatpush.bf16.msra.mxu0 %v321
      %355 = vmatpush.bf16.msra.mxu0 %v319
      %356 = vmatpush.bf16.msra.mxu0 %v317
      %357 = vmatmul.bf16.gmra.mxu0 %v261
      %v358 = vpop.f32.mrf.mxu0
      %v359 = vadd.f32 0.0, %v358
      %v360 = vpop.f32.mrf.mxu0
      %v361 = vadd.f32 0.0, %v360
      %362 = vmatmul.bf16.gmra.mxu0 %v262
      %v363 = vpop.f32.mrf.mxu0
      %v364 = vadd.f32 0.0, %v363
      %v365 = vpop.f32.mrf.mxu0
      %v366 = vadd.f32 0.0, %v365
      %367 = vmatmul.bf16.gmra.mxu0 %v263
      %v368 = vpop.f32.mrf.mxu0
      %v369 = vadd.f32 0.0, %v368
      %v370 = vpop.f32.mrf.mxu0
      %v371 = vadd.f32 0.0, %v370
      %372 = vmatmul.bf16.gmra.mxu0 %v264
      %v373 = vpop.f32.mrf.mxu0
      %v374 = vadd.f32 0.0, %v373
      %v375 = vpop.f32.mrf.mxu0
      %v376 = vadd.f32 0.0, %v375
      %377 = vdwg.mxu0
      %378 = vmatpush.bf16.msra.mxu0 %v332
      %379 = vmatpush.bf16.msra.mxu0 %v330
      %380 = vmatpush.bf16.msra.mxu0 %v328
      %381 = vmatpush.bf16.msra.mxu0 %v326
      %382 = vmatpush.bf16.msra.mxu0 %v324
      %383 = vmatpush.bf16.msra.mxu0 %v322
      %384 = vmatpush.bf16.msra.mxu0 %v320
      %385 = vmatpush.bf16.msra.mxu0 %v318
      %386 = vmatmul.bf16.gmra.mxu0 %v261
      %v387 = vpop.f32.mrf.mxu0
      %v388 = vadd.f32 0.0, %v387
      %v389 = vpop.f32.mrf.mxu0
      %v390 = vadd.f32 0.0, %v389
      %391 = vmatmul.bf16.gmra.mxu0 %v262
      %v392 = vpop.f32.mrf.mxu0
      %v393 = vadd.f32 0.0, %v392
      %v394 = vpop.f32.mrf.mxu0
      %v395 = vadd.f32 0.0, %v394
      %396 = vmatmul.bf16.gmra.mxu0 %v263
      %v397 = vpop.f32.mrf.mxu0
      %v398 = vadd.f32 0.0, %v397
      %v399 = vpop.f32.mrf.mxu0
      %v400 = vadd.f32 0.0, %v399
      %401 = vmatmul.bf16.gmra.mxu0 %v264
      %v402 = vpop.f32.mrf.mxu0
      %v403 = vadd.f32 0.0, %v402
      %v404 = vpop.f32.mrf.mxu0
      %v405 = vadd.f32 0.0, %v404
      %406 = vdwg.mxu0
      %407 = vst [vmem:[%s211] sm:$0xff] %v359
      %408 = vst [vmem:[%s211 + $0x8] sm:$0xff] %v361
      %409 = vst [vmem:[%s211 + $0x10] sm:$0xff] %v364
      %410 = vst [vmem:[%s211 + $0x18] sm:$0xff] %v366
      %411 = vst [vmem:[%s211 + $0x20] sm:$0xff] %v369
      %412 = vst [vmem:[%s211 + $0x28] sm:$0xff] %v371
      %413 = vst [vmem:[%s211 + $0x30] sm:$0xff] %v374
      %414 = vst [vmem:[%s211 + $0x38] sm:$0xff] %v376
      %415 = vst [vmem:[%s216] sm:$0xff] %v388
      %416 = vst [vmem:[%s216 + $0x8] sm:$0xff] %v390
      %417 = vst [vmem:[%s216 + $0x10] sm:$0xff] %v393
      %418 = vst [vmem:[%s216 + $0x18] sm:$0xff] %v395
      %419 = vst [vmem:[%s216 + $0x20] sm:$0xff] %v398
      %420 = vst [vmem:[%s216 + $0x28] sm:$0xff] %v400
      %421 = vst [vmem:[%s216 + $0x30] sm:$0xff] %v403
      %422 = vst [vmem:[%s216 + $0x38] sm:$0xff] %v405
      %v423 = vadd.f32 %v359, %v361
      %v424 = vadd.f32 %v423, %v364
      %v425 = vadd.f32 %v424, %v366
      %v426 = vadd.f32 %v425, %v369
      %v427 = vadd.f32 %v426, %v371
      %v428 = vadd.f32 %v427, %v374
      %v429 = vadd.f32 %v428, %v376
      %v430 = vrot.slane %v429, 4
      %v431 = vadd.f32 %v429, %v430
      %v432 = vrot.slane %v431, 2
      %v433 = vadd.f32 %v431, %v432
      %v434 = vrot.slane %v433, 1
      %v435 = vadd.f32 %v433, %v434
      %v436 = vmul.f32 %v435, 0.015625
      %v437 = vsub.f32 %v359, %v436
      %v438 = vsub.f32 %v361, %v436
      %v439 = vsub.f32 %v364, %v436
      %v440 = vsub.f32 %v366, %v436
      %v441 = vsub.f32 %v369, %v436
      %v442 = vsub.f32 %v371, %v436
      %v443 = vsub.f32 %v374, %v436
      %v444 = vsub.f32 %v376, %v436
      %v445 = vmul.f32 %v437, %v437
      %v446 = vmul.f32 %v438, %v438
      %v447 = vmul.f32 %v439, %v439
      %v448 = vmul.f32 %v440, %v440
      %v449 = vmul.f32 %v441, %v441
      %v450 = vmul.f32 %v442, %v442
      %v451 = vmul.f32 %v443, %v443
      %v452 = vmul.f32 %v444, %v444
      %v453 = vadd.f32 %v445, %v446
      %v454 = vadd.f32 %v453, %v447
      %v455 = vadd.f32 %v454, %v448
      %v456 = vadd.f32 %v455, %v449
      %v457 = vadd.f32 %v456, %v450
      %v458 = vadd.f32 %v457, %v451
      %v459 = vadd.f32 %v458, %v452
      %v460 = vrot.slane %v459, 4
      %v461 = vadd.f32 %v459, %v460
      %v462 = vrot.slane %v461, 2
      %v463 = vadd.f32 %v461, %v462
      %v464 = vrot.slane %v463, 1
      %v465 = vadd.f32 %v463, %v464
      %vm466 = vcmask 1040384
      %v467 = vsel %vm466, %v435, %v465
      %vm468 = vcmask 1041408
      %v469 = vsel %vm468, %v467, 0.0
      %470 = vst [vmem:[%s220] sm:$0xff] %v469
      %p471 = scmp.lt.s32.totalorder %s16, 1
      %s472 = scalar_select %p471, %s16, 1
      %s473 = smul.addr %s472, 8
      %s474 = smul.addr %s473, 8
      %s475 = scalar_lea.vmem %s2, %s474
      %p476 = scmp.lt.s32.totalorder %s16, 1
      %s477 = scalar_select %p476, %s16, 1
      %s478 = smul.addr %s477, 8
      %s479 = smul.addr %s478, 8
      %s480 = scalar_lea.vmem %s3, %s479
      %p481 = scmp.lt.s32.totalorder %s16, 1
      %s482 = scalar_select %p481, %s16, 1
      %s483 = smul.addr %s482, 8
      %s484 = scalar_lea.vmem %s4, %s483
      // Predicated region
      $region29: #{block_forward.3} parent=27 // pred_check
        %p485 = pneg %p81
      $region30: #{block_forward.3} parent=27 // pred_check_branch
        %487 = sbr.rel (%p485) target = $region32
      $region31: #{block_forward.3} parent=27 // pred_region
        _
      $region32: #{block_forward.3} parent=27 // pred_fallthru
        _
      // Predicated region
      $region33: #{block_forward.3} parent=27 // pred_check
        %p488 = pneg %p107
      $region34: #{block_forward.3} parent=27 // pred_check_branch
        %490 = sbr.rel (%p488) target = $region36
      $region35: #{block_forward.3} parent=27 // pred_region
        _
      $region36: #{block_forward.3} parent=27 // pred_fallthru
        _
      // Predicated region
      $region37: #{block_forward.3} parent=27 // pred_check
        %p491 = pneg %p133
      $region38: #{block_forward.3} parent=27 // pred_check_branch
        %493 = sbr.rel (%p491) target = $region40
      $region39: #{block_forward.3} parent=27 // pred_region
        _
      $region40: #{block_forward.3} parent=27 // pred_fallthru
        _
    $region28: #{block_forward.3} parent=5 // pred_fallthru
      _
    %p494 = scmp.le.s32.totalorder 2, %s11
    // Predicated region
    $region41: #{block_forward.3} parent=5 // pred_check
      %p495 = pneg %p494
    $region42: #{block_forward.3} parent=5 // pred_check_branch
      %497 = sbr.rel (%p495) target = $region44
    $region43: #{block_forward.3} parent=5 // pred_region
      %s498 = ssub.s32 %s11, 2
      // Predicated region
      $region45: #{block_forward.3} parent=43 // pred_check
        %p499 = pneg %p87
      $region46: #{block_forward.3} parent=43 // pred_check_branch
        %501 = sbr.rel (%p499) target = $region48
      $region47: #{block_forward.3} parent=43 // pred_region
        %p502 = scmp.lt.s32.totalorder %s17, 1
        %s503 = scalar_select %p502, %s17, 1
        %s504 = smul.addr %s503, 8
        %s505 = smul.addr %s504, 8
        %s506 = scalar_lea.vmem %s2, %s505
      $region48: #{block_forward.3} parent=43 // pred_fallthru
        _
      // Predicated region
      $region49: #{block_forward.3} parent=43 // pred_check
        %p507 = pneg %p113
      $region50: #{block_forward.3} parent=43 // pred_check_branch
        %509 = sbr.rel (%p507) target = $region52
      $region51: #{block_forward.3} parent=43 // pred_region
        %p510 = scmp.lt.s32.totalorder %s17, 1
        %s511 = scalar_select %p510, %s17, 1
        %s512 = smul.addr %s511, 8
        %s513 = smul.addr %s512, 8
        %s514 = scalar_lea.vmem %s3, %s513
      $region52: #{block_forward.3} parent=43 // pred_fallthru
        _
      // Predicated region
      $region53: #{block_forward.3} parent=43 // pred_check
        %p515 = pneg %p139
      $region54: #{block_forward.3} parent=43 // pred_check_branch
        %517 = sbr.rel (%p515) target = $region56
      $region55: #{block_forward.3} parent=43 // pred_region
        %p518 = scmp.lt.s32.totalorder %s17, 1
        %s519 = scalar_select %p518, %s17, 1
        %s520 = smul.addr %s519, 8
        %s521 = scalar_lea.vmem %s4, %s520
      $region56: #{block_forward.3} parent=43 // pred_fallthru
        _
    $region44: #{block_forward.3} parent=5 // pred_fallthru
      _
  $region6: #{block_forward.3} parent=0 // loop_footer
    %s15 = sadd.s32 1, %s11
  $region7: #{block_forward.3} parent=0 // loop_footer_branch
    %10 = sbr.rel target = $region3
  $region8: #{block_forward.3} parent=0 // loop_exit
    _

// kernel: block_forward.4
$region0: #{block_forward.4}
  #allocation0 [shape = 'u32[]', space=smem, size = 0x4, offset = 0x4, fixed_abs, tag = 'smem constant byte address 0x4 - core index']
  #allocation1 [shape = 'u32[72,128]{1,0:T(1,128)}', space=vmem, size = 0x9000, scoped, tag = 'internal scratch']
  #allocation2 [shape = 'bf16[1,10,17,128]{3,2,1,0:T(8,128)(2,1)}', space=vmem, size = 0xf000, scoped, tag = 'scratch operand']
  %s0 = inlined_call_operand.vmem [shape: f32[2,8,8,128], index: 0, kind: input, shape index: {}]
  %s1 = inlined_call_operand.vmem [shape: f32[1,128], index: 1, kind: input, shape index: {}]
  %s2 = inlined_call_operand.vmem [shape: f32[1,128], index: 2, kind: input, shape index: {}]
  %s3 = inlined_call_operand.vmem [shape: bf16[1152,128], index: 3, kind: input, shape index: {}]
  %s4 = inlined_call_operand.vmem [shape: f32[2,8,8,128], index: 4, kind: output, shape index: {0}]
  %s5 = inlined_call_operand.vmem [shape: f32[2,8,128], index: 5, kind: output, shape index: {1}]
  %6 = xla_tuple %s4, %s5
  %s7 = sld [smem:[#allocation0]]
  $region57: #{block_forward.4} parent=0
    _
  %s9 = ssub.s32 1, %s7
  %s10 = scalar_select 0, %s9, %s7
  loop: start=0, step=1, limit=4
  $region2: #{block_forward.4} parent=0 // loop_pre_header
    _
  $region3: #{block_forward.4} parent=0 // loop_header
    %s12 = sphi 0, %s16
    %p13 = scmp.ge.s32.totalorder %s12, 4
    %s22 = sphi 0, %s24
    %s25 = sphi 0, %s22
    %s26 = sphi 0, %s25
    %s42 = sphi 0, %s26
    %s46 = sphi 0, %s46
    %s48 = sphi 0, %s46
    %s49 = sphi 0, %s48
    %s63 = sphi 0, %s49
    %s67 = sphi 0, %s67
    %s69 = sphi 0, %s67
    %s70 = sphi 0, %s69
    %s84 = sphi 0, %s70
    %s88 = sphi 0, %s88
    %s90 = sphi 0, %s88
    %s91 = sphi 0, %s90
    %s105 = sphi 0, %s91
    %s111 = sphi 0, %s113
    %s114 = sphi 0, %s111
    %s115 = sphi 0, %s114
    %s131 = sphi 0, %s115
    %s137 = sphi 0, %s139
    %s140 = sphi 0, %s137
    %s141 = sphi 0, %s140
    %s157 = sphi 0, %s141
  $region4: #{block_forward.4} parent=0 // loop_header_branch
    %15 = sbr.rel (%p13) target = $region8
  $region5: #{block_forward.4} parent=0 // loop_body
    %s17 = ssub.s32 %s12, 1
    %s18 = ssub.s32 %s12, 2
    %s19 = sadd.s32 %s12, 1
    %s20 = ssub.s32 %s12, %s19
    %p21 = scmp.eq.s32.totalorder %s20, 0
    %s23 = sadd.s32 %s22, 1
    %s24 = scalar_select %p21, %s22, %s23
    %p27 = pneg %p21
    %p28 = scmp.eq.s32.totalorder %s12, 1
    %p29 = por %p27, %p28
    %p30 = scmp.ne.s32.totalorder %s22, %s25
    %p31 = scmp.eq.s32.totalorder %s12, 0
    %p32 = por %p30, %p31
    %p33 = scmp.ne.s32.totalorder %s22, %s25
    %p34 = scmp.eq.s32.totalorder %s17, 1
    %p35 = por %p33, %p34
    %p36 = scmp.ne.s32.totalorder %s25, %s26
    %p37 = scmp.eq.s32.totalorder %s17, 0
    %p38 = por %p36, %p37
    %p39 = scmp.ne.s32.totalorder %s25, %s26
    %p40 = scmp.eq.s32.totalorder %s18, 1
    %p41 = por %p39, %p40
    %p43 = scmp.ne.s32.totalorder %s26, %s42
    %p44 = scmp.eq.s32.totalorder %s18, 0
    %p45 = por %p43, %p44
    %s47 = sadd.s32 %s46, 1
    %p50 = scmp.eq.s32.totalorder %s12, 1
    %p51 = scmp.ne.s32.totalorder %s46, %s48
    %p52 = scmp.eq.s32.totalorder %s12, 0
    %p53 = por %p51, %p52
    %p54 = scmp.ne.s32.totalorder %s46, %s48
    %p55 = scmp.eq.s32.totalorder %s17, 1
    %p56 = por %p54, %p55
    %p57 = scmp.ne.s32.totalorder %s48, %s49
    %p58 = scmp.eq.s32.totalorder %s17, 0
    %p59 = por %p57, %p58
    %p60 = scmp.ne.s32.totalorder %s48, %s49
    %p61 = scmp.eq.s32.totalorder %s18, 1
    %p62 = por %p60, %p61
    %p64 = scmp.ne.s32.totalorder %s49, %s63
    %p65 = scmp.eq.s32.totalorder %s18, 0
    %p66 = por %p64, %p65
    %s68 = sadd.s32 %s67, 1
    %p71 = scmp.eq.s32.totalorder %s12, 1
    %p72 = scmp.ne.s32.totalorder %s67, %s69
    %p73 = scmp.eq.s32.totalorder %s12, 0
    %p74 = por %p72, %p73
    %p75 = scmp.ne.s32.totalorder %s67, %s69
    %p76 = scmp.eq.s32.totalorder %s17, 1
    %p77 = por %p75, %p76
    %p78 = scmp.ne.s32.totalorder %s69, %s70
    %p79 = scmp.eq.s32.totalorder %s17, 0
    %p80 = por %p78, %p79
    %p81 = scmp.ne.s32.totalorder %s69, %s70
    %p82 = scmp.eq.s32.totalorder %s18, 1
    %p83 = por %p81, %p82
    %p85 = scmp.ne.s32.totalorder %s70, %s84
    %p86 = scmp.eq.s32.totalorder %s18, 0
    %p87 = por %p85, %p86
    %s89 = sadd.s32 %s88, 1
    %p92 = scmp.eq.s32.totalorder %s12, 1
    %p93 = scmp.ne.s32.totalorder %s88, %s90
    %p94 = scmp.eq.s32.totalorder %s12, 0
    %p95 = por %p93, %p94
    %p96 = scmp.ne.s32.totalorder %s88, %s90
    %p97 = scmp.eq.s32.totalorder %s17, 1
    %p98 = por %p96, %p97
    %p99 = scmp.ne.s32.totalorder %s90, %s91
    %p100 = scmp.eq.s32.totalorder %s17, 0
    %p101 = por %p99, %p100
    %p102 = scmp.ne.s32.totalorder %s90, %s91
    %p103 = scmp.eq.s32.totalorder %s18, 1
    %p104 = por %p102, %p103
    %p106 = scmp.ne.s32.totalorder %s91, %s105
    %p107 = scmp.eq.s32.totalorder %s18, 0
    %p108 = por %p106, %p107
    %s109 = ssub.s32 %s12, %s19
    %p110 = scmp.eq.s32.totalorder %s109, 0
    %s112 = sadd.s32 %s111, 1
    %s113 = scalar_select %p110, %s111, %s112
    %p116 = pneg %p110
    %p117 = scmp.eq.s32.totalorder %s12, 1
    %p118 = por %p116, %p117
    %p119 = scmp.ne.s32.totalorder %s111, %s114
    %p120 = scmp.eq.s32.totalorder %s12, 0
    %p121 = por %p119, %p120
    %p122 = scmp.ne.s32.totalorder %s111, %s114
    %p123 = scmp.eq.s32.totalorder %s17, 1
    %p124 = por %p122, %p123
    %p125 = scmp.ne.s32.totalorder %s114, %s115
    %p126 = scmp.eq.s32.totalorder %s17, 0
    %p127 = por %p125, %p126
    %p128 = scmp.ne.s32.totalorder %s114, %s115
    %p129 = scmp.eq.s32.totalorder %s18, 1
    %p130 = por %p128, %p129
    %p132 = scmp.ne.s32.totalorder %s115, %s131
    %p133 = scmp.eq.s32.totalorder %s18, 0
    %p134 = por %p132, %p133
    %s135 = ssub.s32 %s12, %s19
    %p136 = scmp.eq.s32.totalorder %s135, 0
    %s138 = sadd.s32 %s137, 1
    %s139 = scalar_select %p136, %s137, %s138
    %p142 = pneg %p136
    %p143 = scmp.eq.s32.totalorder %s12, 1
    %p144 = por %p142, %p143
    %p145 = scmp.ne.s32.totalorder %s137, %s140
    %p146 = scmp.eq.s32.totalorder %s12, 0
    %p147 = por %p145, %p146
    %p148 = scmp.ne.s32.totalorder %s137, %s140
    %p149 = scmp.eq.s32.totalorder %s17, 1
    %p150 = por %p148, %p149
    %p151 = scmp.ne.s32.totalorder %s140, %s141
    %p152 = scmp.eq.s32.totalorder %s17, 0
    %p153 = por %p151, %p152
    %p154 = scmp.ne.s32.totalorder %s140, %s141
    %p155 = scmp.eq.s32.totalorder %s18, 1
    %p156 = por %p154, %p155
    %p158 = scmp.ne.s32.totalorder %s141, %s157
    %p159 = scmp.eq.s32.totalorder %s18, 0
    %p160 = por %p158, %p159
    %p161 = scmp.le.s32.totalorder 1, %s12
    %p162 = scmp.lt.s32.totalorder %s12, 3
    %p163 = pnand %p161, %p162
    %p164 = pneg %p163
    // Predicated region
    $region9: #{block_forward.4} parent=5 // pred_check
      _
    $region10: #{block_forward.4} parent=5 // pred_check_branch
      %166 = sbr.rel (%p163) target = $region12
    $region11: #{block_forward.4} parent=5 // pred_region
      %s167 = ssub.s32 %s12, 1
      // Predicated region
      $region13: #{block_forward.4} parent=11 // pred_check
        %p168 = pneg %p59
      $region14: #{block_forward.4} parent=11 // pred_check_branch
        %170 = sbr.rel (%p168) target = $region16
      $region15: #{block_forward.4} parent=11 // pred_region
        _
      $region16: #{block_forward.4} parent=11 // pred_fallthru
        _
      // Predicated region
      $region17: #{block_forward.4} parent=11 // pred_check
        %p171 = pneg %p80
      $region18: #{block_forward.4} parent=11 // pred_check_branch
        %173 = sbr.rel (%p171) target = $region20
      $region19: #{block_forward.4} parent=11 // pred_region
        _
      $region20: #{block_forward.4} parent=11 // pred_fallthru
        _
      // Predicated region
      $region21: #{block_forward.4} parent=11 // pred_check
        %p174 = pneg %p101
      $region22: #{block_forward.4} parent=11 // pred_check_branch
        %176 = sbr.rel (%p174) target = $region24
      $region23: #{block_forward.4} parent=11 // pred_region
        _
      $region24: #{block_forward.4} parent=11 // pred_fallthru
        _
    $region12: #{block_forward.4} parent=5 // pred_fallthru
      _
    %p177 = scmp.lt.s32.totalorder %s12, 2
    // Predicated region
    $region25: #{block_forward.4} parent=5 // pred_check
      %p178 = pneg %p177
    $region26: #{block_forward.4} parent=5 // pred_check_branch
      %180 = sbr.rel (%p178) target = $region28
    $region27: #{block_forward.4} parent=5 // pred_region
      // Predicated region
      $region29: #{block_forward.4} parent=27 // pred_check
        %p181 = pneg %p32
      $region30: #{block_forward.4} parent=27 // pred_check_branch
        %183 = sbr.rel (%p181) target = $region32
      $region31: #{block_forward.4} parent=27 // pred_region
        %p184 = scmp.lt.s32.totalorder %s12, 1
        %s185 = scalar_select %p184, %s12, 1
        %s186 = smul.addr %s185, 8
        %s187 = smul.addr %s186, 8
        %s188 = scalar_lea.vmem %s0, %s187
      $region32: #{block_forward.4} parent=27 // pred_fallthru
        _
    $region28: #{block_forward.4} parent=5 // pred_fallthru
      _
    %p189 = scmp.le.s32.totalorder 1, %s12
    %p190 = scmp.lt.s32.totalorder %s12, 3
    %p191 = pnand %p189, %p190
    %p192 = pneg %p191
    // Predicated region
    $region33: #{block_forward.4} parent=5 // pred_check
      _
    $region34: #{block_forward.4} parent=5 // pred_check_branch
      %194 = sbr.rel (%p191) target = $region36
    $region35: #{block_forward.4} parent=5 // pred_region
      %s195 = ssub.s32 %s12, 1
      %p196 = scmp.lt.s32.totalorder %s17, 1
      %s197 = scalar_select %p196, %s17, 1
      %s198 = smul.addr %s197, 8
      %s199 = smul.addr %s198, 8
      %s200 = scalar_lea.vmem %s0, %s199
      %p201 = pneg %p38
      %p202 = pneg %p35
      %p203 = pneg %p59
      %p204 = pneg %p56
      %p205 = pneg %p80
      %p206 = pneg %p77
      %p207 = pneg %p101
      %p208 = pneg %p98
      %p209 = pneg %p127
      %p210 = pneg %p124
      %p211 = scmp.lt.s32.totalorder %s17, 1
      %s212 = scalar_select %p211, %s17, 1
      %s213 = smul.addr %s212, 8
      %s214 = smul.addr %s213, 8
      %s215 = scalar_lea.vmem %s4, %s214
      %p216 = pneg %p153
      %p217 = pneg %p150
      %p218 = scmp.lt.s32.totalorder %s17, 1
      %s219 = scalar_select %p218, %s17, 1
      %s220 = smul.addr %s219, 8
      %s221 = scalar_lea.vmem %s5, %s220
      %p222 = scmp.lt.s32.totalorder %s17, 1
      %s223 = scalar_select %p222, %s17, 1
      %s224 = smul.addr %s223, 8
      %s225 = smul.addr %s224, 8
      %s226 = scalar_lea.vmem %s0, %s225
      %p227 = scmp.lt.s32.totalorder %s17, 1
      %s228 = scalar_select %p227, %s17, 1
      %s229 = smul.addr %s228, 8
      %s230 = smul.addr %s229, 8
      %s231 = scalar_lea.vmem %s4, %s230
      %p232 = scmp.lt.s32.totalorder %s17, 1
      %s233 = scalar_select %p232, %s17, 1
      %s234 = smul.addr %s233, 8
      %s235 = scalar_lea.vmem %s5, %s234
      %237 = vst [vmem:[#allocation2] sm:$0xf] 0
      %238 = vst [vmem:[#allocation2 + $0x4] sm:$0xf] 0
      %vm239 = vcmask 1040384
      %vm240 = vsmask.f32 256
      %vm241 = vmand %vm239, %vm240
      %v242 = vld [vmem:[#allocation2 + $0x8] sm:$0x1]
      %v243 = vsel %vm241, 0, %v242
      %244 = vst [vmem:[#allocation2 + $0x8] sm:$0x1] %v243
      %s245 = scalar_lea.vmem [#allocation2], 108
      %246 = vst [vmem:[%s245] sm:$0xf] 0
      %247 = vst [vmem:[%s245 + $0x4] sm:$0xf] 0
      %v248 = vld [vmem:[%s245 + $0x8] sm:$0x1]
      %v249 = vsel %vm241, 0, %v248
      %250 = vst [vmem:[%s245 + $0x8] sm:$0x1] %v249
      %251 = vst [vmem:[#allocation2] sm:$0xf] 0
      %252 = vst [vmem:[#allocation2 + $0xc] sm:$0xf] 0
      %253 = vst [vmem:[#allocation2 + $0x18] sm:$0xf] 0
      %254 = vst [vmem:[#allocation2 + $0x24] sm:$0xf] 0
      %255 = vst [vmem:[#allocation2 + $0x30] sm:$0xf] 0
      %256 = vst [vmem:[#allocation2 + $0x3c] sm:$0xf] 0
      %257 = vst [vmem:[#allocation2 + $0x48] sm:$0xf] 0
      %258 = vst [vmem:[#allocation2 + $0x54] sm:$0xf] 0
      %259 = vst [vmem:[#allocation2 + $0x60] sm:$0xf] 0
      %260 = vst [vmem:[#allocation2 + $0x6c] sm:$0xf] 0
      %v261 = vld [vmem:[#allocation2 + $0x8] sm:$0x1]
      %v262 = vsel %vm241, 0, %v261
      %263 = vst [vmem:[#allocation2 + $0x8] sm:$0x1] %v262
      %v264 = vld [vmem:[#allocation2 + $0x14] sm:$0x1]
      %v265 = vsel %vm241, 0, %v264
      %266 = vst [vmem:[#allocation2 + $0x14] sm:$0x1] %v265
      %v267 = vld [vmem:[#allocation2 + $0x20] sm:$0x1]
      %v268 = vsel %vm241, 0, %v267
      %269 = vst [vmem:[#allocation2 + $0x20] sm:$0x1] %v268
      %v270 = vld [vmem:[#allocation2 + $0x2c] sm:$0x1]
      %v271 = vsel %vm241, 0, %v270
      %272 = vst [vmem:[#allocation2 + $0x2c] sm:$0x1] %v271
      %v273 = vld [vmem:[#allocation2 + $0x38] sm:$0x1]
      %v274 = vsel %vm241, 0, %v273
      %275 = vst [vmem:[#allocation2 + $0x38] sm:$0x1] %v274
      %v276 = vld [vmem:[#allocation2 + $0x44] sm:$0x1]
      %v277 = vsel %vm241, 0, %v276
      %278 = vst [vmem:[#allocation2 + $0x44] sm:$0x1] %v277
      %v279 = vld [vmem:[#allocation2 + $0x50] sm:$0x1]
      %v280 = vsel %vm241, 0, %v279
      %281 = vst [vmem:[#allocation2 + $0x50] sm:$0x1] %v280
      %v282 = vld [vmem:[#allocation2 + $0x5c] sm:$0x1]
      %v283 = vsel %vm241, 0, %v282
      %284 = vst [vmem:[#allocation2 + $0x5c] sm:$0x1] %v283
      %v285 = vld [vmem:[#allocation2 + $0x68] sm:$0x1]
      %v286 = vsel %vm241, 0, %v285
      %287 = vst [vmem:[#allocation2 + $0x68] sm:$0x1] %v286
      %v288 = vld [vmem:[#allocation2 + $0x74] sm:$0x1]
      %v289 = vsel %vm241, 0, %v288
      %290 = vst [vmem:[#allocation2 + $0x74] sm:$0x1] %v289
      %v291 = vld [vmem:[%s226] sm:$0xff]
      %v292 = vld [vmem:[%s226 + $0x8] sm:$0xff]
      %v293 = vld [vmem:[%s226 + $0x10] sm:$0xff]
      %v294 = vld [vmem:[%s226 + $0x18] sm:$0xff]
      %v295 = vld [vmem:[%s226 + $0x20] sm:$0xff]
      %v296 = vld [vmem:[%s226 + $0x28] sm:$0xff]
      %v297 = vld [vmem:[%s226 + $0x30] sm:$0xff]
      %v298 = vld [vmem:[%s226 + $0x38] sm:$0xff]
      %v299 = vld [vmem:[%s1] sm:$0x1]
      %v301 = vperm.slane %v299, 0
      %v303 = vmul.f32 %v291, %v301
      %v304 = vmul.f32 %v292, %v301
      %v305 = vmul.f32 %v293, %v301
      %v306 = vmul.f32 %v294, %v301
      %v307 = vmul.f32 %v295, %v301
      %v308 = vmul.f32 %v296, %v301
      %v309 = vmul.f32 %v297, %v301
      %v310 = vmul.f32 %v298, %v301
      %v311 = vld [vmem:[%s2] sm:$0x1]
      %v313 = vperm.slane %v311, 0
      %v315 = vadd.f32 %v303, %v313
      %v316 = vadd.f32 %v304, %v313
      %v317 = vadd.f32 %v305, %v313
      %v318 = vadd.f32 %v306, %v313
      %v319 = vadd.f32 %v307, %v313
      %v320 = vadd.f32 %v308, %v313
      %v321 = vadd.f32 %v309, %v313
      %v322 = vadd.f32 %v310, %v313
      %v323 = vmax.f32 %v315, 0.0
      %v324 = vmax.f32 %v316, 0.0
      %v325 = vmax.f32 %v317, 0.0
      %v326 = vmax.f32 %v318, 0.0
      %v327 = vmax.f32 %v319, 0.0
      %v328 = vmax.f32 %v320, 0.0
      %v329 = vmax.f32 %v321, 0.0
      %v330 = vmax.f32 %v322, 0.0
      %v331 = vpack.c.bf16 %v323, %v323
      %v332 = vpack.c.bf16 %v324, %v324
      %v333 = vpack.c.bf16 %v325, %v325
      %v334 = vpack.c.bf16 %v326, %v326
      %v335 = vpack.c.bf16 %v327, %v327
      %v336 = vpack.c.bf16 %v328, %v328
      %v337 = vpack.c.bf16 %v329, %v329
      %v338 = vpack.c.bf16 %v330, %v330
      %s339 = scalar_lea.vmem [#allocation2], 12
      %340 = vst [vmem:[%s339 + $0x4] sm:$0xf] %v331
      %341 = vst [vmem:[%s339 + $0x10] sm:$0xf] %v332
      %342 = vst [vmem:[%s339 + $0x1c] sm:$0xf] %v333
      %343 = vst [vmem:[%s339 + $0x28] sm:$0xf] %v334
      %344 = vst [vmem:[%s339 + $0x34] sm:$0xf] %v335
      %345 = vst [vmem:[%s339 + $0x40] sm:$0xf] %v336
      %346 = vst [vmem:[%s339 + $0x4c] sm:$0xf] %v337
      %347 = vst [vmem:[%s339 + $0x58] sm:$0xf] %v338
      %v348 = vld [vmem:[#allocation2] sm:$0x8]
      %v349 = vld [vmem:[#allocation2 + $0x4] sm:$0xf]
      %v350 = vld [vmem:[#allocation2 + $0xc] sm:$0x8]
      %v351 = vld [vmem:[#allocation2 + $0x10] sm:$0xf]
      %v352 = vld [vmem:[#allocation2 + $0x18] sm:$0x8]
      %v353 = vld [vmem:[#allocation2 + $0x1c] sm:$0xf]
      %v354 = vld [vmem:[#allocation2 + $0x24] sm:$0x8]
      %v355 = vld [vmem:[#allocation2 + $0x28] sm:$0xf]
      %v356 = vld [vmem:[#allocation2 + $0x30] sm:$0x8]
      %v357 = vld [vmem:[#allocation2 + $0x34] sm:$0xf]
      %v358 = vld [vmem:[#allocation2 + $0x3c] sm:$0x8]
      %v359 = vld [vmem:[#allocation2 + $0x40] sm:$0xf]
      %v360 = vld [vmem:[#allocation2 + $0x48] sm:$0x8]
      %v361 = vld [vmem:[#allocation2 + $0x4c] sm:$0xf]
      %v362 = vld [vmem:[#allocation2 + $0x54] sm:$0x8]
      %v363 = vld [vmem:[#allocation2 + $0x58] sm:$0xf]
      %vm364 = vsmask.f32 4368
      %vm365 = vmor %vm240, %vm364
      %v367 = vshrl.u32 %v348, 16
      %v369 = vrot.slane %v367, 7
      %v370 = vrot.slane %v369, 4
      %v372 = vshrl.u32 %v349, 16
      %v374 = vrot.slane %v372, 7
      %v375 = vshll.u32 %v349, 16
      %v377 = vor.u32 %v374, %v375
      %v378 = vsel %vm365, %v370, %v377
      %v380 = vshrl.u32 %v350, 16
      %v382 = vrot.slane %v380, 7
      %v383 = vrot.slane %v382, 4
      %v385 = vshrl.u32 %v351, 16
      %v387 = vrot.slane %v385, 7
      %v388 = vshll.u32 %v351, 16
      %v390 = vor.u32 %v387, %v388
      %v391 = vsel %vm365, %v383, %v390
      %v393 = vshrl.u32 %v352, 16
      %v395 = vrot.slane %v393, 7
      %v396 = vrot.slane %v395, 4
      %v398 = vshrl.u32 %v353, 16
      %v400 = vrot.slane %v398, 7
      %v401 = vshll.u32 %v353, 16
      %v403 = vor.u32 %v400, %v401
      %v404 = vsel %vm365, %v396, %v403
      %v406 = vshrl.u32 %v354, 16
      %v408 = vrot.slane %v406, 7
      %v409 = vrot.slane %v408, 4
      %v411 = vshrl.u32 %v355, 16
      %v413 = vrot.slane %v411, 7
      %v414 = vshll.u32 %v355, 16
      %v416 = vor.u32 %v413, %v414
      %v417 = vsel %vm365, %v409, %v416
      %v419 = vshrl.u32 %v356, 16
      %v421 = vrot.slane %v419, 7
      %v422 = vrot.slane %v421, 4
      %v424 = vshrl.u32 %v357, 16
      %v426 = vrot.slane %v424, 7
      %v427 = vshll.u32 %v357, 16
      %v429 = vor.u32 %v426, %v427
      %v430 = vsel %vm365, %v422, %v429
      %v432 = vshrl.u32 %v358, 16
      %v434 = vrot.slane %v432, 7
      %v435 = vrot.slane %v434, 4
      %v437 = vshrl.u32 %v359, 16
      %v439 = vrot.slane %v437, 7
      %v440 = vshll.u32 %v359, 16
      %v442 = vor.u32 %v439, %v440
      %v443 = vsel %vm365, %v435, %v442
      %v445 = vshrl.u32 %v360, 16
      %v447 = vrot.slane %v445, 7
      %v448 = vrot.slane %v447, 4
      %v450 = vshrl.u32 %v361, 16
      %v452 = vrot.slane %v450, 7
      %v453 = vshll.u32 %v361, 16
      %v455 = vor.u32 %v452, %v453
      %v456 = vsel %vm365, %v448, %v455
      %v458 = vshrl.u32 %v362, 16
      %v460 = vrot.slane %v458, 7
      %v461 = vrot.slane %v460, 4
      %v463 = vshrl.u32 %v363, 16
      %v465 = vrot.slane %v463, 7
      %v466 = vshll.u32 %v363, 16
      %v468 = vor.u32 %v465, %v466
      %v469 = vsel %vm365, %v461, %v468
      %v470 = vunpack.c.l.b16 %v378
      %v471 = vunpack.c.l.b16 %v391
      %v472 = vunpack.c.l.b16 %v404
      %v473 = vunpack.c.l.b16 %v417
      %v474 = vunpack.c.l.b16 %v430
      %v475 = vunpack.c.l.b16 %v443
      %v476 = vunpack.c.l.b16 %v456
      %v477 = vunpack.c.l.b16 %v469
      %v478 = vpack.c.b16 %v471, %v470
      %v479 = vpack.c.b16 %v473, %v472
      %v480 = vpack.c.b16 %v475, %v474
      %v481 = vpack.c.b16 %v477, %v476
      %v494 = vunpack.c.l.b16 %v349
      %v495 = vunpack.c.l.b16 %v351
      %v496 = vunpack.c.l.b16 %v353
      %v497 = vunpack.c.l.b16 %v355
      %v498 = vunpack.c.l.b16 %v357
      %v499 = vunpack.c.l.b16 %v359
      %v500 = vunpack.c.l.b16 %v361
      %v501 = vunpack.c.l.b16 %v363
      %v502 = vpack.c.b16 %v495, %v494
      %v503 = vpack.c.b16 %v497, %v496
      %v504 = vpack.c.b16 %v499, %v498
      %v505 = vpack.c.b16 %v501, %v500
      %v510 = vld [vmem:[%s3] sm:$0xf]
      %v511 = vld [vmem:[%s3 + $0x4] sm:$0xf]
      %v512 = vld [vmem:[%s3 + $0x8] sm:$0xf]
      %v513 = vld [vmem:[%s3 + $0xc] sm:$0xf]
      %v514 = vld [vmem:[%s3 + $0x10] sm:$0xf]
      %v515 = vld [vmem:[%s3 + $0x14] sm:$0xf]
      %v516 = vld [vmem:[%s3 + $0x18] sm:$0xf]
      %v517 = vld [vmem:[%s3 + $0x1c] sm:$0xf]
      %v518 = vld [vmem:[%s3 + $0x20] sm:$0xf]
      %v519 = vld [vmem:[%s3 + $0x24] sm:$0xf]
      %v520 = vld [vmem:[%s3 + $0x28] sm:$0xf]
      %v521 = vld [vmem:[%s3 + $0x2c] sm:$0xf]
      %v522 = vld [vmem:[%s3 + $0x30] sm:$0xf]
      %v523 = vld [vmem:[%s3 + $0x34] sm:$0xf]
      %v524 = vld [vmem:[%s3 + $0x38] sm:$0xf]
      %v525 = vld [vmem:[%s3 + $0x3c] sm:$0xf]
      %v526 = vld [vmem:[%s3 + $0x40] sm:$0xf]
      %v527 = vld [vmem:[%s3 + $0x44] sm:$0xf]
      %v528 = vld [vmem:[%s3 + $0x48] sm:$0xf]
      %v529 = vld [vmem:[%s3 + $0x4c] sm:$0xf]
      %v530 = vld [vmem:[%s3 + $0x50] sm:$0xf]
      %v531 = vld [vmem:[%s3 + $0x54] sm:$0xf]
      %v532 = vld [vmem:[%s3 + $0x58] sm:$0xf]
      %v533 = vld [vmem:[%s3 + $0x5c] sm:$0xf]
      %v534 = vld [vmem:[%s3 + $0x60] sm:$0xf]
      %v535 = vld [vmem:[%s3 + $0x64] sm:$0xf]
      %v536 = vld [vmem:[%s3 + $0x68] sm:$0xf]
      %v537 = vld [vmem:[%s3 + $0x6c] sm:$0xf]
      %v538 = vld [vmem:[%s3 + $0x70] sm:$0xf]
      %v539 = vld [vmem:[%s3 + $0x74] sm:$0xf]
      %v540 = vld [vmem:[%s3 + $0x78] sm:$0xf]
      %v541 = vld [vmem:[%s3 + $0x7c] sm:$0xf]
      %v542 = vld [vmem:[#allocation2 + $0x8] sm:$0x1]
      %v543 = vld [vmem:[#allocation2 + $0x14] sm:$0x1]
      %v544 = vld [vmem:[#allocation2 + $0x20] sm:$0x1]
      %v545 = vld [vmem:[#allocation2 + $0x2c] sm:$0x1]
      %v546 = vld [vmem:[#allocation2 + $0x38] sm:$0x1]
      %v547 = vld [vmem:[#allocation2 + $0x44] sm:$0x1]
      %v548 = vld [vmem:[#allocation2 + $0x50] sm:$0x1]
      %v549 = vld [vmem:[#allocation2 + $0x5c] sm:$0x1]
      %vm550 = vsmask.f32 3328
      %vm551 = vsmask.f32 7440
      %vm552 = vmor %vm550, %vm551
      %v553 = vrot.slane %v372, 4
      %v554 = vrot.slane %v375, 5
      %v555 = vor.u32 %v553, %v554
      %v556 = vrot.slane %v555, 4
      %v558 = vshll.u32 %v542, 16
      %v560 = vrot.slane %v558, 5
      %v561 = vsel %vm552, %v556, %v560
      %v562 = vrot.slane %v385, 4
      %v563 = vrot.slane %v388, 5
      %v564 = vor.u32 %v562, %v563
      %v565 = vrot.slane %v564, 4
      %v567 = vshll.u32 %v543, 16
      %v569 = vrot.slane %v567, 5
      %v570 = vsel %vm552, %v565, %v569
      %v571 = vrot.slane %v398, 4
      %v572 = vrot.slane %v401, 5
      %v573 = vor.u32 %v571, %v572
      %v574 = vrot.slane %v573, 4
      %v576 = vshll.u32 %v544, 16
      %v578 = vrot.slane %v576, 5
      %v579 = vsel %vm552, %v574, %v578
      %v580 = vrot.slane %v411, 4
      %v581 = vrot.slane %v414, 5
      %v582 = vor.u32 %v580, %v581
      %v583 = vrot.slane %v582, 4
      %v585 = vshll.u32 %v545, 16
      %v587 = vrot.slane %v585, 5
      %v588 = vsel %vm552, %v583, %v587
      %v589 = vrot.slane %v424, 4
      %v590 = vrot.slane %v427, 5
      %v591 = vor.u32 %v589, %v590
      %v592 = vrot.slane %v591, 4
      %v594 = vshll.u32 %v546, 16
      %v596 = vrot.slane %v594, 5
      %v597 = vsel %vm552, %v592, %v596
      %v598 = vrot.slane %v437, 4
      %v599 = vrot.slane %v440, 5
      %v600 = vor.u32 %v598, %v599
      %v601 = vrot.slane %v600, 4
      %v603 = vshll.u32 %v547, 16
      %v605 = vrot.slane %v603, 5
      %v606 = vsel %vm552, %v601, %v605
      %v607 = vrot.slane %v450, 4
      %v608 = vrot.slane %v453, 5
      %v609 = vor.u32 %v607, %v608
      %v610 = vrot.slane %v609, 4
      %v612 = vshll.u32 %v548, 16
      %v614 = vrot.slane %v612, 5
      %v615 = vsel %vm552, %v610, %v614
      %v616 = vrot.slane %v463, 4
      %v617 = vrot.slane %v466, 5
      %v618 = vor.u32 %v616, %v617
      %v619 = vrot.slane %v618, 4
      %v621 = vshll.u32 %v549, 16
      %v623 = vrot.slane %v621, 5
      %v624 = vsel %vm552, %v619, %v623
      %v625 = vld [vmem:[%s3 + $0x80] sm:$0xf]
      %v626 = vld [vmem:[%s3 + $0x84] sm:$0xf]
      %v627 = vld [vmem:[%s3 + $0x88] sm:$0xf]
      %v628 = vld [vmem:[%s3 + $0x8c] sm:$0xf]
      %v629 = vld [vmem:[%s3 + $0x90] sm:$0xf]
      %v630 = vld [vmem:[%s3 + $0x94] sm:$0xf]
      %v631 = vld [vmem:[%s3 + $0x98] sm:$0xf]
      %v632 = vld [vmem:[%s3 + $0x9c] sm:$0xf]
      %v633 = vld [vmem:[%s3 + $0xa0] sm:$0xf]
      %v634 = vld [vmem:[%s3 + $0xa4] sm:$0xf]
      %v635 = vld [vmem:[%s3 + $0xa8] sm:$0xf]
      %v636 = vld [vmem:[%s3 + $0xac] sm:$0xf]
      %v637 = vld [vmem:[%s3 + $0xb0] sm:$0xf]
      %v638 = vld [vmem:[%s3 + $0xb4] sm:$0xf]
      %v639 = vld [vmem:[%s3 + $0xb8] sm:$0xf]
      %v640 = vld [vmem:[%s3 + $0xbc] sm:$0xf]
      %v641 = vunpack.c.l.b16 %v561
      %v642 = vunpack.c.l.b16 %v570
      %v643 = vunpack.c.l.b16 %v579
      %v644 = vunpack.c.l.b16 %v588
      %v645 = vunpack.c.l.b16 %v597
      %v646 = vunpack.c.l.b16 %v606
      %v647 = vunpack.c.l.b16 %v615
      %v648 = vunpack.c.l.b16 %v624
      %v649 = vpack.c.b16 %v642, %v641
      %v650 = vpack.c.b16 %v644, %v643
      %v651 = vpack.c.b16 %v646, %v645
      %v652 = vpack.c.b16 %v648, %v647
      %v673 = vunpack.c.l.b16 %v625
      %v674 = vunpack.c.l.b16 %v626
      %v675 = vunpack.c.l.b16 %v627
      %v676 = vunpack.c.l.b16 %v628
      %v677 = vunpack.c.l.b16 %v629
      %v678 = vunpack.c.l.b16 %v630
      %v679 = vunpack.c.l.b16 %v631
      %v680 = vunpack.c.l.b16 %v632
      %v681 = vunpack.c.l.b16 %v633
      %v682 = vunpack.c.l.b16 %v634
      %v683 = vunpack.c.l.b16 %v635
      %v684 = vunpack.c.l.b16 %v636
      %v685 = vunpack.c.l.b16 %v637
      %v686 = vunpack.c.l.b16 %v638
      %v687 = vunpack.c.l.b16 %v639
      %v688 = vunpack.c.l.b16 %v640
      %v689 = vpack.c.b16 %v674, %v673
      %v690 = vpack.c.b16 %v676, %v675
      %v691 = vpack.c.b16 %v678, %v677
      %v692 = vpack.c.b16 %v680, %v679
      %v693 = vpack.c.b16 %v682, %v681
      %v694 = vpack.c.b16 %v684, %v683
      %v695 = vpack.c.b16 %v686, %v685
      %v696 = vpack.c.b16 %v688, %v687
      %705 = vmatpush.bf16.msra.mxu0 %v696
      %706 = vmatpush.bf16.msra.mxu0 %v695
      %707 = vmatpush.bf16.msra.mxu0 %v694
      %708 = vmatpush.bf16.msra.mxu0 %v693
      %709 = vmatpush.bf16.msra.mxu0 %v692
      %710 = vmatpush.bf16.msra.mxu0 %v691
      %711 = vmatpush.bf16.msra.mxu0 %v690
      %712 = vmatpush.bf16.msra.mxu0 %v689
      %713 = vmatmul.bf16.gmra.mxu0 %v649
      %v714 = vpop.f32.mrf.mxu0
      %v715 = vadd.f32 0.0, %v714
      %v716 = vpop.f32.mrf.mxu0
      %v717 = vadd.f32 0.0, %v716
      %718 = vmatmul.bf16.gmra.mxu0 %v650
      %v719 = vpop.f32.mrf.mxu0
      %v720 = vadd.f32 0.0, %v719
      %v721 = vpop.f32.mrf.mxu0
      %v722 = vadd.f32 0.0, %v721
      %723 = vmatmul.bf16.gmra.mxu0 %v651
      %v724 = vpop.f32.mrf.mxu0
      %v725 = vadd.f32 0.0, %v724
      %v726 = vpop.f32.mrf.mxu0
      %v727 = vadd.f32 0.0, %v726
      %728 = vmatmul.bf16.gmra.mxu0 %v652
      %v729 = vpop.f32.mrf.mxu0
      %v730 = vadd.f32 0.0, %v729
      %v731 = vpop.f32.mrf.mxu0
      %v732 = vadd.f32 0.0, %v731
      %733 = vdwg.mxu0
      %v766 = vunpack.c.l.b16 %v510
      %v767 = vunpack.c.l.b16 %v511
      %v768 = vunpack.c.l.b16 %v512
      %v769 = vunpack.c.l.b16 %v513
      %v770 = vunpack.c.l.b16 %v514
      %v771 = vunpack.c.l.b16 %v515
      %v772 = vunpack.c.l.b16 %v516
      %v773 = vunpack.c.l.b16 %v517
      %v774 = vunpack.c.l.b16 %v518
      %v775 = vunpack.c.l.b16 %v519
      %v776 = vunpack.c.l.b16 %v520
      %v777 = vunpack.c.l.b16 %v521
      %v778 = vunpack.c.l.b16 %v522
      %v779 = vunpack.c.l.b16 %v523
      %v780 = vunpack.c.l.b16 %v524
      %v781 = vunpack.c.l.b16 %v525
      %v782 = vunpack.c.l.b16 %v526
      %v783 = vunpack.c.l.b16 %v527
      %v784 = vunpack.c.l.b16 %v528
      %v785 = vunpack.c.l.b16 %v529
      %v786 = vunpack.c.l.b16 %v530
      %v787 = vunpack.c.l.b16 %v531
      %v788 = vunpack.c.l.b16 %v532
      %v789 = vunpack.c.l.b16 %v533
      %v790 = vunpack.c.l.b16 %v534
      %v791 = vunpack.c.l.b16 %v535
      %v792 = vunpack.c.l.b16 %v536
      %v793 = vunpack.c.l.b16 %v537
      %v794 = vunpack.c.l.b16 %v538
      %v795 = vunpack.c.l.b16 %v539
      %v796 = vunpack.c.l.b16 %v540
      %v797 = vunpack.c.l.b16 %v541
      %v798 = vpack.c.b16 %v767, %v766
      %v799 = vpack.c.b16 %v769, %v768
      %v800 = vpack.c.b16 %v771, %v770
      %v801 = vpack.c.b16 %v773, %v772
      %v802 = vpack.c.b16 %v775, %v774
      %v803 = vpack.c.b16 %v777, %v776
      %v804 = vpack.c.b16 %v779, %v778
      %v805 = vpack.c.b16 %v781, %v780
      %v806 = vpack.c.b16 %v783, %v782
      %v807 = vpack.c.b16 %v785, %v784
      %v808 = vpack.c.b16 %v787, %v786
      %v809 = vpack.c.b16 %v789, %v788
      %v810 = vpack.c.b16 %v791, %v790
      %v811 = vpack.c.b16 %v793, %v792
      %v812 = vpack.c.b16 %v795, %v794
      %v813 = vpack.c.b16 %v797, %v796
      %830 = vmatpush.bf16.msra.mxu0 %v805
      %831 = vmatpush.bf16.msra.mxu0 %v804
      %832 = vmatpush.bf16.msra.mxu0 %v803
      %833 = vmatpush.bf16.msra.mxu0 %v802
      %834 = vmatpush.bf16.msra.mxu0 %v801
      %835 = vmatpush.bf16.msra.mxu0 %v800
      %836 = vmatpush.bf16.msra.mxu0 %v799
      %837 = vmatpush.bf16.msra.mxu0 %v798
      %838 = vmatmul.bf16.gmra.mxu0 %v478
      %v839 = vpop.f32.mrf.mxu0
      %v840 = vadd.f32 %v715, %v839
      %v841 = vpop.f32.mrf.mxu0
      %v842 = vadd.f32 %v717, %v841
      %843 = vmatmul.bf16.gmra.mxu0 %v479
      %v844 = vpop.f32.mrf.mxu0
      %v845 = vadd.f32 %v720, %v844
      %v846 = vpop.f32.mrf.mxu0
      %v847 = vadd.f32 %v722, %v846
      %848 = vmatmul.bf16.gmra.mxu0 %v480
      %v849 = vpop.f32.mrf.mxu0
      %v850 = vadd.f32 %v725, %v849
      %v851 = vpop.f32.mrf.mxu0
      %v852 = vadd.f32 %v727, %v851
      %853 = vmatmul.bf16.gmra.mxu0 %v481
      %v854 = vpop.f32.mrf.mxu0
      %v855 = vadd.f32 %v730, %v854
      %v856 = vpop.f32.mrf.mxu0
      %v857 = vadd.f32 %v732, %v856
      %858 = vdwg.mxu0
      %859 = vmatpush.bf16.msra.mxu0 %v813
      %860 = vmatpush.bf16.msra.mxu0 %v812
      %861 = vmatpush.bf16.msra.mxu0 %v811
      %862 = vmatpush.bf16.msra.mxu0 %v810
      %863 = vmatpush.bf16.msra.mxu0 %v809
      %864 = vmatpush.bf16.msra.mxu0 %v808
      %865 = vmatpush.bf16.msra.mxu0 %v807
      %866 = vmatpush.bf16.msra.mxu0 %v806
      %867 = vmatmul.bf16.gmra.mxu0 %v502
      %v868 = vpop.f32.mrf.mxu0
      %v869 = vadd.f32 %v840, %v868
      %v870 = vpop.f32.mrf.mxu0
      %v871 = vadd.f32 %v842, %v870
      %872 = vmatmul.bf16.gmra.mxu0 %v503
      %v873 = vpop.f32.mrf.mxu0
      %v874 = vadd.f32 %v845, %v873
      %v875 = vpop.f32.mrf.mxu0
      %v876 = vadd.f32 %v847, %v875
      %877 = vmatmul.bf16.gmra.mxu0 %v504
      %v878 = vpop.f32.mrf.mxu0
      %v879 = vadd.f32 %v850, %v878
      %v880 = vpop.f32.mrf.mxu0
      %v881 = vadd.f32 %v852, %v880
      %882 = vmatmul.bf16.gmra.mxu0 %v505
      %v883 = vpop.f32.mrf.mxu0
      %v884 = vadd.f32 %v855, %v883
      %v885 = vpop.f32.mrf.mxu0
      %v886 = vadd.f32 %v857, %v885
      %887 = vdwg.mxu0
      %v888 = vld [vmem:[%s339] sm:$0x8]
      %v889 = vld [vmem:[%s339 + $0x4] sm:$0xf]
      %v890 = vld [vmem:[%s339 + $0xc] sm:$0x8]
      %v891 = vld [vmem:[%s339 + $0x10] sm:$0xf]
      %v892 = vld [vmem:[%s339 + $0x18] sm:$0x8]
      %v893 = vld [vmem:[%s339 + $0x1c] sm:$0xf]
      %v894 = vld [vmem:[%s339 + $0x24] sm:$0x8]
      %v895 = vld [vmem:[%s339 + $0x28] sm:$0xf]
      %v896 = vld [vmem:[%s339 + $0x30] sm:$0x8]
      %v897 = vld [vmem:[%s339 + $0x34] sm:$0xf]
      %v898 = vld [vmem:[%s339 + $0x3c] sm:$0x8]
      %v899 = vld [vmem:[%s339 + $0x40] sm:$0xf]
      %v900 = vld [vmem:[%s339 + $0x48] sm:$0x8]
      %v901 = vld [vmem:[%s339 + $0x4c] sm:$0xf]
      %v902 = vld [vmem:[%s339 + $0x54] sm:$0x8]
      %v903 = vld [vmem:[%s339 + $0x58] sm:$0xf]
      %v905 = vshrl.u32 %v888, 16
      %v907 = vrot.slane %v905, 7
      %v908 = vrot.slane %v907, 4
      %v910 = vshrl.u32 %v889, 16
      %v912 = vrot.slane %v910, 7
      %v913 = vshll.u32 %v889, 16
      %v915 = vor.u32 %v912, %v913
      %v916 = vsel %vm365, %v908, %v915
      %v918 = vshrl.u32 %v890, 16
      %v920 = vrot.slane %v918, 7
      %v921 = vrot.slane %v920, 4
      %v923 = vshrl.u32 %v891, 16
      %v925 = vrot.slane %v923, 7
      %v926 = vshll.u32 %v891, 16
      %v928 = vor.u32 %v925, %v926
      %v929 = vsel %vm365, %v921, %v928
      %v931 = vshrl.u32 %v892, 16
      %v933 = vrot.slane %v931, 7
      %v934 = vrot.slane %v933, 4
      %v936 = vshrl.u32 %v893, 16
      %v938 = vrot.slane %v936, 7
      %v939 = vshll.u32 %v893, 16
      %v941 = vor.u32 %v938, %v939
      %v942 = vsel %vm365, %v934, %v941
      %v944 = vshrl.u32 %v894, 16
      %v946 = vrot.slane %v944, 7
      %v947 = vrot.slane %v946, 4
      %v949 = vshrl.u32 %v895, 16
      %v951 = vrot.slane %v949, 7
      %v952 = vshll.u32 %v895, 16
      %v954 = vor.u32 %v951, %v952
      %v955 = vsel %vm365, %v947, %v954
      %v957 = vshrl.u32 %v896, 16
      %v959 = vrot.slane %v957, 7
      %v960 = vrot.slane %v959, 4
      %v962 = vshrl.u32 %v897, 16
      %v964 = vrot.slane %v962, 7
      %v965 = vshll.u32 %v897, 16
      %v967 = vor.u32 %v964, %v965
      %v968 = vsel %vm365, %v960, %v967
      %v970 = vshrl.u32 %v898, 16
      %v972 = vrot.slane %v970, 7
      %v973 = vrot.slane %v972, 4
      %v975 = vshrl.u32 %v899, 16
      %v977 = vrot.slane %v975, 7
      %v978 = vshll.u32 %v899, 16
      %v980 = vor.u32 %v977, %v978
      %v981 = vsel %vm365, %v973, %v980
      %v983 = vshrl.u32 %v900, 16
      %v985 = vrot.slane %v983, 7
      %v986 = vrot.slane %v985, 4
      %v988 = vshrl.u32 %v901, 16
      %v990 = vrot.slane %v988, 7
      %v991 = vshll.u32 %v901, 16
      %v993 = vor.u32 %v990, %v991
      %v994 = vsel %vm365, %v986, %v993
      %v996 = vshrl.u32 %v902, 16
      %v998 = vrot.slane %v996, 7
      %v999 = vrot.slane %v998, 4
      %v1001 = vshrl.u32 %v903, 16
      %v1003 = vrot.slane %v1001, 7
      %v1004 = vshll.u32 %v903, 16
      %v1006 = vor.u32 %v1003, %v1004
      %v1007 = vsel %vm365, %v999, %v1006
      %v1008 = vunpack.c.l.b16 %v916
      %v1009 = vunpack.c.l.b16 %v929
      %v1010 = vunpack.c.l.b16 %v942
      %v1011 = vunpack.c.l.b16 %v955
      %v1012 = vunpack.c.l.b16 %v968
      %v1013 = vunpack.c.l.b16 %v981
      %v1014 = vunpack.c.l.b16 %v994
      %v1015 = vunpack.c.l.b16 %v1007
      %v1016 = vpack.c.b16 %v1009, %v1008
      %v1017 = vpack.c.b16 %v1011, %v1010
      %v1018 = vpack.c.b16 %v1013, %v1012
      %v1019 = vpack.c.b16 %v1015, %v1014
      %v1032 = vunpack.c.l.b16 %v889
      %v1033 = vunpack.c.l.b16 %v891
      %v1034 = vunpack.c.l.b16 %v893
      %v1035 = vunpack.c.l.b16 %v895
      %v1036 = vunpack.c.l.b16 %v897
      %v1037 = vunpack.c.l.b16 %v899
      %v1038 = vunpack.c.l.b16 %v901
      %v1039 = vunpack.c.l.b16 %v903
      %v1040 = vpack.c.b16 %v1033, %v1032
      %v1041 = vpack.c.b16 %v1035, %v1034
      %v1042 = vpack.c.b16 %v1037, %v1036
      %v1043 = vpack.c.b16 %v1039, %v1038
      %v1048 = vld [vmem:[%s3 + $0xc0] sm:$0xf]
      %v1049 = vld [vmem:[%s3 + $0xc4] sm:$0xf]
      %v1050 = vld [vmem:[%s3 + $0xc8] sm:$0xf]
      %v1051 = vld [vmem:[%s3 + $0xcc] sm:$0xf]
      %v1052 = vld [vmem:[%s3 + $0xd0] sm:$0xf]
      %v1053 = vld [vmem:[%s3 + $0xd4] sm:$0xf]
      %v1054 = vld [vmem:[%s3 + $0xd8] sm:$0xf]
      %v1055 = vld [vmem:[%s3 + $0xdc] sm:$0xf]
      %v1056 = vld [vmem:[%s3 + $0xe0] sm:$0xf]
      %v1057 = vld [vmem:[%s3 + $0xe4] sm:$0xf]
      %v1058 = vld [vmem:[%s3 + $0xe8] sm:$0xf]
      %v1059 = vld [vmem:[%s3 + $0xec] sm:$0xf]
      %v1060 = vld [vmem:[%s3 + $0xf0] sm:$0xf]
      %v1061 = vld [vmem:[%s3 + $0xf4] sm:$0xf]
      %v1062 = vld [vmem:[%s3 + $0xf8] sm:$0xf]
      %v1063 = vld [vmem:[%s3 + $0xfc] sm:$0xf]
      %v1064 = vld [vmem:[%s3 + $0x100] sm:$0xf]
      %v1065 = vld [vmem:[%s3 + $0x104] sm:$0xf]
      %v1066 = vld [vmem:[%s3 + $0x108] sm:$0xf]
      %v1067 = vld [vmem:[%s3 + $0x10c] sm:$0xf]
      %v1068 = vld [vmem:[%s3 + $0x110] sm:$0xf]
      %v1069 = vld [vmem:[%s3 + $0x114] sm:$0xf]
      %v1070 = vld [vmem:[%s3 + $0x118] sm:$0xf]
      %v1071 = vld [vmem:[%s3 + $0x11c] sm:$0xf]
      %v1072 = vld [vmem:[%s3 + $0x120] sm:$0xf]
      %v1073 = vld [vmem:[%s3 + $0x124] sm:$0xf]
      %v1074 = vld [vmem:[%s3 + $0x128] sm:$0xf]
      %v1075 = vld [vmem:[%s3 + $0x12c] sm:$0xf]
      %v1076 = vld [vmem:[%s3 + $0x130] sm:$0xf]
      %v1077 = vld [vmem:[%s3 + $0x134] sm:$0xf]
      %v1078 = vld [vmem:[%s3 + $0x138] sm:$0xf]
      %v1079 = vld [vmem:[%s3 + $0x13c] sm:$0xf]
      %v1112 = vunpack.c.l.b16 %v1048
      %v1113 = vunpack.c.l.b16 %v1049
      %v1114 = vunpack.c.l.b16 %v1050
      %v1115 = vunpack.c.l.b16 %v1051
      %v1116 = vunpack.c.l.b16 %v1052
      %v1117 = vunpack.c.l.b16 %v1053
      %v1118 = vunpack.c.l.b16 %v1054
      %v1119 = vunpack.c.l.b16 %v1055
      %v1120 = vunpack.c.l.b16 %v1056
      %v1121 = vunpack.c.l.b16 %v1057
      %v1122 = vunpack.c.l.b16 %v1058
      %v1123 = vunpack.c.l.b16 %v1059
      %v1124 = vunpack.c.l.b16 %v1060
      %v1125 = vunpack.c.l.b16 %v1061
      %v1126 = vunpack.c.l.b16 %v1062
      %v1127 = vunpack.c.l.b16 %v1063
      %v1128 = vunpack.c.l.b16 %v1064
      %v1129 = vunpack.c.l.b16 %v1065
      %v1130 = vunpack.c.l.b16 %v1066
      %v1131 = vunpack.c.l.b16 %v1067
      %v1132 = vunpack.c.l.b16 %v1068
      %v1133 = vunpack.c.l.b16 %v1069
      %v1134 = vunpack.c.l.b16 %v1070
      %v1135 = vunpack.c.l.b16 %v1071
      %v1136 = vunpack.c.l.b16 %v1072
      %v1137 = vunpack.c.l.b16 %v1073
      %v1138 = vunpack.c.l.b16 %v1074
      %v1139 = vunpack.c.l.b16 %v1075
      %v1140 = vunpack.c.l.b16 %v1076
      %v1141 = vunpack.c.l.b16 %v1077
      %v1142 = vunpack.c.l.b16 %v1078
      %v1143 = vunpack.c.l.b16 %v1079
      %v1144 = vpack.c.b16 %v1113, %v1112
      %v1145 = vpack.c.b16 %v1115, %v1114
      %v1146 = vpack.c.b16 %v1117, %v1116
      %v1147 = vpack.c.b16 %v1119, %v1118
      %v1148 = vpack.c.b16 %v1121, %v1120
      %v1149 = vpack.c.b16 %v1123, %v1122
      %v1150 = vpack.c.b16 %v1125, %v1124
      %v1151 = vpack.c.b16 %v1127, %v1126
      %v1152 = vpack.c.b16 %v1129, %v1128
      %v1153 = vpack.c.b16 %v1131, %v1130
      %v1154 = vpack.c.b16 %v1133, %v1132
      %v1155 = vpack.c.b16 %v1135, %v1134
      %v1156 = vpack.c.b16 %v1137, %v1136
      %v1157 = vpack.c.b16 %v1139, %v1138
      %v1158 = vpack.c.b16 %v1141, %v1140
      %v1159 = vpack.c.b16 %v1143, %v1142
      %1176 = vmatpush.bf16.msra.mxu0 %v1151
      %1177 = vmatpush.bf16.msra.mxu0 %v1150
      %1178 = vmatpush.bf16.msra.mxu0 %v1149
      %1179 = vmatpush.bf16.msra.mxu0 %v1148
      %1180 = vmatpush.bf16.msra.mxu0 %v1147
      %1181 = vmatpush.bf16.msra.mxu0 %v1146
      %1182 = vmatpush.bf16.msra.mxu0 %v1145
      %1183 = vmatpush.bf16.msra.mxu0 %v1144
      %1184 = vmatmul.bf16.gmra.mxu0 %v1016
      %v1185 = vpop.f32.mrf.mxu0
      %v1186 = vadd.f32 0.0, %v1185
      %v1187 = vpop.f32.mrf.mxu0
      %v1188 = vadd.f32 0.0, %v1187
      %1189 = vmatmul.bf16.gmra.mxu0 %v1017
      %v1190 = vpop.f32.mrf.mxu0
      %v1191 = vadd.f32 0.0, %v1190
      %v1192 = vpop.f32.mrf.mxu0
      %v1193 = vadd.f32 0.0, %v1192
      %1194 = vmatmul.bf16.gmra.mxu0 %v1018
      %v1195 = vpop.f32.mrf.mxu0
      %v1196 = vadd.f32 0.0, %v1195
      %v1197 = vpop.f32.mrf.mxu0
      %v1198 = vadd.f32 0.0, %v1197
      %1199 = vmatmul.bf16.gmra.mxu0 %v1019
      %v1200 = vpop.f32.mrf.mxu0
      %v1201 = vadd.f32 0.0, %v1200
      %v1202 = vpop.f32.mrf.mxu0
      %v1203 = vadd.f32 0.0, %v1202
      %1204 = vdwg.mxu0
      %1205 = vmatpush.bf16.msra.mxu0 %v1159
      %1206 = vmatpush.bf16.msra.mxu0 %v1158
      %1207 = vmatpush.bf16.msra.mxu0 %v1157
      %1208 = vmatpush.bf16.msra.mxu0 %v1156
      %1209 = vmatpush.bf16.msra.mxu0 %v1155
      %1210 = vmatpush.bf16.msra.mxu0 %v1154
      %1211 = vmatpush.bf16.msra.mxu0 %v1153
      %1212 = vmatpush.bf16.msra.mxu0 %v1152
      %1213 = vmatmul.bf16.gmra.mxu0 %v1040
      %v1214 = vpop.f32.mrf.mxu0
      %v1215 = vadd.f32 %v1186, %v1214
      %v1216 = vpop.f32.mrf.mxu0
      %v1217 = vadd.f32 %v1188, %v1216
      %1218 = vmatmul.bf16.gmra.mxu0 %v1041
      %v1219 = vpop.f32.mrf.mxu0
      %v1220 = vadd.f32 %v1191, %v1219
      %v1221 = vpop.f32.mrf.mxu0
      %v1222 = vadd.f32 %v1193, %v1221
      %1223 = vmatmul.bf16.gmra.mxu0 %v1042
      %v1224 = vpop.f32.mrf.mxu0
      %v1225 = vadd.f32 %v1196, %v1224
      %v1226 = vpop.f32.mrf.mxu0
      %v1227 = vadd.f32 %v1198, %v1226
      %1228 = vmatmul.bf16.gmra.mxu0 %v1043
      %v1229 = vpop.f32.mrf.mxu0
      %v1230 = vadd.f32 %v1201, %v1229
      %v1231 = vpop.f32.mrf.mxu0
      %v1232 = vadd.f32 %v1203, %v1231
      %1233 = vdwg.mxu0
      %v1234 = vadd.f32 %v869, %v1215
      %v1235 = vadd.f32 %v871, %v1217
      %v1236 = vadd.f32 %v874, %v1220
      %v1237 = vadd.f32 %v876, %v1222
      %v1238 = vadd.f32 %v879, %v1225
      %v1239 = vadd.f32 %v881, %v1227
      %v1240 = vadd.f32 %v884, %v1230
      %v1241 = vadd.f32 %v886, %v1232
      %v1242 = vld [vmem:[%s339 + $0x4] sm:$0xf]
      %v1243 = vld [vmem:[%s339 + $0x8] sm:$0x1]
      %v1244 = vld [vmem:[%s339 + $0x10] sm:$0xf]
      %v1245 = vld [vmem:[%s339 + $0x14] sm:$0x1]
      %v1246 = vld [vmem:[%s339 + $0x1c] sm:$0xf]
      %v1247 = vld [vmem:[%s339 + $0x20] sm:$0x1]
      %v1248 = vld [vmem:[%s339 + $0x28] sm:$0xf]
      %v1249 = vld [vmem:[%s339 + $0x2c] sm:$0x1]
      %v1250 = vld [vmem:[%s339 + $0x34] sm:$0xf]
      %v1251 = vld [vmem:[%s339 + $0x38] sm:$0x1]
      %v1252 = vld [vmem:[%s339 + $0x40] sm:$0xf]
      %v1253 = vld [vmem:[%s339 + $0x44] sm:$0x1]
      %v1254 = vld [vmem:[%s339 + $0x4c] sm:$0xf]
      %v1255 = vld [vmem:[%s339 + $0x50] sm:$0x1]
      %v1256 = vld [vmem:[%s339 + $0x58] sm:$0xf]
      %v1257 = vld [vmem:[%s339 + $0x5c] sm:$0x1]
      %v1259 = vshrl.u32 %v1242, 16
      %v1261 = vrot.slane %v1259, 4
      %v1262 = vshll.u32 %v1242, 16
      %v1264 = vrot.slane %v1262, 5
      %v1265 = vor.u32 %v1261, %v1264
      %v1266 = vrot.slane %v1265, 4
      %v1268 = vshll.u32 %v1243, 16
      %v1270 = vrot.slane %v1268, 5
      %v1271 = vsel %vm552, %v1266, %v1270
      %v1273 = vshrl.u32 %v1244, 16
      %v1275 = vrot.slane %v1273, 4
      %v1276 = vshll.u32 %v1244, 16
      %v1278 = vrot.slane %v1276, 5
      %v1279 = vor.u32 %v1275, %v1278
      %v1280 = vrot.slane %v1279, 4
      %v1282 = vshll.u32 %v1245, 16
      %v1284 = vrot.slane %v1282, 5
      %v1285 = vsel %vm552, %v1280, %v1284
      %v1287 = vshrl.u32 %v1246, 16
      %v1289 = vrot.slane %v1287, 4
      %v1290 = vshll.u32 %v1246, 16
      %v1292 = vrot.slane %v1290, 5
      %v1293 = vor.u32 %v1289, %v1292
      %v1294 = vrot.slane %v1293, 4
      %v1296 = vshll.u32 %v1247, 16
      %v1298 = vrot.slane %v1296, 5
      %v1299 = vsel %vm552, %v1294, %v1298
      %v1301 = vshrl.u32 %v1248, 16
      %v1303 = vrot.slane %v1301, 4
      %v1304 = vshll.u32 %v1248, 16
      %v1306 = vrot.slane %v1304, 5
      %v1307 = vor.u32 %v1303, %v1306
      %v1308 = vrot.slane %v1307, 4
      %v1310 = vshll.u32 %v1249, 16
      %v1312 = vrot.slane %v1310, 5
      %v1313 = vsel %vm552, %v1308, %v1312
      %v1315 = vshrl.u32 %v1250, 16
      %v1317 = vrot.slane %v1315, 4
      %v1318 = vshll.u32 %v1250, 16
      %v1320 = vrot.slane %v1318, 5
      %v1321 = vor.u32 %v1317, %v1320
      %v1322 = vrot.slane %v1321, 4
      %v1324 = vshll.u32 %v1251, 16
      %v1326 = vrot.slane %v1324, 5
      %v1327 = vsel %vm552, %v1322, %v1326
      %v1329 = vshrl.u32 %v1252, 16
      %v1331 = vrot.slane %v1329, 4
      %v1332 = vshll.u32 %v1252, 16
      %v1334 = vrot.slane %v1332, 5
      %v1335 = vor.u32 %v1331, %v1334
      %v1336 = vrot.slane %v1335, 4
      %v1338 = vshll.u32 %v1253, 16
      %v1340 = vrot.slane %v1338, 5
      %v1341 = vsel %vm552, %v1336, %v1340
      %v1343 = vshrl.u32 %v1254, 16
      %v1345 = vrot.slane %v1343, 4
      %v1346 = vshll.u32 %v1254, 16
      %v1348 = vrot.slane %v1346, 5
      %v1349 = vor.u32 %v1345, %v1348
      %v1350 = vrot.slane %v1349, 4
      %v1352 = vshll.u32 %v1255, 16
      %v1354 = vrot.slane %v1352, 5
      %v1355 = vsel %vm552, %v1350, %v1354
      %v1357 = vshrl.u32 %v1256, 16
      %v1359 = vrot.slane %v1357, 4
      %v1360 = vshll.u32 %v1256, 16
      %v1362 = vrot.slane %v1360, 5
      %v1363 = vor.u32 %v1359, %v1362
      %v1364 = vrot.slane %v1363, 4
      %v1366 = vshll.u32 %v1257, 16
      %v1368 = vrot.slane %v1366, 5
      %v1369 = vsel %vm552, %v1364, %v1368
      %v1370 = vld [vmem:[%s3 + $0x140] sm:$0xf]
      %v1371 = vld [vmem:[%s3 + $0x144] sm:$0xf]
      %v1372 = vld [vmem:[%s3 + $0x148] sm:$0xf]
      %v1373 = vld [vmem:[%s3 + $0x14c] sm:$0xf]
      %v1374 = vld [vmem:[%s3 + $0x150] sm:$0xf]
      %v1375 = vld [vmem:[%s3 + $0x154] sm:$0xf]
      %v1376 = vld [vmem:[%s3 + $0x158] sm:$0xf]
      %v1377 = vld [vmem:[%s3 + $0x15c] sm:$0xf]
      %v1378 = vld [vmem:[%s3 + $0x160] sm:$0xf]
      %v1379 = vld [vmem:[%s3 + $0x164] sm:$0xf]
      %v1380 = vld [vmem:[%s3 + $0x168] sm:$0xf]
      %v1381 = vld [vmem:[%s3 + $0x16c] sm:$0xf]
      %v1382 = vld [vmem:[%s3 + $0x170] sm:$0xf]
      %v1383 = vld [vmem:[%s3 + $0x174] sm:$0xf]
      %v1384 = vld [vmem:[%s3 + $0x178] sm:$0xf]
      %v1385 = vld [vmem:[%s3 + $0x17c] sm:$0xf]
      %v1386 = vunpack.c.l.b16 %v1271
      %v1387 = vunpack.c.l.b16 %v1285
      %v1388 = vunpack.c.l.b16 %v1299
      %v1389 = vunpack.c.l.b16 %v1313
      %v1390 = vunpack.c.l.b16 %v1327
      %v1391 = vunpack.c.l.b16 %v1341
      %v1392 = vunpack.c.l.b16 %v1355
      %v1393 = vunpack.c.l.b16 %v1369
      %v1394 = vpack.c.b16 %v1387, %v1386
      %v1395 = vpack.c.b16 %v1389, %v1388
      %v1396 = vpack.c.b16 %v1391, %v1390
      %v1397 = vpack.c.b16 %v1393, %v1392
      %v1418 = vunpack.c.l.b16 %v1370
      %v1419 = vunpack.c.l.b16 %v1371
      %v1420 = vunpack.c.l.b16 %v1372
      %v1421 = vunpack.c.l.b16 %v1373
      %v1422 = vunpack.c.l.b16 %v1374
      %v1423 = vunpack.c.l.b16 %v1375
      %v1424 = vunpack.c.l.b16 %v1376
      %v1425 = vunpack.c.l.b16 %v1377
      %v1426 = vunpack.c.l.b16 %v1378
      %v1427 = vunpack.c.l.b16 %v1379
      %v1428 = vunpack.c.l.b16 %v1380
      %v1429 = vunpack.c.l.b16 %v1381
      %v1430 = vunpack.c.l.b16 %v1382
      %v1431 = vunpack.c.l.b16 %v1383
      %v1432 = vunpack.c.l.b16 %v1384
      %v1433 = vunpack.c.l.b16 %v1385
      %v1434 = vpack.c.b16 %v1419, %v1418
      %v1435 = vpack.c.b16 %v1421, %v1420
      %v1436 = vpack.c.b16 %v1423, %v1422
      %v1437 = vpack.c.b16 %v1425, %v1424
      %v1438 = vpack.c.b16 %v1427, %v1426
      %v1439 = vpack.c.b16 %v1429, %v1428
      %v1440 = vpack.c.b16 %v1431, %v1430
      %v1441 = vpack.c.b16 %v1433, %v1432
      %1450 = vmatpush.bf16.msra.mxu0 %v1441
      %1451 = vmatpush.bf16.msra.mxu0 %v1440
      %1452 = vmatpush.bf16.msra.mxu0 %v1439
      %1453 = vmatpush.bf16.msra.mxu0 %v1438
      %1454 = vmatpush.bf16.msra.mxu0 %v1437
      %1455 = vmatpush.bf16.msra.mxu0 %v1436
      %1456 = vmatpush.bf16.msra.mxu0 %v1435
      %1457 = vmatpush.bf16.msra.mxu0 %v1434
      %1458 = vmatmul.bf16.gmra.mxu0 %v1394
      %v1459 = vpop.f32.mrf.mxu0
      %v1460 = vadd.f32 0.0, %v1459
      %v1461 = vpop.f32.mrf.mxu0
      %v1462 = vadd.f32 0.0, %v1461
      %1463 = vmatmul.bf16.gmra.mxu0 %v1395
      %v1464 = vpop.f32.mrf.mxu0
      %v1465 = vadd.f32 0.0, %v1464
      %v1466 = vpop.f32.mrf.mxu0
      %v1467 = vadd.f32 0.0, %v1466
      %1468 = vmatmul.bf16.gmra.mxu0 %v1396
      %v1469 = vpop.f32.mrf.mxu0
      %v1470 = vadd.f32 0.0, %v1469
      %v1471 = vpop.f32.mrf.mxu0
      %v1472 = vadd.f32 0.0, %v1471
      %1473 = vmatmul.bf16.gmra.mxu0 %v1397
      %v1474 = vpop.f32.mrf.mxu0
      %v1475 = vadd.f32 0.0, %v1474
      %v1476 = vpop.f32.mrf.mxu0
      %v1477 = vadd.f32 0.0, %v1476
      %1478 = vdwg.mxu0
      %v1479 = vadd.f32 %v1234, %v1460
      %v1480 = vadd.f32 %v1235, %v1462
      %v1481 = vadd.f32 %v1236, %v1465
      %v1482 = vadd.f32 %v1237, %v1467
      %v1483 = vadd.f32 %v1238, %v1470
      %v1484 = vadd.f32 %v1239, %v1472
      %v1485 = vadd.f32 %v1240, %v1475
      %v1486 = vadd.f32 %v1241, %v1477
      %s1487 = scalar_lea.vmem [#allocation2], 24
      %v1488 = vld [vmem:[%s1487] sm:$0x8]
      %v1489 = vld [vmem:[%s1487 + $0x4] sm:$0xf]
      %v1490 = vld [vmem:[%s1487 + $0xc] sm:$0x8]
      %v1491 = vld [vmem:[%s1487 + $0x10] sm:$0xf]
      %v1492 = vld [vmem:[%s1487 + $0x18] sm:$0x8]
      %v1493 = vld [vmem:[%s1487 + $0x1c] sm:$0xf]
      %v1494 = vld [vmem:[%s1487 + $0x24] sm:$0x8]
      %v1495 = vld [vmem:[%s1487 + $0x28] sm:$0xf]
      %v1496 = vld [vmem:[%s1487 + $0x30] sm:$0x8]
      %v1497 = vld [vmem:[%s1487 + $0x34] sm:$0xf]
      %v1498 = vld [vmem:[%s1487 + $0x3c] sm:$0x8]
      %v1499 = vld [vmem:[%s1487 + $0x40] sm:$0xf]
      %v1500 = vld [vmem:[%s1487 + $0x48] sm:$0x8]
      %v1501 = vld [vmem:[%s1487 + $0x4c] sm:$0xf]
      %v1502 = vld [vmem:[%s1487 + $0x54] sm:$0x8]
      %v1503 = vld [vmem:[%s1487 + $0x58] sm:$0xf]
      %v1505 = vshrl.u32 %v1488, 16
      %v1507 = vrot.slane %v1505, 7
      %v1508 = vrot.slane %v1507, 4
      %v1510 = vshrl.u32 %v1489, 16
      %v1512 = vrot.slane %v1510, 7
      %v1513 = vshll.u32 %v1489, 16
      %v1515 = vor.u32 %v1512, %v1513
      %v1516 = vsel %vm365, %v1508, %v1515
      %v1518 = vshrl.u32 %v1490, 16
      %v1520 = vrot.slane %v1518, 7
      %v1521 = vrot.slane %v1520, 4
      %v1523 = vshrl.u32 %v1491, 16
      %v1525 = vrot.slane %v1523, 7
      %v1526 = vshll.u32 %v1491, 16
      %v1528 = vor.u32 %v1525, %v1526
      %v1529 = vsel %vm365, %v1521, %v1528
      %v1531 = vshrl.u32 %v1492, 16
      %v1533 = vrot.slane %v1531, 7
      %v1534 = vrot.slane %v1533, 4
      %v1536 = vshrl.u32 %v1493, 16
      %v1538 = vrot.slane %v1536, 7
      %v1539 = vshll.u32 %v1493, 16
      %v1541 = vor.u32 %v1538, %v1539
      %v1542 = vsel %vm365, %v1534, %v1541
      %v1544 = vshrl.u32 %v1494, 16
      %v1546 = vrot.slane %v1544, 7
      %v1547 = vrot.slane %v1546, 4
      %v1549 = vshrl.u32 %v1495, 16
      %v1551 = vrot.slane %v1549, 7
      %v1552 = vshll.u32 %v1495, 16
      %v1554 = vor.u32 %v1551, %v1552
      %v1555 = vsel %vm365, %v1547, %v1554
      %v1557 = vshrl.u32 %v1496, 16
      %v1559 = vrot.slane %v1557, 7
      %v1560 = vrot.slane %v1559, 4
      %v1562 = vshrl.u32 %v1497, 16
      %v1564 = vrot.slane %v1562, 7
      %v1565 = vshll.u32 %v1497, 16
      %v1567 = vor.u32 %v1564, %v1565
      %v1568 = vsel %vm365, %v1560, %v1567
      %v1570 = vshrl.u32 %v1498, 16
      %v1572 = vrot.slane %v1570, 7
      %v1573 = vrot.slane %v1572, 4
      %v1575 = vshrl.u32 %v1499, 16
      %v1577 = vrot.slane %v1575, 7
      %v1578 = vshll.u32 %v1499, 16
      %v1580 = vor.u32 %v1577, %v1578
      %v1581 = vsel %vm365, %v1573, %v1580
      %v1583 = vshrl.u32 %v1500, 16
      %v1585 = vrot.slane %v1583, 7
      %v1586 = vrot.slane %v1585, 4
      %v1588 = vshrl.u32 %v1501, 16
      %v1590 = vrot.slane %v1588, 7
      %v1591 = vshll.u32 %v1501, 16
      %v1593 = vor.u32 %v1590, %v1591
      %v1594 = vsel %vm365, %v1586, %v1593
      %v1596 = vshrl.u32 %v1502, 16
      %v1598 = vrot.slane %v1596, 7
      %v1599 = vrot.slane %v1598, 4
      %v1601 = vshrl.u32 %v1503, 16
      %v1603 = vrot.slane %v1601, 7
      %v1604 = vshll.u32 %v1503, 16
      %v1606 = vor.u32 %v1603, %v1604
      %v1607 = vsel %vm365, %v1599, %v1606
      %v1608 = vunpack.c.l.b16 %v1516
      %v1609 = vunpack.c.l.b16 %v1529
      %v1610 = vunpack.c.l.b16 %v1542
      %v1611 = vunpack.c.l.b16 %v1555
      %v1612 = vunpack.c.l.b16 %v1568
      %v1613 = vunpack.c.l.b16 %v1581
      %v1614 = vunpack.c.l.b16 %v1594
      %v1615 = vunpack.c.l.b16 %v1607
      %v1616 = vpack.c.b16 %v1609, %v1608
      %v1617 = vpack.c.b16 %v1611, %v1610
      %v1618 = vpack.c.b16 %v1613, %v1612
      %v1619 = vpack.c.b16 %v1615, %v1614
      %v1632 = vunpack.c.l.b16 %v1489
      %v1633 = vunpack.c.l.b16 %v1491
      %v1634 = vunpack.c.l.b16 %v1493
      %v1635 = vunpack.c.l.b16 %v1495
      %v1636 = vunpack.c.l.b16 %v1497
      %v1637 = vunpack.c.l.b16 %v1499
      %v1638 = vunpack.c.l.b16 %v1501
      %v1639 = vunpack.c.l.b16 %v1503
      %v1640 = vpack.c.b16 %v1633, %v1632
      %v1641 = vpack.c.b16 %v1635, %v1634
      %v1642 = vpack.c.b16 %v1637, %v1636
      %v1643 = vpack.c.b16 %v1639, %v1638
      %v1648 = vld [vmem:[%s3 + $0x180] sm:$0xf]
      %v1649 = vld [vmem:[%s3 + $0x184] sm:$0xf]
      %v1650 = vld [vmem:[%s3 + $0x188] sm:$0xf]
      %v1651 = vld [vmem:[%s3 + $0x18c] sm:$0xf]
      %v1652 = vld [vmem:[%s3 + $0x190] sm:$0xf]
      %v1653 = vld [vmem:[%s3 + $0x194] sm:$0xf]
      %v1654 = vld [vmem:[%s3 + $0x198] sm:$0xf]
      %v1655 = vld [vmem:[%s3 + $0x19c] sm:$0xf]
      %v1656 = vld [vmem:[%s3 + $0x1a0] sm:$0xf]
      %v1657 = vld [vmem:[%s3 + $0x1a4] sm:$0xf]
      %v1658 = vld [vmem:[%s3 + $0x1a8] sm:$0xf]
      %v1659 = vld [vmem:[%s3 + $0x1ac] sm:$0xf]
      %v1660 = vld [vmem:[%s3 + $0x1b0] sm:$0xf]
      %v1661 = vld [vmem:[%s3 + $0x1b4] sm:$0xf]
      %v1662 = vld [vmem:[%s3 + $0x1b8] sm:$0xf]
      %v1663 = vld [vmem:[%s3 + $0x1bc] sm:$0xf]
      %v1664 = vld [vmem:[%s3 + $0x1c0] sm:$0xf]
      %v1665 = vld [vmem:[%s3 + $0x1c4] sm:$0xf]
      %v1666 = vld [vmem:[%s3 + $0x1c8] sm:$0xf]
      %v1667 = vld [vmem:[%s3 + $0x1cc] sm:$0xf]
      %v1668 = vld [vmem:[%s3 + $0x1d0] sm:$0xf]
      %v1669 = vld [vmem:[%s3 + $0x1d4] sm:$0xf]
      %v1670 = vld [vmem:[%s3 + $0x1d8] sm:$0xf]
      %v1671 = vld [vmem:[%s3 + $0x1dc] sm:$0xf]
      %v1672 = vld [vmem:[%s3 + $0x1e0] sm:$0xf]
      %v1673 = vld [vmem:[%s3 + $0x1e4] sm:$0xf]
      %v1674 = vld [vmem:[%s3 + $0x1e8] sm:$0xf]
      %v1675 = vld [vmem:[%s3 + $0x1ec] sm:$0xf]
      %v1676 = vld [vmem:[%s3 + $0x1f0] sm:$0xf]
      %v1677 = vld [vmem:[%s3 + $0x1f4] sm:$0xf]
      %v1678 = vld [vmem:[%s3 + $0x1f8] sm:$0xf]
      %v1679 = vld [vmem:[%s3 + $0x1fc] sm:$0xf]
      %v1712 = vunpack.c.l.b16 %v1648
      %v1713 = vunpack.c.l.b16 %v1649
      %v1714 = vunpack.c.l.b16 %v1650
      %v1715 = vunpack.c.l.b16 %v1651
      %v1716 = vunpack.c.l.b16 %v1652
      %v1717 = vunpack.c.l.b16 %v1653
      %v1718 = vunpack.c.l.b16 %v1654
      %v1719 = vunpack.c.l.b16 %v1655
      %v1720 = vunpack.c.l.b16 %v1656
      %v1721 = vunpack.c.l.b16 %v1657
      %v1722 = vunpack.c.l.b16 %v1658
      %v1723 = vunpack.c.l.b16 %v1659
      %v1724 = vunpack.c.l.b16 %v1660
      %v1725 = vunpack.c.l.b16 %v1661
      %v1726 = vunpack.c.l.b16 %v1662
      %v1727 = vunpack.c.l.b16 %v1663
      %v1728 = vunpack.c.l.b16 %v1664
      %v1729 = vunpack.c.l.b16 %v1665
      %v1730 = vunpack.c.l.b16 %v1666
      %v1731 = vunpack.c.l.b16 %v1667
      %v1732 = vunpack.c.l.b16 %v1668
      %v1733 = vunpack.c.l.b16 %v1669
      %v1734 = vunpack.c.l.b16 %v1670
      %v1735 = vunpack.c.l.b16 %v1671
      %v1736 = vunpack.c.l.b16 %v1672
      %v1737 = vunpack.c.l.b16 %v1673
      %v1738 = vunpack.c.l.b16 %v1674
      %v1739 = vunpack.c.l.b16 %v1675
      %v1740 = vunpack.c.l.b16 %v1676
      %v1741 = vunpack.c.l.b16 %v1677
      %v1742 = vunpack.c.l.b16 %v1678
      %v1743 = vunpack.c.l.b16 %v1679
      %v1744 = vpack.c.b16 %v1713, %v1712
      %v1745 = vpack.c.b16 %v1715, %v1714
      %v1746 = vpack.c.b16 %v1717, %v1716
      %v1747 = vpack.c.b16 %v1719, %v1718
      %v1748 = vpack.c.b16 %v1721, %v1720
      %v1749 = vpack.c.b16 %v1723, %v1722
      %v1750 = vpack.c.b16 %v1725, %v1724
      %v1751 = vpack.c.b16 %v1727, %v1726
      %v1752 = vpack.c.b16 %v1729, %v1728
      %v1753 = vpack.c.b16 %v1731, %v1730
      %v1754 = vpack.c.b16 %v1733, %v1732
      %v1755 = vpack.c.b16 %v1735, %v1734
      %v1756 = vpack.c.b16 %v1737, %v1736
      %v1757 = vpack.c.b16 %v1739, %v1738
      %v1758 = vpack.c.b16 %v1741, %v1740
      %v1759 = vpack.c.b16 %v1743, %v1742
      %1776 = vmatpush.bf16.msra.mxu0 %v1751
      %1777 = vmatpush.bf16.msra.mxu0 %v1750
      %1778 = vmatpush.bf16.msra.mxu0 %v1749
      %1779 = vmatpush.bf16.msra.mxu0 %v1748
      %1780 = vmatpush.bf16.msra.mxu0 %v1747
      %1781 = vmatpush.bf16.msra.mxu0 %v1746
      %1782 = vmatpush.bf16.msra.mxu0 %v1745
      %1783 = vmatpush.bf16.msra.mxu0 %v1744
      %1784 = vmatmul.bf16.gmra.mxu0 %v1616
      %v1785 = vpop.f32.mrf.mxu0
      %v1786 = vadd.f32 0.0, %v1785
      %v1787 = vpop.f32.mrf.mxu0
      %v1788 = vadd.f32 0.0, %v1787
      %1789 = vmatmul.bf16.gmra.mxu0 %v1617
      %v1790 = vpop.f32.mrf.mxu0
      %v1791 = vadd.f32 0.0, %v1790
      %v1792 = vpop.f32.mrf.mxu0
      %v1793 = vadd.f32 0.0, %v1792
      %1794 = vmatmul.bf16.gmra.mxu0 %v1618
      %v1795 = vpop.f32.mrf.mxu0
      %v1796 = vadd.f32 0.0, %v1795
      %v1797 = vpop.f32.mrf.mxu0
      %v1798 = vadd.f32 0.0, %v1797
      %1799 = vmatmul.bf16.gmra.mxu0 %v1619
      %v1800 = vpop.f32.mrf.mxu0
      %v1801 = vadd.f32 0.0, %v1800
      %v1802 = vpop.f32.mrf.mxu0
      %v1803 = vadd.f32 0.0, %v1802
      %1804 = vdwg.mxu0
      %1805 = vmatpush.bf16.msra.mxu0 %v1759
      %1806 = vmatpush.bf16.msra.mxu0 %v1758
      %1807 = vmatpush.bf16.msra.mxu0 %v1757
      %1808 = vmatpush.bf16.msra.mxu0 %v1756
      %1809 = vmatpush.bf16.msra.mxu0 %v1755
      %1810 = vmatpush.bf16.msra.mxu0 %v1754
      %1811 = vmatpush.bf16.msra.mxu0 %v1753
      %1812 = vmatpush.bf16.msra.mxu0 %v1752
      %1813 = vmatmul.bf16.gmra.mxu0 %v1640
      %v1814 = vpop.f32.mrf.mxu0
      %v1815 = vadd.f32 %v1786, %v1814
      %v1816 = vpop.f32.mrf.mxu0
      %v1817 = vadd.f32 %v1788, %v1816
      %1818 = vmatmul.bf16.gmra.mxu0 %v1641
      %v1819 = vpop.f32.mrf.mxu0
      %v1820 = vadd.f32 %v1791, %v1819
      %v1821 = vpop.f32.mrf.mxu0
      %v1822 = vadd.f32 %v1793, %v1821
      %1823 = vmatmul.bf16.gmra.mxu0 %v1642
      %v1824 = vpop.f32.mrf.mxu0
      %v1825 = vadd.f32 %v1796, %v1824
      %v1826 = vpop.f32.mrf.mxu0
      %v1827 = vadd.f32 %v1798, %v1826
      %1828 = vmatmul.bf16.gmra.mxu0 %v1643
      %v1829 = vpop.f32.mrf.mxu0
      %v1830 = vadd.f32 %v1801, %v1829
      %v1831 = vpop.f32.mrf.mxu0
      %v1832 = vadd.f32 %v1803, %v1831
      %1833 = vdwg.mxu0
      %v1834 = vadd.f32 %v1479, %v1815
      %v1835 = vadd.f32 %v1480, %v1817
      %v1836 = vadd.f32 %v1481, %v1820
      %v1837 = vadd.f32 %v1482, %v1822
      %v1838 = vadd.f32 %v1483, %v1825
      %v1839 = vadd.f32 %v1484, %v1827
      %v1840 = vadd.f32 %v1485, %v1830
      %v1841 = vadd.f32 %v1486, %v1832
      %v1842 = vld [vmem:[%s1487 + $0x4] sm:$0xf]
      %v1843 = vld [vmem:[%s1487 + $0x8] sm:$0x1]
      %v1844 = vld [vmem:[%s1487 + $0x10] sm:$0xf]
      %v1845 = vld [vmem:[%s1487 + $0x14] sm:$0x1]
      %v1846 = vld [vmem:[%s1487 + $0x1c] sm:$0xf]
      %v1847 = vld [vmem:[%s1487 + $0x20] sm:$0x1]
      %v1848 = vld [vmem:[%s1487 + $0x28] sm:$0xf]
      %v1849 = vld [vmem:[%s1487 + $0x2c] sm:$0x1]
      %v1850 = vld [vmem:[%s1487 + $0x34] sm:$0xf]
      %v1851 = vld [vmem:[%s1487 + $0x38] sm:$0x1]
      %v1852 = vld [vmem:[%s1487 + $0x40] sm:$0xf]
      %v1853 = vld [vmem:[%s1487 + $0x44] sm:$0x1]
      %v1854 = vld [vmem:[%s1487 + $0x4c] sm:$0xf]
      %v1855 = vld [vmem:[%s1487 + $0x50] sm:$0x1]
      %v1856 = vld [vmem:[%s1487 + $0x58] sm:$0xf]
      %v1857 = vld [vmem:[%s1487 + $0x5c] sm:$0x1]
      %v1859 = vshrl.u32 %v1842, 16
      %v1861 = vrot.slane %v1859, 4
      %v1862 = vshll.u32 %v1842, 16
      %v1864 = vrot.slane %v1862, 5
      %v1865 = vor.u32 %v1861, %v1864
      %v1866 = vrot.slane %v1865, 4
      %v1868 = vshll.u32 %v1843, 16
      %v1870 = vrot.slane %v1868, 5
      %v1871 = vsel %vm552, %v1866, %v1870
      %v1873 = vshrl.u32 %v1844, 16
      %v1875 = vrot.slane %v1873, 4
      %v1876 = vshll.u32 %v1844, 16
      %v1878 = vrot.slane %v1876, 5
      %v1879 = vor.u32 %v1875, %v1878
      %v1880 = vrot.slane %v1879, 4
      %v1882 = vshll.u32 %v1845, 16
      %v1884 = vrot.slane %v1882, 5
      %v1885 = vsel %vm552, %v1880, %v1884
      %v1887 = vshrl.u32 %v1846, 16
      %v1889 = vrot.slane %v1887, 4
      %v1890 = vshll.u32 %v1846, 16
      %v1892 = vrot.slane %v1890, 5
      %v1893 = vor.u32 %v1889, %v1892
      %v1894 = vrot.slane %v1893, 4
      %v1896 = vshll.u32 %v1847, 16
      %v1898 = vrot.slane %v1896, 5
      %v1899 = vsel %vm552, %v1894, %v1898
      %v1901 = vshrl.u32 %v1848, 16
      %v1903 = vrot.slane %v1901, 4
      %v1904 = vshll.u32 %v1848, 16
      %v1906 = vrot.slane %v1904, 5
      %v1907 = vor.u32 %v1903, %v1906
      %v1908 = vrot.slane %v1907, 4
      %v1910 = vshll.u32 %v1849, 16
      %v1912 = vrot.slane %v1910, 5
      %v1913 = vsel %vm552, %v1908, %v1912
      %v1915 = vshrl.u32 %v1850, 16
      %v1917 = vrot.slane %v1915, 4
      %v1918 = vshll.u32 %v1850, 16
      %v1920 = vrot.slane %v1918, 5
      %v1921 = vor.u32 %v1917, %v1920
      %v1922 = vrot.slane %v1921, 4
      %v1924 = vshll.u32 %v1851, 16
      %v1926 = vrot.slane %v1924, 5
      %v1927 = vsel %vm552, %v1922, %v1926
      %v1929 = vshrl.u32 %v1852, 16
      %v1931 = vrot.slane %v1929, 4
      %v1932 = vshll.u32 %v1852, 16
      %v1934 = vrot.slane %v1932, 5
      %v1935 = vor.u32 %v1931, %v1934
      %v1936 = vrot.slane %v1935, 4
      %v1938 = vshll.u32 %v1853, 16
      %v1940 = vrot.slane %v1938, 5
      %v1941 = vsel %vm552, %v1936, %v1940
      %v1943 = vshrl.u32 %v1854, 16
      %v1945 = vrot.slane %v1943, 4
      %v1946 = vshll.u32 %v1854, 16
      %v1948 = vrot.slane %v1946, 5
      %v1949 = vor.u32 %v1945, %v1948
      %v1950 = vrot.slane %v1949, 4
      %v1952 = vshll.u32 %v1855, 16
      %v1954 = vrot.slane %v1952, 5
      %v1955 = vsel %vm552, %v1950, %v1954
      %v1957 = vshrl.u32 %v1856, 16
      %v1959 = vrot.slane %v1957, 4
      %v1960 = vshll.u32 %v1856, 16
      %v1962 = vrot.slane %v1960, 5
      %v1963 = vor.u32 %v1959, %v1962
      %v1964 = vrot.slane %v1963, 4
      %v1966 = vshll.u32 %v1857, 16
      %v1968 = vrot.slane %v1966, 5
      %v1969 = vsel %vm552, %v1964, %v1968
      %v1970 = vld [vmem:[%s3 + $0x200] sm:$0xf]
      %v1971 = vld [vmem:[%s3 + $0x204] sm:$0xf]
      %v1972 = vld [vmem:[%s3 + $0x208] sm:$0xf]
      %v1973 = vld [vmem:[%s3 + $0x20c] sm:$0xf]
      %v1974 = vld [vmem:[%s3 + $0x210] sm:$0xf]
      %v1975 = vld [vmem:[%s3 + $0x214] sm:$0xf]
      %v1976 = vld [vmem:[%s3 + $0x218] sm:$0xf]
      %v1977 = vld [vmem:[%s3 + $0x21c] sm:$0xf]
      %v1978 = vld [vmem:[%s3 + $0x220] sm:$0xf]
      %v1979 = vld [vmem:[%s3 + $0x224] sm:$0xf]
      %v1980 = vld [vmem:[%s3 + $0x228] sm:$0xf]
      %v1981 = vld [vmem:[%s3 + $0x22c] sm:$0xf]
      %v1982 = vld [vmem:[%s3 + $0x230] sm:$0xf]
      %v1983 = vld [vmem:[%s3 + $0x234] sm:$0xf]
      %v1984 = vld [vmem:[%s3 + $0x238] sm:$0xf]
      %v1985 = vld [vmem:[%s3 + $0x23c] sm:$0xf]
      %v1986 = vunpack.c.l.b16 %v1871
      %v1987 = vunpack.c.l.b16 %v1885
      %v1988 = vunpack.c.l.b16 %v1899
      %v1989 = vunpack.c.l.b16 %v1913
      %v1990 = vunpack.c.l.b16 %v1927
      %v1991 = vunpack.c.l.b16 %v1941
      %v1992 = vunpack.c.l.b16 %v1955
      %v1993 = vunpack.c.l.b16 %v1969
      %v1994 = vpack.c.b16 %v1987, %v1986
      %v1995 = vpack.c.b16 %v1989, %v1988
      %v1996 = vpack.c.b16 %v1991, %v1990
      %v1997 = vpack.c.b16 %v1993, %v1992
      %v2018 = vunpack.c.l.b16 %v1970
      %v2019 = vunpack.c.l.b16 %v1971
      %v2020 = vunpack.c.l.b16 %v1972
      %v2021 = vunpack.c.l.b16 %v1973
      %v2022 = vunpack.c.l.b16 %v1974
      %v2023 = vunpack.c.l.b16 %v1975
      %v2024 = vunpack.c.l.b16 %v1976
      %v2025 = vunpack.c.l.b16 %v1977
      %v2026 = vunpack.c.l.b16 %v1978
      %v2027 = vunpack.c.l.b16 %v1979
      %v2028 = vunpack.c.l.b16 %v1980
      %v2029 = vunpack.c.l.b16 %v1981
      %v2030 = vunpack.c.l.b16 %v1982
      %v2031 = vunpack.c.l.b16 %v1983
      %v2032 = vunpack.c.l.b16 %v1984
      %v2033 = vunpack.c.l.b16 %v1985
      %v2034 = vpack.c.b16 %v2019, %v2018
      %v2035 = vpack.c.b16 %v2021, %v2020
      %v2036 = vpack.c.b16 %v2023, %v2022
      %v2037 = vpack.c.b16 %v2025, %v2024
      %v2038 = vpack.c.b16 %v2027, %v2026
      %v2039 = vpack.c.b16 %v2029, %v2028
      %v2040 = vpack.c.b16 %v2031, %v2030
      %v2041 = vpack.c.b16 %v2033, %v2032
      %2050 = vmatpush.bf16.msra.mxu0 %v2041
      %2051 = vmatpush.bf16.msra.mxu0 %v2040
      %2052 = vmatpush.bf16.msra.mxu0 %v2039
      %2053 = vmatpush.bf16.msra.mxu0 %v2038
      %2054 = vmatpush.bf16.msra.mxu0 %v2037
      %2055 = vmatpush.bf16.msra.mxu0 %v2036
      %2056 = vmatpush.bf16.msra.mxu0 %v2035
      %2057 = vmatpush.bf16.msra.mxu0 %v2034
      %2058 = vmatmul.bf16.gmra.mxu0 %v1994
      %v2059 = vpop.f32.mrf.mxu0
      %v2060 = vadd.f32 0.0, %v2059
      %v2061 = vpop.f32.mrf.mxu0
      %v2062 = vadd.f32 0.0, %v2061
      %2063 = vmatmul.bf16.gmra.mxu0 %v1995
      %v2064 = vpop.f32.mrf.mxu0
      %v2065 = vadd.f32 0.0, %v2064
      %v2066 = vpop.f32.mrf.mxu0
      %v2067 = vadd.f32 0.0, %v2066
      %2068 = vmatmul.bf16.gmra.mxu0 %v1996
      %v2069 = vpop.f32.mrf.mxu0
      %v2070 = vadd.f32 0.0, %v2069
      %v2071 = vpop.f32.mrf.mxu0
      %v2072 = vadd.f32 0.0, %v2071
      %2073 = vmatmul.bf16.gmra.mxu0 %v1997
      %v2074 = vpop.f32.mrf.mxu0
      %v2075 = vadd.f32 0.0, %v2074
      %v2076 = vpop.f32.mrf.mxu0
      %v2077 = vadd.f32 0.0, %v2076
      %2078 = vdwg.mxu0
      %v2079 = vadd.f32 %v1834, %v2060
      %v2080 = vadd.f32 %v1835, %v2062
      %v2081 = vadd.f32 %v1836, %v2065
      %v2082 = vadd.f32 %v1837, %v2067
      %v2083 = vadd.f32 %v1838, %v2070
      %v2084 = vadd.f32 %v1839, %v2072
      %v2085 = vadd.f32 %v1840, %v2075
      %v2086 = vadd.f32 %v1841, %v2077
      %2087 = vst [vmem:[%s231] sm:$0xff] %v2079
      %2088 = vst [vmem:[%s231 + $0x8] sm:$0xff] %v2080
      %2089 = vst [vmem:[%s231 + $0x10] sm:$0xff] %v2081
      %2090 = vst [vmem:[%s231 + $0x18] sm:$0xff] %v2082
      %2091 = vst [vmem:[%s231 + $0x20] sm:$0xff] %v2083
      %2092 = vst [vmem:[%s231 + $0x28] sm:$0xff] %v2084
      %2093 = vst [vmem:[%s231 + $0x30] sm:$0xff] %v2085
      %2094 = vst [vmem:[%s231 + $0x38] sm:$0xff] %v2086
      %v2095 = vadd.f32 %v2079, %v2080
      %v2096 = vadd.f32 %v2095, %v2081
      %v2097 = vadd.f32 %v2096, %v2082
      %v2098 = vadd.f32 %v2097, %v2083
      %v2099 = vadd.f32 %v2098, %v2084
      %v2100 = vadd.f32 %v2099, %v2085
      %v2101 = vadd.f32 %v2100, %v2086
      %v2102 = vrot.slane %v2101, 4
      %v2103 = vadd.f32 %v2101, %v2102
      %v2104 = vrot.slane %v2103, 2
      %v2105 = vadd.f32 %v2103, %v2104
      %v2106 = vrot.slane %v2105, 1
      %v2107 = vadd.f32 %v2105, %v2106
      %v2108 = vmul.f32 %v2107, 0.015625
      %v2109 = vsub.f32 %v2079, %v2108
      %v2110 = vsub.f32 %v2080, %v2108
      %v2111 = vsub.f32 %v2081, %v2108
      %v2112 = vsub.f32 %v2082, %v2108
      %v2113 = vsub.f32 %v2083, %v2108
      %v2114 = vsub.f32 %v2084, %v2108
      %v2115 = vsub.f32 %v2085, %v2108
      %v2116 = vsub.f32 %v2086, %v2108
      %v2117 = vmul.f32 %v2109, %v2109
      %v2118 = vmul.f32 %v2110, %v2110
      %v2119 = vmul.f32 %v2111, %v2111
      %v2120 = vmul.f32 %v2112, %v2112
      %v2121 = vmul.f32 %v2113, %v2113
      %v2122 = vmul.f32 %v2114, %v2114
      %v2123 = vmul.f32 %v2115, %v2115
      %v2124 = vmul.f32 %v2116, %v2116
      %v2125 = vadd.f32 %v2117, %v2118
      %v2126 = vadd.f32 %v2125, %v2119
      %v2127 = vadd.f32 %v2126, %v2120
      %v2128 = vadd.f32 %v2127, %v2121
      %v2129 = vadd.f32 %v2128, %v2122
      %v2130 = vadd.f32 %v2129, %v2123
      %v2131 = vadd.f32 %v2130, %v2124
      %v2132 = vrot.slane %v2131, 4
      %v2133 = vadd.f32 %v2131, %v2132
      %v2134 = vrot.slane %v2133, 2
      %v2135 = vadd.f32 %v2133, %v2134
      %v2136 = vrot.slane %v2135, 1
      %v2137 = vadd.f32 %v2135, %v2136
      %vm2138 = vcmask 1040384
      %v2139 = vsel %vm2138, %v2107, %v2137
      %vm2140 = vcmask 1041408
      %v2141 = vsel %vm2140, %v2139, 0.0
      %2142 = vst [vmem:[%s235] sm:$0xff] %v2141
      %p2143 = scmp.lt.s32.totalorder %s17, 1
      %s2144 = scalar_select %p2143, %s17, 1
      %s2145 = smul.addr %s2144, 8
      %s2146 = smul.addr %s2145, 8
      %s2147 = scalar_lea.vmem %s4, %s2146
      %p2148 = scmp.lt.s32.totalorder %s17, 1
      %s2149 = scalar_select %p2148, %s17, 1
      %s2150 = smul.addr %s2149, 8
      %s2151 = scalar_lea.vmem %s5, %s2150
      // Predicated region
      $region37: #{block_forward.4} parent=35 // pred_check
        %p2152 = pneg %p124
      $region38: #{block_forward.4} parent=35 // pred_check_branch
        %2154 = sbr.rel (%p2152) target = $region40
      $region39: #{block_forward.4} parent=35 // pred_region
        _
      $region40: #{block_forward.4} parent=35 // pred_fallthru
        _
      // Predicated region
      $region41: #{block_forward.4} parent=35 // pred_check
        %p2155 = pneg %p150
      $region42: #{block_forward.4} parent=35 // pred_check_branch
        %2157 = sbr.rel (%p2155) target = $region44
      $region43: #{block_forward.4} parent=35 // pred_region
        _
      $region44: #{block_forward.4} parent=35 // pred_fallthru
        _
    $region36: #{block_forward.4} parent=5 // pred_fallthru
      _
    %p2158 = scmp.le.s32.totalorder 2, %s12
    // Predicated region
    $region45: #{block_forward.4} parent=5 // pred_check
      %p2159 = pneg %p2158
    $region46: #{block_forward.4} parent=5 // pred_check_branch
      %2161 = sbr.rel (%p2159) target = $region48
    $region47: #{block_forward.4} parent=5 // pred_region
      %s2162 = ssub.s32 %s12, 2
      // Predicated region
      $region49: #{block_forward.4} parent=47 // pred_check
        %p2163 = pneg %p130
      $region50: #{block_forward.4} parent=47 // pred_check_branch
        %2165 = sbr.rel (%p2163) target = $region52
      $region51: #{block_forward.4} parent=47 // pred_region
        %p2166 = scmp.lt.s32.totalorder %s18, 1
        %s2167 = scalar_select %p2166, %s18, 1
        %s2168 = smul.addr %s2167, 8
        %s2169 = smul.addr %s2168, 8
        %s2170 = scalar_lea.vmem %s4, %s2169
      $region52: #{block_forward.4} parent=47 // pred_fallthru
        _
      // Predicated region
      $region53: #{block_forward.4} parent=47 // pred_check
        %p2171 = pneg %p156
      $region54: #{block_forward.4} parent=47 // pred_check_branch
        %2173 = sbr.rel (%p2171) target = $region56
      $region55: #{block_forward.4} parent=47 // pred_region
        %p2174 = scmp.lt.s32.totalorder %s18, 1
        %s2175 = scalar_select %p2174, %s18, 1
        %s2176 = smul.addr %s2175, 8
        %s2177 = scalar_lea.vmem %s5, %s2176
      $region56: #{block_forward.4} parent=47 // pred_fallthru
        _
    $region48: #{block_forward.4} parent=5 // pred_fallthru
      _
  $region6: #{block_forward.4} parent=0 // loop_footer
    %s16 = sadd.s32 1, %s12
  $region7: #{block_forward.4} parent=0 // loop_footer_branch
    %11 = sbr.rel target = $region3
  $region8: #{block_forward.4} parent=0 // loop_exit
    _

</llo_original>
